<compile_context>
chip_gen: v6e
topology: v6e:2x2x1
jax: 0.10.0
libtpu: 0.0.40
codegen_flags: <defaults>
</compile_context>

<pallas_src>
import functools

import jax
import jax.numpy as jnp
from jax import lax
from jax.experimental import pallas as pl
from jax.experimental.pallas import tpu as pltpu


_COMPUTE_DTYPE = jnp.bfloat16
# Scoped-VMEM raise that is safe on every generation (v7x physical VMEM is
# 64 MiB; per-image ConvStem blocks at 224x224 peak around ~15 MiB).
_VMEM_LIMIT_BYTES = 48 * 1024 * 1024


def _round_up(x, m):
    return ((x + m - 1) // m) * m


# ----------------------------- Pallas kernels ------------------------------ #

def _conv_bn_relu_kernel(x_ref, w_ref, scale_ref, shift_ref, o_ref,
                         *, tap_offsets, m_cmp):
    """One image: 3x3/s2 conv (as 4 phase taps of a 2x2/s1 conv) + BN + ReLU.

    x_ref       : (R_pad, 4*Cin)   phase-packed, row-flattened padded input
    w_ref       : (4, 4*Cin, Cout) per-tap weights (resident)
    scale/shift : (1, Cout)        folded inference BatchNorm (f32)
    o_ref       : (m_cmp, Cout)    output rows (includes a phantom column and
                                   trailing pad rows that the wrapper drops)

    Tap t reads rows [tap_offsets[t], tap_offsets[t]+m_cmp) of x_ref; any
    "wrong" rows it picks up only feed outputs that are discarded, so the
    whole conv is four static slices + MXU matmuls (no gather, no im2col).
    """
    acc = jnp.dot(x_ref[pl.ds(tap_offsets[0], m_cmp), :], w_ref[0],
                  preferred_element_type=jnp.float32)
    for t in range(1, 4):
        acc = acc + jnp.dot(x_ref[pl.ds(tap_offsets[t], m_cmp), :], w_ref[t],
                            preferred_element_type=jnp.float32)
    y = acc * scale_ref[...] + shift_ref[...]
    o_ref[...] = jnp.maximum(y, 0.0).astype(o_ref.dtype)


def _conv_bn_relu_proj_kernel(x_ref, w_ref, scale_ref, shift_ref,
                              wp_ref, b_ref, o_ref, *, tap_offsets, m_cmp):
    """Last stem conv + BN + ReLU fused with the 1x1 projection (+bias).

    The (m_cmp, Cout) intermediate never leaves VMEM: it is re-cast to bf16 and
    pushed through the resident projection weight inside the same kernel.
    """
    acc = jnp.dot(x_ref[pl.ds(tap_offsets[0], m_cmp), :], w_ref[0],
                  preferred_element_type=jnp.float32)
    for t in range(1, 4):
        acc = acc + jnp.dot(x_ref[pl.ds(tap_offsets[t], m_cmp), :], w_ref[t],
                            preferred_element_type=jnp.float32)
    h = jnp.maximum(acc * scale_ref[...] + shift_ref[...], 0.0)
    o_ref[...] = (jnp.dot(h.astype(wp_ref.dtype), wp_ref[...],
                          preferred_element_type=jnp.float32)
                  + b_ref[...]).astype(o_ref.dtype)


# ----------------------------- Wrapper helpers ----------------------------- #

def _space_to_depth_pad(x_nhwc):
    """(B,H,W,C), H/W even -> phase-packed, row-flattened (B, R_pad, 4C) bf16.

    y[b, i*Wc + j, (p*2+q)*C + c] = pad1(x)[b, 2i+p, 2j+q, c], Wc = W/2 + 1.
    A single XLA pad+transpose pass (no 9x im2col inflation).
    """
    B, H, W, C = x_nhwc.shape
    assert H % 2 == 0 and W % 2 == 0, (
        # NOTE: PyTorch's Conv2d(k=3,s=2,p=1) gives ceil(H/2) outputs for odd
        # H; this implementation supports the even case (true for img%16==0).
        "ConvStem Pallas path requires even spatial dims")
    Ho, Wo = H // 2, W // 2
    Wc = Wo + 1
    m_out = Ho * Wc                      # output rows incl. phantom column
    m_cmp = _round_up(m_out, 8)          # rows actually computed per image
    r_pad = _round_up(m_cmp + Wc + 2, 8)  # input rows stored per image

    xp = jnp.pad(x_nhwc, ((0, 0), (1, 1), (1, 1), (0, 0)))
    y = xp.reshape(B, Ho + 1, 2, Wc, 2, C)
    y = y.transpose(0, 1, 3, 2, 4, 5).reshape(B, (Ho + 1) * Wc, 4 * C)
    y = jnp.pad(y, ((0, 0), (0, r_pad - (Ho + 1) * Wc), (0, 0)))
    meta = dict(Ho=Ho, Wo=Wo, Wc=Wc, m_out=m_out, m_cmp=m_cmp, r_pad=r_pad)
    return y.astype(_COMPUTE_DTYPE), meta


def _tap_weights(w_hwio):
    """(3,3,Cin,Cout) -> (4, 4*Cin, Cout) weights for the phase-packed conv."""
    cin, cout = w_hwio.shape[2], w_hwio.shape[3]
    w2 = jnp.zeros((2, 2, 2, 2, cin, cout), w_hwio.dtype)
    for di in range(2):
        for dj in range(2):
            for p in range(2):
                for q in range(2):
                    dh, dw = 2 * di + p, 2 * dj + q
                    if dh < 3 and dw < 3:
                        w2 = w2.at[di, dj, p, q].set(w_hwio[dh, dw])
    return w2.reshape(4, 4 * cin, cout)


def _crop_to_nhwc(out, md, channels):
    """Drop phantom column + pad rows; (B, m_cmp, C) -> (B, Ho, Wo, C)."""
    B = out.shape[0]
    out = out[:, :md["m_out"], :].reshape(B, md["Ho"], md["Wc"], channels)
    return out[:, :, :md["Wo"], :]


# ----------------------------- Pallas wrappers ----------------------------- #

def pallas_conv3x3s2_bn_relu(x_nhwc, w_hwio, scale, shift):
    B = x_nhwc.shape[0]
    cin, cout = w_hwio.shape[2], w_hwio.shape[3]
    y, md = _space_to_depth_pad(x_nhwc)
    w2 = _tap_weights(w_hwio).astype(_COMPUTE_DTYPE)
    offs = (0, 1, md["Wc"], md["Wc"] + 1)
    kern = functools.partial(_conv_bn_relu_kernel,
                             tap_offsets=offs, m_cmp=md["m_cmp"])
    out = pl.pallas_call(
        kern,
        out_shape=jax.ShapeDtypeStruct((B, md["m_cmp"], cout), _COMPUTE_DTYPE),
        grid_spec=pltpu.PrefetchScalarGridSpec(
            num_scalar_prefetch=0,
            grid=(B,),
            in_specs=[
                # Whole (flattened) image per step; blocks equal the full last
                # two dims so no 128-padding / masked-DMA constraints apply.
                pl.BlockSpec((None, md["r_pad"], 4 * cin), lambda b: (b, 0, 0)),
                pl.BlockSpec((4, 4 * cin, cout), lambda b: (0, 0, 0)),
                pl.BlockSpec((1, cout), lambda b: (0, 0)),   # BN scale
                pl.BlockSpec((1, cout), lambda b: (0, 0)),   # BN shift
            ],
            out_specs=pl.BlockSpec((None, md["m_cmp"], cout),
                                   lambda b: (b, 0, 0)),
        ),
        compiler_params=pltpu.CompilerParams(
            dimension_semantics=("parallel",),   # images -> both v7x cores
            vmem_limit_bytes=_VMEM_LIMIT_BYTES,
        ),
    )(y, w2, scale.astype(jnp.float32), shift.astype(jnp.float32))
    return _crop_to_nhwc(out, md, cout)


def pallas_conv_bn_relu_proj(x_nhwc, w_hwio, scale, shift, w_proj, b_proj):
    B = x_nhwc.shape[0]
    cin, cout = w_hwio.shape[2], w_hwio.shape[3]
    emb = w_proj.shape[1]
    y, md = _space_to_depth_pad(x_nhwc)
    w2 = _tap_weights(w_hwio).astype(_COMPUTE_DTYPE)
    offs = (0, 1, md["Wc"], md["Wc"] + 1)
    kern = functools.partial(_conv_bn_relu_proj_kernel,
                             tap_offsets=offs, m_cmp=md["m_cmp"])
    out = pl.pallas_call(
        kern,
        out_shape=jax.ShapeDtypeStruct((B, md["m_cmp"], emb), _COMPUTE_DTYPE),
        grid_spec=pltpu.PrefetchScalarGridSpec(
            num_scalar_prefetch=0,
            grid=(B,),
            in_specs=[
                pl.BlockSpec((None, md["r_pad"], 4 * cin), lambda b: (b, 0, 0)),
                pl.BlockSpec((4, 4 * cin, cout), lambda b: (0, 0, 0)),
                pl.BlockSpec((1, cout), lambda b: (0, 0)),   # BN scale
                pl.BlockSpec((1, cout), lambda b: (0, 0)),   # BN shift
                pl.BlockSpec((cout, emb), lambda b: (0, 0)),  # proj weight
                pl.BlockSpec((1, emb), lambda b: (0, 0)),     # proj bias
            ],
            out_specs=pl.BlockSpec((None, md["m_cmp"], emb),
                                   lambda b: (b, 0, 0)),
        ),
        compiler_params=pltpu.CompilerParams(
            dimension_semantics=("parallel",),
            vmem_limit_bytes=_VMEM_LIMIT_BYTES,
        ),
    )(y, w2, scale.astype(jnp.float32), shift.astype(jnp.float32),
      w_proj.astype(_COMPUTE_DTYPE), b_proj.astype(jnp.float32))
    return _crop_to_nhwc(out, md, emb)


# ----------------------------- Forward / reference -------------------------- #

def conv_stem_forward(x_nchw, params):
    """ConvStem forward. Returns (B, num_patches, embed_dim) like the module."""
    # NCHW -> NHWC; activations kept in bf16 between layers (halves HBM bytes).
    x = jnp.transpose(x_nchw, (0, 2, 3, 1)).astype(_COMPUTE_DTYPE)
    stem = params["stem"]

    # First three Conv(3x3, s=2, p=1, no bias) + BatchNorm + ReLU blocks.
    for (w_hwio, scale, shift) in stem[:-1]:
        x = pallas_conv3x3s2_bn_relu(x, w_hwio, scale, shift)

    # Last stem block fused with the final 1x1 conv (+bias) in one kernel.
    w_hwio, scale, shift = stem[-1]
    w1x1, b1x1 = params["proj"]
    y = pallas_conv_bn_relu_proj(x, w_hwio, scale, shift, w1x1, b1x1)

    # flatten(2).transpose(1, 2) on NCHW == reshape (B, H*W, E) on NHWC.
    # norm_layer=None -> nn.Identity()
    B, Ho, Wo, E = y.shape
    return y.reshape(B, Ho * Wo, E)


def reference_forward(x_nchw, params):
    """Plain-JAX f32 reference (module semantics) for correctness checking."""
    x = jnp.transpose(x_nchw, (0, 2, 3, 1)).astype(jnp.float32)
    for (w_hwio, scale, shift) in params["stem"]:
        y = lax.conv_general_dilated(
            x, w_hwio, window_strides=(2, 2), padding=((1, 1), (1, 1)),
            dimension_numbers=("NHWC", "HWIO", "NHWC"))
        x = jnp.maximum(y * scale + shift, 0.0)
    w1x1, b1x1 = params["proj"]
    y = jnp.einsum("bhwc,ce->bhwe", x, w1x1) + b1x1
    B, Ho, Wo, E = y.shape
    return y.reshape(B, Ho * Wo, E)


def init_params(key, in_chans, embed_dim):
    """Deterministic synthetic parameters (same shapes as the torch module)."""
    stem = []
    input_dim, output_dim = in_chans, embed_dim // 8
    for _ in range(4):
        key, kw, kg, kb, km, kv = jax.random.split(key, 6)
        w = 0.1 * jax.random.normal(kw, (3, 3, input_dim, output_dim), jnp.float32)
        gamma = 1.0 + 0.1 * jax.random.normal(kg, (output_dim,), jnp.float32)
        beta = 0.1 * jax.random.normal(kb, (output_dim,), jnp.float32)
        mean = 0.1 * jax.random.normal(km, (output_dim,), jnp.float32)
        var = 0.5 + jnp.abs(jax.random.normal(kv, (output_dim,), jnp.float32))
        eps = 1e-5
        scale = (gamma / jnp.sqrt(var + eps)).reshape(1, output_dim)
        shift = (beta - mean * gamma / jnp.sqrt(var + eps)).reshape(1, output_dim)
        stem.append((w, scale, shift))
        input_dim = output_dim
        output_dim *= 2
    key, kw, kb = jax.random.split(key, 3)
    w1x1 = 0.1 * jax.random.normal(kw, (input_dim, embed_dim), jnp.float32)
    b1x1 = 0.1 * jax.random.normal(kb, (1, embed_dim), jnp.float32)
    return {"stem": stem, "proj": (w1x1, b1x1)}


if __name__ == "__main__":
    # Small shapes consistent with the module: patch_size=16 -> img_size=32
    # gives a 2x2 grid (4 patches). embed_dim=64 (divisible by 8), in_chans=4.
    B, C, H, W = 2, 4, 32, 32
    embed_dim = 64

    key = jax.random.PRNGKey(0)
    key, kx = jax.random.split(key)
    x = jax.random.normal(kx, (B, C, H, W), jnp.float32)

    params = init_params(key, in_chans=C, embed_dim=embed_dim)

    fwd = jax.jit(conv_stem_forward)          # lets XLA fuse the repack passes
    out = jax.block_until_ready(fwd(x, params))
    ref = jax.block_until_ready(reference_forward(x, params))

    assert out.shape == (B, (H // 16) * (W // 16), embed_dim), out.shape
    # Tolerance reflects bf16 MXU operands / bf16 activations (f32 accumulation)
    # vs. the f32 reference.
    err = float(jnp.max(jnp.abs(out.astype(jnp.float32) - ref)))
    assert jnp.allclose(out.astype(jnp.float32), ref, atol=4e-2, rtol=4e-2), err

    print("KERNEL_OK")
</pallas_src>

<mosaic_0001>
module attributes {stable_mosaic.version = 11 : i64} {
  func.func @_conv_bn_relu_kernel(%arg0: i32, %arg1: memref<1x296x16xbf16, #tpu.memory_space<vmem>>, %arg2: memref<4x16x8xbf16, #tpu.memory_space<vmem>>, %arg3: memref<1x8xf32, #tpu.memory_space<vmem>>, %arg4: memref<1x8xf32, #tpu.memory_space<vmem>>, %arg5: memref<1x272x8xbf16, #tpu.memory_space<vmem>>) attributes {dimension_semantics = [#tpu.dimension_semantics<parallel>], iteration_bounds = array<i64: 2>, scalar_prefetch = 0 : i64, scratch_operands = 0 : i64, tpu.core_type = #tpu.core_type<tc>, window_params = [{transform_indices = @transform_0, window_bounds = array<i64: 1, 296, 16>}, {pipeline_mode = #tpu.pipeline_mode<synchronous>, transform_indices = @transform_1, window_bounds = array<i64: 4, 16, 8>}, {pipeline_mode = #tpu.pipeline_mode<synchronous>, transform_indices = @transform_2, window_bounds = array<i64: 1, 8>}, {pipeline_mode = #tpu.pipeline_mode<synchronous>, transform_indices = @transform_3, window_bounds = array<i64: 1, 8>}, {transform_indices = @transform_4, window_bounds = array<i64: 1, 272, 8>}]} {
    %c0 = arith.constant 0 : index
    %c0_0 = arith.constant 0 : index
    %c0_1 = arith.constant 0 : index
    %0 = vector.load %arg1[%c0, %c0_0, %c0_1] : memref<1x296x16xbf16, #tpu.memory_space<vmem>>, vector<1x272x16xbf16>
    %1 = vector.shape_cast %0 : vector<1x272x16xbf16> to vector<272x16xbf16>
    %c0_2 = arith.constant 0 : index
    %c0_3 = arith.constant 0 : index
    %c0_4 = arith.constant 0 : index
    %2 = vector.load %arg2[%c0_2, %c0_3, %c0_4] : memref<4x16x8xbf16, #tpu.memory_space<vmem>>, vector<1x16x8xbf16>
    %3 = vector.shape_cast %2 : vector<1x16x8xbf16> to vector<16x8xbf16>
    %cst = arith.constant dense<0.000000e+00> : vector<272x8xf32>
    %4 = tpu.matmul %1, %3, %cst {dimension_numbers = #tpu.dot_dimension_numbers<[1], [0], [0], [1], [0, 0, 1, 1], [], []>} : vector<272x16xbf16>, vector<16x8xbf16>, vector<272x8xf32> -> vector<272x8xf32>
    %c0_5 = arith.constant 0 : index
    %c1 = arith.constant 1 : index
    %c0_6 = arith.constant 0 : index
    %5 = vector.load %arg1[%c0_5, %c1, %c0_6] : memref<1x296x16xbf16, #tpu.memory_space<vmem>>, vector<1x272x16xbf16>
    %6 = vector.shape_cast %5 : vector<1x272x16xbf16> to vector<272x16xbf16>
    %c1_7 = arith.constant 1 : index
    %c0_8 = arith.constant 0 : index
    %c0_9 = arith.constant 0 : index
    %7 = vector.load %arg2[%c1_7, %c0_8, %c0_9] : memref<4x16x8xbf16, #tpu.memory_space<vmem>>, vector<1x16x8xbf16>
    %8 = vector.shape_cast %7 : vector<1x16x8xbf16> to vector<16x8xbf16>
    %cst_10 = arith.constant dense<0.000000e+00> : vector<272x8xf32>
    %9 = tpu.matmul %6, %8, %cst_10 {dimension_numbers = #tpu.dot_dimension_numbers<[1], [0], [0], [1], [0, 0, 1, 1], [], []>} : vector<272x16xbf16>, vector<16x8xbf16>, vector<272x8xf32> -> vector<272x8xf32>
    %10 = arith.addf %4, %9 : vector<272x8xf32>
    %c0_11 = arith.constant 0 : index
    %c17 = arith.constant 17 : index
    %c0_12 = arith.constant 0 : index
    %11 = vector.load %arg1[%c0_11, %c17, %c0_12] : memref<1x296x16xbf16, #tpu.memory_space<vmem>>, vector<1x272x16xbf16>
    %12 = vector.shape_cast %11 : vector<1x272x16xbf16> to vector<272x16xbf16>
    %c2 = arith.constant 2 : index
    %c0_13 = arith.constant 0 : index
    %c0_14 = arith.constant 0 : index
    %13 = vector.load %arg2[%c2, %c0_13, %c0_14] : memref<4x16x8xbf16, #tpu.memory_space<vmem>>, vector<1x16x8xbf16>
    %14 = vector.shape_cast %13 : vector<1x16x8xbf16> to vector<16x8xbf16>
    %cst_15 = arith.constant dense<0.000000e+00> : vector<272x8xf32>
    %15 = tpu.matmul %12, %14, %cst_15 {dimension_numbers = #tpu.dot_dimension_numbers<[1], [0], [0], [1], [0, 0, 1, 1], [], []>} : vector<272x16xbf16>, vector<16x8xbf16>, vector<272x8xf32> -> vector<272x8xf32>
    %16 = arith.addf %10, %15 : vector<272x8xf32>
    %c0_16 = arith.constant 0 : index
    %c18 = arith.constant 18 : index
    %c0_17 = arith.constant 0 : index
    %17 = vector.load %arg1[%c0_16, %c18, %c0_17] : memref<1x296x16xbf16, #tpu.memory_space<vmem>>, vector<1x272x16xbf16>
    %18 = vector.shape_cast %17 : vector<1x272x16xbf16> to vector<272x16xbf16>
    %c3 = arith.constant 3 : index
    %c0_18 = arith.constant 0 : index
    %c0_19 = arith.constant 0 : index
    %19 = vector.load %arg2[%c3, %c0_18, %c0_19] : memref<4x16x8xbf16, #tpu.memory_space<vmem>>, vector<1x16x8xbf16>
    %20 = vector.shape_cast %19 : vector<1x16x8xbf16> to vector<16x8xbf16>
    %cst_20 = arith.constant dense<0.000000e+00> : vector<272x8xf32>
    %21 = tpu.matmul %18, %20, %cst_20 {dimension_numbers = #tpu.dot_dimension_numbers<[1], [0], [0], [1], [0, 0, 1, 1], [], []>} : vector<272x16xbf16>, vector<16x8xbf16>, vector<272x8xf32> -> vector<272x8xf32>
    %22 = arith.addf %16, %21 : vector<272x8xf32>
    %c0_21 = arith.constant 0 : index
    %c0_22 = arith.constant 0 : index
    %23 = vector.load %arg3[%c0_21, %c0_22] : memref<1x8xf32, #tpu.memory_space<vmem>>, vector<1x8xf32>
    %24 = vector.broadcast %23 : vector<1x8xf32> to vector<272x8xf32>
    %25 = arith.mulf %22, %24 : vector<272x8xf32>
    %c0_23 = arith.constant 0 : index
    %c0_24 = arith.constant 0 : index
    %26 = vector.load %arg4[%c0_23, %c0_24] : memref<1x8xf32, #tpu.memory_space<vmem>>, vector<1x8xf32>
    %27 = vector.broadcast %26 : vector<1x8xf32> to vector<272x8xf32>
    %28 = arith.addf %25, %27 : vector<272x8xf32>
    %cst_25 = arith.constant 0.000000e+00 : f32
    %29 = vector.broadcast %cst_25 : f32 to vector<272x8xf32>
    %30 = arith.maximumf %28, %29 : vector<272x8xf32>
    %31 = arith.truncf %30 : vector<272x8xf32> to vector<272x8xbf16>
    %c0_26 = arith.constant 0 : index
    %c0_27 = arith.constant 0 : index
    %c0_28 = arith.constant 0 : index
    %32 = vector.load %arg5[%c0_26, %c0_27, %c0_28] : memref<1x272x8xbf16, #tpu.memory_space<vmem>>, vector<1x272x8xbf16>
    %33 = vector.shape_cast %32 : vector<1x272x8xbf16> to vector<272x8xbf16>
    %34 = vector.shape_cast %31 : vector<272x8xbf16> to vector<1x272x8xbf16>
    tpu.vector_store %arg5[%c0_26, %c0_27, %c0_28], %34 {strides = array<i32>} : memref<1x272x8xbf16, #tpu.memory_space<vmem>>, vector<1x272x8xbf16>,
    return
  }
  func.func @transform_0(%arg0: i32) -> (i32, i32, i32) {
    %c0_i32 = arith.constant 0 : i32
    %c0_i32_0 = arith.constant 0 : i32
    %c0_i32_1 = arith.constant 0 : i32
    return %arg0, %c0_i32, %c0_i32_0 : i32, i32, i32
  }
  func.func @transform_1(%arg0: i32) -> (i32, i32, i32) {
    %c0_i32 = arith.constant 0 : i32
    %c0_i32_0 = arith.constant 0 : i32
    %c0_i32_1 = arith.constant 0 : i32
    %c0_i32_2 = arith.constant 0 : i32
    return %c0_i32, %c0_i32_0, %c0_i32_1 : i32, i32, i32
  }
  func.func @transform_2(%arg0: i32) -> (i32, i32) {
    %c0_i32 = arith.constant 0 : i32
    %c0_i32_0 = arith.constant 0 : i32
    %c0_i32_1 = arith.constant 0 : i32
    return %c0_i32, %c0_i32_0 : i32, i32
  }
  func.func @transform_3(%arg0: i32) -> (i32, i32) {
    %c0_i32 = arith.constant 0 : i32
    %c0_i32_0 = arith.constant 0 : i32
    %c0_i32_1 = arith.constant 0 : i32
    return %c0_i32, %c0_i32_0 : i32, i32
  }
  func.func @transform_4(%arg0: i32) -> (i32, i32, i32) {
    %c0_i32 = arith.constant 0 : i32
    %c0_i32_0 = arith.constant 0 : i32
    %c0_i32_1 = arith.constant 0 : i32
    return %arg0, %c0_i32, %c0_i32_0 : i32, i32, i32
  }
}

module attributes {stable_mosaic.version = 11 : i64} {
  func.func @_conv_bn_relu_kernel(%arg0: i32, %arg1: memref<1x88x32xbf16, #tpu.memory_space<vmem>>, %arg2: memref<4x32x16xbf16, #tpu.memory_space<vmem>>, %arg3: memref<1x16xf32, #tpu.memory_space<vmem>>, %arg4: memref<1x16xf32, #tpu.memory_space<vmem>>, %arg5: memref<1x72x16xbf16, #tpu.memory_space<vmem>>) attributes {dimension_semantics = [#tpu.dimension_semantics<parallel>], iteration_bounds = array<i64: 2>, scalar_prefetch = 0 : i64, scratch_operands = 0 : i64, tpu.core_type = #tpu.core_type<tc>, window_params = [{transform_indices = @transform_0, window_bounds = array<i64: 1, 88, 32>}, {pipeline_mode = #tpu.pipeline_mode<synchronous>, transform_indices = @transform_1, window_bounds = array<i64: 4, 32, 16>}, {pipeline_mode = #tpu.pipeline_mode<synchronous>, transform_indices = @transform_2, window_bounds = array<i64: 1, 16>}, {pipeline_mode = #tpu.pipeline_mode<synchronous>, transform_indices = @transform_3, window_bounds = array<i64: 1, 16>}, {transform_indices = @transform_4, window_bounds = array<i64: 1, 72, 16>}]} {
    %c0 = arith.constant 0 : index
    %c0_0 = arith.constant 0 : index
    %c0_1 = arith.constant 0 : index
    %0 = vector.load %arg1[%c0, %c0_0, %c0_1] : memref<1x88x32xbf16, #tpu.memory_space<vmem>>, vector<1x72x32xbf16>
    %1 = vector.shape_cast %0 : vector<1x72x32xbf16> to vector<72x32xbf16>
    %c0_2 = arith.constant 0 : index
    %c0_3 = arith.constant 0 : index
    %c0_4 = arith.constant 0 : index
    %2 = vector.load %arg2[%c0_2, %c0_3, %c0_4] : memref<4x32x16xbf16, #tpu.memory_space<vmem>>, vector<1x32x16xbf16>
    %3 = vector.shape_cast %2 : vector<1x32x16xbf16> to vector<32x16xbf16>
    %cst = arith.constant dense<0.000000e+00> : vector<72x16xf32>
    %4 = tpu.matmul %1, %3, %cst {dimension_numbers = #tpu.dot_dimension_numbers<[1], [0], [0], [1], [0, 0, 1, 1], [], []>} : vector<72x32xbf16>, vector<32x16xbf16>, vector<72x16xf32> -> vector<72x16xf32>
    %c0_5 = arith.constant 0 : index
    %c1 = arith.constant 1 : index
    %c0_6 = arith.constant 0 : index
    %5 = vector.load %arg1[%c0_5, %c1, %c0_6] : memref<1x88x32xbf16, #tpu.memory_space<vmem>>, vector<1x72x32xbf16>
    %6 = vector.shape_cast %5 : vector<1x72x32xbf16> to vector<72x32xbf16>
    %c1_7 = arith.constant 1 : index
    %c0_8 = arith.constant 0 : index
    %c0_9 = arith.constant 0 : index
    %7 = vector.load %arg2[%c1_7, %c0_8, %c0_9] : memref<4x32x16xbf16, #tpu.memory_space<vmem>>, vector<1x32x16xbf16>
    %8 = vector.shape_cast %7 : vector<1x32x16xbf16> to vector<32x16xbf16>
    %cst_10 = arith.constant dense<0.000000e+00> : vector<72x16xf32>
    %9 = tpu.matmul %6, %8, %cst_10 {dimension_numbers = #tpu.dot_dimension_numbers<[1], [0], [0], [1], [0, 0, 1, 1], [], []>} : vector<72x32xbf16>, vector<32x16xbf16>, vector<72x16xf32> -> vector<72x16xf32>
    %10 = arith.addf %4, %9 : vector<72x16xf32>
    %c0_11 = arith.constant 0 : index
    %c9 = arith.constant 9 : index
    %c0_12 = arith.constant 0 : index
    %11 = vector.load %arg1[%c0_11, %c9, %c0_12] : memref<1x88x32xbf16, #tpu.memory_space<vmem>>, vector<1x72x32xbf16>
    %12 = vector.shape_cast %11 : vector<1x72x32xbf16> to vector<72x32xbf16>
    %c2 = arith.constant 2 : index
    %c0_13 = arith.constant 0 : index
    %c0_14 = arith.constant 0 : index
    %13 = vector.load %arg2[%c2, %c0_13, %c0_14] : memref<4x32x16xbf16, #tpu.memory_space<vmem>>, vector<1x32x16xbf16>
    %14 = vector.shape_cast %13 : vector<1x32x16xbf16> to vector<32x16xbf16>
    %cst_15 = arith.constant dense<0.000000e+00> : vector<72x16xf32>
    %15 = tpu.matmul %12, %14, %cst_15 {dimension_numbers = #tpu.dot_dimension_numbers<[1], [0], [0], [1], [0, 0, 1, 1], [], []>} : vector<72x32xbf16>, vector<32x16xbf16>, vector<72x16xf32> -> vector<72x16xf32>
    %16 = arith.addf %10, %15 : vector<72x16xf32>
    %c0_16 = arith.constant 0 : index
    %c10 = arith.constant 10 : index
    %c0_17 = arith.constant 0 : index
    %17 = vector.load %arg1[%c0_16, %c10, %c0_17] : memref<1x88x32xbf16, #tpu.memory_space<vmem>>, vector<1x72x32xbf16>
    %18 = vector.shape_cast %17 : vector<1x72x32xbf16> to vector<72x32xbf16>
    %c3 = arith.constant 3 : index
    %c0_18 = arith.constant 0 : index
    %c0_19 = arith.constant 0 : index
    %19 = vector.load %arg2[%c3, %c0_18, %c0_19] : memref<4x32x16xbf16, #tpu.memory_space<vmem>>, vector<1x32x16xbf16>
    %20 = vector.shape_cast %19 : vector<1x32x16xbf16> to vector<32x16xbf16>
    %cst_20 = arith.constant dense<0.000000e+00> : vector<72x16xf32>
    %21 = tpu.matmul %18, %20, %cst_20 {dimension_numbers = #tpu.dot_dimension_numbers<[1], [0], [0], [1], [0, 0, 1, 1], [], []>} : vector<72x32xbf16>, vector<32x16xbf16>, vector<72x16xf32> -> vector<72x16xf32>
    %22 = arith.addf %16, %21 : vector<72x16xf32>
    %c0_21 = arith.constant 0 : index
    %c0_22 = arith.constant 0 : index
    %23 = vector.load %arg3[%c0_21, %c0_22] : memref<1x16xf32, #tpu.memory_space<vmem>>, vector<1x16xf32>
    %24 = vector.broadcast %23 : vector<1x16xf32> to vector<72x16xf32>
    %25 = arith.mulf %22, %24 : vector<72x16xf32>
    %c0_23 = arith.constant 0 : index
    %c0_24 = arith.constant 0 : index
    %26 = vector.load %arg4[%c0_23, %c0_24] : memref<1x16xf32, #tpu.memory_space<vmem>>, vector<1x16xf32>
    %27 = vector.broadcast %26 : vector<1x16xf32> to vector<72x16xf32>
    %28 = arith.addf %25, %27 : vector<72x16xf32>
    %cst_25 = arith.constant 0.000000e+00 : f32
    %29 = vector.broadcast %cst_25 : f32 to vector<72x16xf32>
    %30 = arith.maximumf %28, %29 : vector<72x16xf32>
    %31 = arith.truncf %30 : vector<72x16xf32> to vector<72x16xbf16>
    %c0_26 = arith.constant 0 : index
    %c0_27 = arith.constant 0 : index
    %c0_28 = arith.constant 0 : index
    %32 = vector.load %arg5[%c0_26, %c0_27, %c0_28] : memref<1x72x16xbf16, #tpu.memory_space<vmem>>, vector<1x72x16xbf16>
    %33 = vector.shape_cast %32 : vector<1x72x16xbf16> to vector<72x16xbf16>
    %34 = vector.shape_cast %31 : vector<72x16xbf16> to vector<1x72x16xbf16>
    tpu.vector_store %arg5[%c0_26, %c0_27, %c0_28], %34 {strides = array<i32>} : memref<1x72x16xbf16, #tpu.memory_space<vmem>>, vector<1x72x16xbf16>,
    return
  }
  func.func @transform_0(%arg0: i32) -> (i32, i32, i32) {
    %c0_i32 = arith.constant 0 : i32
    %c0_i32_0 = arith.constant 0 : i32
    %c0_i32_1 = arith.constant 0 : i32
    return %arg0, %c0_i32, %c0_i32_0 : i32, i32, i32
  }
  func.func @transform_1(%arg0: i32) -> (i32, i32, i32) {
    %c0_i32 = arith.constant 0 : i32
    %c0_i32_0 = arith.constant 0 : i32
    %c0_i32_1 = arith.constant 0 : i32
    %c0_i32_2 = arith.constant 0 : i32
    return %c0_i32, %c0_i32_0, %c0_i32_1 : i32, i32, i32
  }
  func.func @transform_2(%arg0: i32) -> (i32, i32) {
    %c0_i32 = arith.constant 0 : i32
    %c0_i32_0 = arith.constant 0 : i32
    %c0_i32_1 = arith.constant 0 : i32
    return %c0_i32, %c0_i32_0 : i32, i32
  }
  func.func @transform_3(%arg0: i32) -> (i32, i32) {
    %c0_i32 = arith.constant 0 : i32
    %c0_i32_0 = arith.constant 0 : i32
    %c0_i32_1 = arith.constant 0 : i32
    return %c0_i32, %c0_i32_0 : i32, i32
  }
  func.func @transform_4(%arg0: i32) -> (i32, i32, i32) {
    %c0_i32 = arith.constant 0 : i32
    %c0_i32_0 = arith.constant 0 : i32
    %c0_i32_1 = arith.constant 0 : i32
    return %arg0, %c0_i32, %c0_i32_0 : i32, i32, i32
  }
}

module attributes {stable_mosaic.version = 11 : i64} {
  func.func @_conv_bn_relu_kernel(%arg0: i32, %arg1: memref<1x32x64xbf16, #tpu.memory_space<vmem>>, %arg2: memref<4x64x32xbf16, #tpu.memory_space<vmem>>, %arg3: memref<1x32xf32, #tpu.memory_space<vmem>>, %arg4: memref<1x32xf32, #tpu.memory_space<vmem>>, %arg5: memref<1x24x32xbf16, #tpu.memory_space<vmem>>) attributes {dimension_semantics = [#tpu.dimension_semantics<parallel>], iteration_bounds = array<i64: 2>, scalar_prefetch = 0 : i64, scratch_operands = 0 : i64, tpu.core_type = #tpu.core_type<tc>, window_params = [{transform_indices = @transform_0, window_bounds = array<i64: 1, 32, 64>}, {pipeline_mode = #tpu.pipeline_mode<synchronous>, transform_indices = @transform_1, window_bounds = array<i64: 4, 64, 32>}, {pipeline_mode = #tpu.pipeline_mode<synchronous>, transform_indices = @transform_2, window_bounds = array<i64: 1, 32>}, {pipeline_mode = #tpu.pipeline_mode<synchronous>, transform_indices = @transform_3, window_bounds = array<i64: 1, 32>}, {transform_indices = @transform_4, window_bounds = array<i64: 1, 24, 32>}]} {
    %c0 = arith.constant 0 : index
    %c0_0 = arith.constant 0 : index
    %c0_1 = arith.constant 0 : index
    %0 = vector.load %arg1[%c0, %c0_0, %c0_1] : memref<1x32x64xbf16, #tpu.memory_space<vmem>>, vector<1x24x64xbf16>
    %1 = vector.shape_cast %0 : vector<1x24x64xbf16> to vector<24x64xbf16>
    %c0_2 = arith.constant 0 : index
    %c0_3 = arith.constant 0 : index
    %c0_4 = arith.constant 0 : index
    %2 = vector.load %arg2[%c0_2, %c0_3, %c0_4] : memref<4x64x32xbf16, #tpu.memory_space<vmem>>, vector<1x64x32xbf16>
    %3 = vector.shape_cast %2 : vector<1x64x32xbf16> to vector<64x32xbf16>
    %cst = arith.constant dense<0.000000e+00> : vector<24x32xf32>
    %4 = tpu.matmul %1, %3, %cst {dimension_numbers = #tpu.dot_dimension_numbers<[1], [0], [0], [1], [0, 0, 1, 1], [], []>} : vector<24x64xbf16>, vector<64x32xbf16>, vector<24x32xf32> -> vector<24x32xf32>
    %c0_5 = arith.constant 0 : index
    %c1 = arith.constant 1 : index
    %c0_6 = arith.constant 0 : index
    %5 = vector.load %arg1[%c0_5, %c1, %c0_6] : memref<1x32x64xbf16, #tpu.memory_space<vmem>>, vector<1x24x64xbf16>
    %6 = vector.shape_cast %5 : vector<1x24x64xbf16> to vector<24x64xbf16>
    %c1_7 = arith.constant 1 : index
    %c0_8 = arith.constant 0 : index
    %c0_9 = arith.constant 0 : index
    %7 = vector.load %arg2[%c1_7, %c0_8, %c0_9] : memref<4x64x32xbf16, #tpu.memory_space<vmem>>, vector<1x64x32xbf16>
    %8 = vector.shape_cast %7 : vector<1x64x32xbf16> to vector<64x32xbf16>
    %cst_10 = arith.constant dense<0.000000e+00> : vector<24x32xf32>
    %9 = tpu.matmul %6, %8, %cst_10 {dimension_numbers = #tpu.dot_dimension_numbers<[1], [0], [0], [1], [0, 0, 1, 1], [], []>} : vector<24x64xbf16>, vector<64x32xbf16>, vector<24x32xf32> -> vector<24x32xf32>
    %10 = arith.addf %4, %9 : vector<24x32xf32>
    %c0_11 = arith.constant 0 : index
    %c5 = arith.constant 5 : index
    %c0_12 = arith.constant 0 : index
    %11 = vector.load %arg1[%c0_11, %c5, %c0_12] : memref<1x32x64xbf16, #tpu.memory_space<vmem>>, vector<1x24x64xbf16>
    %12 = vector.shape_cast %11 : vector<1x24x64xbf16> to vector<24x64xbf16>
    %c2 = arith.constant 2 : index
    %c0_13 = arith.constant 0 : index
    %c0_14 = arith.constant 0 : index
    %13 = vector.load %arg2[%c2, %c0_13, %c0_14] : memref<4x64x32xbf16, #tpu.memory_space<vmem>>, vector<1x64x32xbf16>
    %14 = vector.shape_cast %13 : vector<1x64x32xbf16> to vector<64x32xbf16>
    %cst_15 = arith.constant dense<0.000000e+00> : vector<24x32xf32>
    %15 = tpu.matmul %12, %14, %cst_15 {dimension_numbers = #tpu.dot_dimension_numbers<[1], [0], [0], [1], [0, 0, 1, 1], [], []>} : vector<24x64xbf16>, vector<64x32xbf16>, vector<24x32xf32> -> vector<24x32xf32>
    %16 = arith.addf %10, %15 : vector<24x32xf32>
    %c0_16 = arith.constant 0 : index
    %c6 = arith.constant 6 : index
    %c0_17 = arith.constant 0 : index
    %17 = vector.load %arg1[%c0_16, %c6, %c0_17] : memref<1x32x64xbf16, #tpu.memory_space<vmem>>, vector<1x24x64xbf16>
    %18 = vector.shape_cast %17 : vector<1x24x64xbf16> to vector<24x64xbf16>
    %c3 = arith.constant 3 : index
    %c0_18 = arith.constant 0 : index
    %c0_19 = arith.constant 0 : index
    %19 = vector.load %arg2[%c3, %c0_18, %c0_19] : memref<4x64x32xbf16, #tpu.memory_space<vmem>>, vector<1x64x32xbf16>
    %20 = vector.shape_cast %19 : vector<1x64x32xbf16> to vector<64x32xbf16>
    %cst_20 = arith.constant dense<0.000000e+00> : vector<24x32xf32>
    %21 = tpu.matmul %18, %20, %cst_20 {dimension_numbers = #tpu.dot_dimension_numbers<[1], [0], [0], [1], [0, 0, 1, 1], [], []>} : vector<24x64xbf16>, vector<64x32xbf16>, vector<24x32xf32> -> vector<24x32xf32>
    %22 = arith.addf %16, %21 : vector<24x32xf32>
    %c0_21 = arith.constant 0 : index
    %c0_22 = arith.constant 0 : index
    %23 = vector.load %arg3[%c0_21, %c0_22] : memref<1x32xf32, #tpu.memory_space<vmem>>, vector<1x32xf32>
    %24 = vector.broadcast %23 : vector<1x32xf32> to vector<24x32xf32>
    %25 = arith.mulf %22, %24 : vector<24x32xf32>
    %c0_23 = arith.constant 0 : index
    %c0_24 = arith.constant 0 : index
    %26 = vector.load %arg4[%c0_23, %c0_24] : memref<1x32xf32, #tpu.memory_space<vmem>>, vector<1x32xf32>
    %27 = vector.broadcast %26 : vector<1x32xf32> to vector<24x32xf32>
    %28 = arith.addf %25, %27 : vector<24x32xf32>
    %cst_25 = arith.constant 0.000000e+00 : f32
    %29 = vector.broadcast %cst_25 : f32 to vector<24x32xf32>
    %30 = arith.maximumf %28, %29 : vector<24x32xf32>
    %31 = arith.truncf %30 : vector<24x32xf32> to vector<24x32xbf16>
    %c0_26 = arith.constant 0 : index
    %c0_27 = arith.constant 0 : index
    %c0_28 = arith.constant 0 : index
    %32 = vector.load %arg5[%c0_26, %c0_27, %c0_28] : memref<1x24x32xbf16, #tpu.memory_space<vmem>>, vector<1x24x32xbf16>
    %33 = vector.shape_cast %32 : vector<1x24x32xbf16> to vector<24x32xbf16>
    %34 = vector.shape_cast %31 : vector<24x32xbf16> to vector<1x24x32xbf16>
    tpu.vector_store %arg5[%c0_26, %c0_27, %c0_28], %34 {strides = array<i32>} : memref<1x24x32xbf16, #tpu.memory_space<vmem>>, vector<1x24x32xbf16>,
    return
  }
  func.func @transform_0(%arg0: i32) -> (i32, i32, i32) {
    %c0_i32 = arith.constant 0 : i32
    %c0_i32_0 = arith.constant 0 : i32
    %c0_i32_1 = arith.constant 0 : i32
    return %arg0, %c0_i32, %c0_i32_0 : i32, i32, i32
  }
  func.func @transform_1(%arg0: i32) -> (i32, i32, i32) {
    %c0_i32 = arith.constant 0 : i32
    %c0_i32_0 = arith.constant 0 : i32
    %c0_i32_1 = arith.constant 0 : i32
    %c0_i32_2 = arith.constant 0 : i32
    return %c0_i32, %c0_i32_0, %c0_i32_1 : i32, i32, i32
  }
  func.func @transform_2(%arg0: i32) -> (i32, i32) {
    %c0_i32 = arith.constant 0 : i32
    %c0_i32_0 = arith.constant 0 : i32
    %c0_i32_1 = arith.constant 0 : i32
    return %c0_i32, %c0_i32_0 : i32, i32
  }
  func.func @transform_3(%arg0: i32) -> (i32, i32) {
    %c0_i32 = arith.constant 0 : i32
    %c0_i32_0 = arith.constant 0 : i32
    %c0_i32_1 = arith.constant 0 : i32
    return %c0_i32, %c0_i32_0 : i32, i32
  }
  func.func @transform_4(%arg0: i32) -> (i32, i32, i32) {
    %c0_i32 = arith.constant 0 : i32
    %c0_i32_0 = arith.constant 0 : i32
    %c0_i32_1 = arith.constant 0 : i32
    return %arg0, %c0_i32, %c0_i32_0 : i32, i32, i32
  }
}

module attributes {stable_mosaic.version = 11 : i64} {
  func.func @_conv_bn_relu_proj_kernel(%arg0: i32, %arg1: memref<1x16x128xbf16, #tpu.memory_space<vmem>>, %arg2: memref<4x128x64xbf16, #tpu.memory_space<vmem>>, %arg3: memref<1x64xf32, #tpu.memory_space<vmem>>, %arg4: memref<1x64xf32, #tpu.memory_space<vmem>>, %arg5: memref<64x64xbf16, #tpu.memory_space<vmem>>, %arg6: memref<1x64xf32, #tpu.memory_space<vmem>>, %arg7: memref<1x8x64xbf16, #tpu.memory_space<vmem>>) attributes {dimension_semantics = [#tpu.dimension_semantics<parallel>], iteration_bounds = array<i64: 2>, scalar_prefetch = 0 : i64, scratch_operands = 0 : i64, tpu.core_type = #tpu.core_type<tc>, window_params = [{transform_indices = @transform_0, window_bounds = array<i64: 1, 16, 128>}, {pipeline_mode = #tpu.pipeline_mode<synchronous>, transform_indices = @transform_1, window_bounds = array<i64: 4, 128, 64>}, {pipeline_mode = #tpu.pipeline_mode<synchronous>, transform_indices = @transform_2, window_bounds = array<i64: 1, 64>}, {pipeline_mode = #tpu.pipeline_mode<synchronous>, transform_indices = @transform_3, window_bounds = array<i64: 1, 64>}, {pipeline_mode = #tpu.pipeline_mode<synchronous>, transform_indices = @transform_4, window_bounds = array<i64: 64, 64>}, {pipeline_mode = #tpu.pipeline_mode<synchronous>, transform_indices = @transform_5, window_bounds = array<i64: 1, 64>}, {transform_indices = @transform_6, window_bounds = array<i64: 1, 8, 64>}]} {
    %c0 = arith.constant 0 : index
    %c0_0 = arith.constant 0 : index
    %c0_1 = arith.constant 0 : index
    %0 = vector.load %arg1[%c0, %c0_0, %c0_1] : memref<1x16x128xbf16, #tpu.memory_space<vmem>>, vector<1x8x128xbf16>
    %1 = vector.shape_cast %0 : vector<1x8x128xbf16> to vector<8x128xbf16>
    %c0_2 = arith.constant 0 : index
    %c0_3 = arith.constant 0 : index
    %c0_4 = arith.constant 0 : index
    %2 = vector.load %arg2[%c0_2, %c0_3, %c0_4] : memref<4x128x64xbf16, #tpu.memory_space<vmem>>, vector<1x128x64xbf16>
    %3 = vector.shape_cast %2 : vector<1x128x64xbf16> to vector<128x64xbf16>
    %cst = arith.constant dense<0.000000e+00> : vector<8x64xf32>
    %4 = tpu.matmul %1, %3, %cst {dimension_numbers = #tpu.dot_dimension_numbers<[1], [0], [0], [1], [0, 0, 1, 1], [], []>} : vector<8x128xbf16>, vector<128x64xbf16>, vector<8x64xf32> -> vector<8x64xf32>
    %c0_5 = arith.constant 0 : index
    %c1 = arith.constant 1 : index
    %c0_6 = arith.constant 0 : index
    %5 = vector.load %arg1[%c0_5, %c1, %c0_6] : memref<1x16x128xbf16, #tpu.memory_space<vmem>>, vector<1x8x128xbf16>
    %6 = vector.shape_cast %5 : vector<1x8x128xbf16> to vector<8x128xbf16>
    %c1_7 = arith.constant 1 : index
    %c0_8 = arith.constant 0 : index
    %c0_9 = arith.constant 0 : index
    %7 = vector.load %arg2[%c1_7, %c0_8, %c0_9] : memref<4x128x64xbf16, #tpu.memory_space<vmem>>, vector<1x128x64xbf16>
    %8 = vector.shape_cast %7 : vector<1x128x64xbf16> to vector<128x64xbf16>
    %cst_10 = arith.constant dense<0.000000e+00> : vector<8x64xf32>
    %9 = tpu.matmul %6, %8, %cst_10 {dimension_numbers = #tpu.dot_dimension_numbers<[1], [0], [0], [1], [0, 0, 1, 1], [], []>} : vector<8x128xbf16>, vector<128x64xbf16>, vector<8x64xf32> -> vector<8x64xf32>
    %10 = arith.addf %4, %9 : vector<8x64xf32>
    %c0_11 = arith.constant 0 : index
    %c3 = arith.constant 3 : index
    %c0_12 = arith.constant 0 : index
    %11 = vector.load %arg1[%c0_11, %c3, %c0_12] : memref<1x16x128xbf16, #tpu.memory_space<vmem>>, vector<1x8x128xbf16>
    %12 = vector.shape_cast %11 : vector<1x8x128xbf16> to vector<8x128xbf16>
    %c2 = arith.constant 2 : index
    %c0_13 = arith.constant 0 : index
    %c0_14 = arith.constant 0 : index
    %13 = vector.load %arg2[%c2, %c0_13, %c0_14] : memref<4x128x64xbf16, #tpu.memory_space<vmem>>, vector<1x128x64xbf16>
    %14 = vector.shape_cast %13 : vector<1x128x64xbf16> to vector<128x64xbf16>
    %cst_15 = arith.constant dense<0.000000e+00> : vector<8x64xf32>
    %15 = tpu.matmul %12, %14, %cst_15 {dimension_numbers = #tpu.dot_dimension_numbers<[1], [0], [0], [1], [0, 0, 1, 1], [], []>} : vector<8x128xbf16>, vector<128x64xbf16>, vector<8x64xf32> -> vector<8x64xf32>
    %16 = arith.addf %10, %15 : vector<8x64xf32>
    %c0_16 = arith.constant 0 : index
    %c4 = arith.constant 4 : index
    %c0_17 = arith.constant 0 : index
    %17 = vector.load %arg1[%c0_16, %c4, %c0_17] : memref<1x16x128xbf16, #tpu.memory_space<vmem>>, vector<1x8x128xbf16>
    %18 = vector.shape_cast %17 : vector<1x8x128xbf16> to vector<8x128xbf16>
    %c3_18 = arith.constant 3 : index
    %c0_19 = arith.constant 0 : index
    %c0_20 = arith.constant 0 : index
    %19 = vector.load %arg2[%c3_18, %c0_19, %c0_20] : memref<4x128x64xbf16, #tpu.memory_space<vmem>>, vector<1x128x64xbf16>
    %20 = vector.shape_cast %19 : vector<1x128x64xbf16> to vector<128x64xbf16>
    %cst_21 = arith.constant dense<0.000000e+00> : vector<8x64xf32>
    %21 = tpu.matmul %18, %20, %cst_21 {dimension_numbers = #tpu.dot_dimension_numbers<[1], [0], [0], [1], [0, 0, 1, 1], [], []>} : vector<8x128xbf16>, vector<128x64xbf16>, vector<8x64xf32> -> vector<8x64xf32>
    %22 = arith.addf %16, %21 : vector<8x64xf32>
    %c0_22 = arith.constant 0 : index
    %c0_23 = arith.constant 0 : index
    %23 = vector.load %arg3[%c0_22, %c0_23] : memref<1x64xf32, #tpu.memory_space<vmem>>, vector<1x64xf32>
    %24 = vector.broadcast %23 : vector<1x64xf32> to vector<8x64xf32>
    %25 = arith.mulf %22, %24 : vector<8x64xf32>
    %c0_24 = arith.constant 0 : index
    %c0_25 = arith.constant 0 : index
    %26 = vector.load %arg4[%c0_24, %c0_25] : memref<1x64xf32, #tpu.memory_space<vmem>>, vector<1x64xf32>
    %27 = vector.broadcast %26 : vector<1x64xf32> to vector<8x64xf32>
    %28 = arith.addf %25, %27 : vector<8x64xf32>
    %cst_26 = arith.constant 0.000000e+00 : f32
    %29 = vector.broadcast %cst_26 : f32 to vector<8x64xf32>
    %30 = arith.maximumf %28, %29 : vector<8x64xf32>
    %31 = arith.truncf %30 : vector<8x64xf32> to vector<8x64xbf16>
    %c0_27 = arith.constant 0 : index
    %c0_28 = arith.constant 0 : index
    %32 = vector.load %arg5[%c0_27, %c0_28] : memref<64x64xbf16, #tpu.memory_space<vmem>>, vector<64x64xbf16>
    %cst_29 = arith.constant dense<0.000000e+00> : vector<8x64xf32>
    %33 = tpu.matmul %31, %32, %cst_29 {dimension_numbers = #tpu.dot_dimension_numbers<[1], [0], [0], [1], [0, 0, 1, 1], [], []>} : vector<8x64xbf16>, vector<64x64xbf16>, vector<8x64xf32> -> vector<8x64xf32>
    %c0_30 = arith.constant 0 : index
    %c0_31 = arith.constant 0 : index
    %34 = vector.load %arg6[%c0_30, %c0_31] : memref<1x64xf32, #tpu.memory_space<vmem>>, vector<1x64xf32>
    %35 = vector.broadcast %34 : vector<1x64xf32> to vector<8x64xf32>
    %36 = arith.addf %33, %35 : vector<8x64xf32>
    %37 = arith.truncf %36 : vector<8x64xf32> to vector<8x64xbf16>
    %c0_32 = arith.constant 0 : index
    %c0_33 = arith.constant 0 : index
    %c0_34 = arith.constant 0 : index
    %38 = vector.load %arg7[%c0_32, %c0_33, %c0_34] : memref<1x8x64xbf16, #tpu.memory_space<vmem>>, vector<1x8x64xbf16>
    %39 = vector.shape_cast %38 : vector<1x8x64xbf16> to vector<8x64xbf16>
    %40 = vector.shape_cast %37 : vector<8x64xbf16> to vector<1x8x64xbf16>
    tpu.vector_store %arg7[%c0_32, %c0_33, %c0_34], %40 {strides = array<i32>} : memref<1x8x64xbf16, #tpu.memory_space<vmem>>, vector<1x8x64xbf16>,
    return
  }
  func.func @transform_0(%arg0: i32) -> (i32, i32, i32) {
    %c0_i32 = arith.constant 0 : i32
    %c0_i32_0 = arith.constant 0 : i32
    %c0_i32_1 = arith.constant 0 : i32
    return %arg0, %c0_i32, %c0_i32_0 : i32, i32, i32
  }
  func.func @transform_1(%arg0: i32) -> (i32, i32, i32) {
    %c0_i32 = arith.constant 0 : i32
    %c0_i32_0 = arith.constant 0 : i32
    %c0_i32_1 = arith.constant 0 : i32
    %c0_i32_2 = arith.constant 0 : i32
    return %c0_i32, %c0_i32_0, %c0_i32_1 : i32, i32, i32
  }
  func.func @transform_2(%arg0: i32) -> (i32, i32) {
    %c0_i32 = arith.constant 0 : i32
    %c0_i32_0 = arith.constant 0 : i32
    %c0_i32_1 = arith.constant 0 : i32
    return %c0_i32, %c0_i32_0 : i32, i32
  }
  func.func @transform_3(%arg0: i32) -> (i32, i32) {
    %c0_i32 = arith.constant 0 : i32
    %c0_i32_0 = arith.constant 0 : i32
    %c0_i32_1 = arith.constant 0 : i32
    return %c0_i32, %c0_i32_0 : i32, i32
  }
  func.func @transform_4(%arg0: i32) -> (i32, i32) {
    %c0_i32 = arith.constant 0 : i32
    %c0_i32_0 = arith.constant 0 : i32
    %c0_i32_1 = arith.constant 0 : i32
    return %c0_i32, %c0_i32_0 : i32, i32
  }
  func.func @transform_5(%arg0: i32) -> (i32, i32) {
    %c0_i32 = arith.constant 0 : i32
    %c0_i32_0 = arith.constant 0 : i32
    %c0_i32_1 = arith.constant 0 : i32
    return %c0_i32, %c0_i32_0 : i32, i32
  }
  func.func @transform_6(%arg0: i32) -> (i32, i32, i32) {
    %c0_i32 = arith.constant 0 : i32
    %c0_i32_0 = arith.constant 0 : i32
    %c0_i32_1 = arith.constant 0 : i32
    return %arg0, %c0_i32, %c0_i32_0 : i32, i32, i32
  }
}

</mosaic_0001>

<llo_original>
// kernel: conv_stem_forward.4
$region0: #{conv_stem_forward.4}
  #allocation0 [shape = 'u32[]', space=smem, size = 0x4, offset = 0x4, fixed_abs, tag = 'smem constant byte address 0x4 - core index']
  #allocation1 [shape = 'u32[144,128]{1,0:T(1,128)}', space=vmem, size = 0x12000, scoped, tag = 'internal scratch']
  %s0 = inlined_call_operand.vmem [shape: bf16[2,296,16], index: 0, kind: input, shape index: {}]
  %s1 = inlined_call_operand.vmem [shape: bf16[4,16,8], index: 1, kind: input, shape index: {}]
  %s2 = inlined_call_operand.vmem [shape: f32[1,8], index: 2, kind: input, shape index: {}]
  %s3 = inlined_call_operand.vmem [shape: f32[1,8], index: 3, kind: input, shape index: {}]
  %s4 = inlined_call_operand.vmem [shape: bf16[2,272,8], index: 4, kind: output, shape index: {}]
  %s5 = sld [smem:[#allocation0]]
  $region49: #{conv_stem_forward.4} parent=0
    _
  %s7 = ssub.s32 1, %s5
  %s8 = scalar_select 0, %s7, %s5
  loop: start=0, step=1, limit=4
  $region2: #{conv_stem_forward.4} parent=0 // loop_pre_header
    _
  $region3: #{conv_stem_forward.4} parent=0 // loop_header
    %s10 = sphi 0, %s14
    %p11 = scmp.ge.s32.totalorder %s10, 4
    %s20 = sphi 0, %s22
    %s23 = sphi 0, %s20
    %s24 = sphi 0, %s23
    %s40 = sphi 0, %s24
    %s44 = sphi 0, %s44
    %s46 = sphi 0, %s44
    %s47 = sphi 0, %s46
    %s61 = sphi 0, %s47
    %s65 = sphi 0, %s65
    %s67 = sphi 0, %s65
    %s68 = sphi 0, %s67
    %s82 = sphi 0, %s68
    %s86 = sphi 0, %s86
    %s88 = sphi 0, %s86
    %s89 = sphi 0, %s88
    %s103 = sphi 0, %s89
    %s109 = sphi 0, %s111
    %s112 = sphi 0, %s109
    %s113 = sphi 0, %s112
    %s129 = sphi 0, %s113
  $region4: #{conv_stem_forward.4} parent=0 // loop_header_branch
    %13 = sbr.rel (%p11) target = $region8
  $region5: #{conv_stem_forward.4} parent=0 // loop_body
    %s15 = ssub.s32 %s10, 1
    %s16 = ssub.s32 %s10, 2
    %s17 = sadd.s32 %s10, 1
    %s18 = ssub.s32 %s10, %s17
    %p19 = scmp.eq.s32.totalorder %s18, 0
    %s21 = sadd.s32 %s20, 1
    %s22 = scalar_select %p19, %s20, %s21
    %p25 = pneg %p19
    %p26 = scmp.eq.s32.totalorder %s10, 1
    %p27 = por %p25, %p26
    %p28 = scmp.ne.s32.totalorder %s20, %s23
    %p29 = scmp.eq.s32.totalorder %s10, 0
    %p30 = por %p28, %p29
    %p31 = scmp.ne.s32.totalorder %s20, %s23
    %p32 = scmp.eq.s32.totalorder %s15, 1
    %p33 = por %p31, %p32
    %p34 = scmp.ne.s32.totalorder %s23, %s24
    %p35 = scmp.eq.s32.totalorder %s15, 0
    %p36 = por %p34, %p35
    %p37 = scmp.ne.s32.totalorder %s23, %s24
    %p38 = scmp.eq.s32.totalorder %s16, 1
    %p39 = por %p37, %p38
    %p41 = scmp.ne.s32.totalorder %s24, %s40
    %p42 = scmp.eq.s32.totalorder %s16, 0
    %p43 = por %p41, %p42
    %s45 = sadd.s32 %s44, 1
    %p48 = scmp.eq.s32.totalorder %s10, 1
    %p49 = scmp.ne.s32.totalorder %s44, %s46
    %p50 = scmp.eq.s32.totalorder %s10, 0
    %p51 = por %p49, %p50
    %p52 = scmp.ne.s32.totalorder %s44, %s46
    %p53 = scmp.eq.s32.totalorder %s15, 1
    %p54 = por %p52, %p53
    %p55 = scmp.ne.s32.totalorder %s46, %s47
    %p56 = scmp.eq.s32.totalorder %s15, 0
    %p57 = por %p55, %p56
    %p58 = scmp.ne.s32.totalorder %s46, %s47
    %p59 = scmp.eq.s32.totalorder %s16, 1
    %p60 = por %p58, %p59
    %p62 = scmp.ne.s32.totalorder %s47, %s61
    %p63 = scmp.eq.s32.totalorder %s16, 0
    %p64 = por %p62, %p63
    %s66 = sadd.s32 %s65, 1
    %p69 = scmp.eq.s32.totalorder %s10, 1
    %p70 = scmp.ne.s32.totalorder %s65, %s67
    %p71 = scmp.eq.s32.totalorder %s10, 0
    %p72 = por %p70, %p71
    %p73 = scmp.ne.s32.totalorder %s65, %s67
    %p74 = scmp.eq.s32.totalorder %s15, 1
    %p75 = por %p73, %p74
    %p76 = scmp.ne.s32.totalorder %s67, %s68
    %p77 = scmp.eq.s32.totalorder %s15, 0
    %p78 = por %p76, %p77
    %p79 = scmp.ne.s32.totalorder %s67, %s68
    %p80 = scmp.eq.s32.totalorder %s16, 1
    %p81 = por %p79, %p80
    %p83 = scmp.ne.s32.totalorder %s68, %s82
    %p84 = scmp.eq.s32.totalorder %s16, 0
    %p85 = por %p83, %p84
    %s87 = sadd.s32 %s86, 1
    %p90 = scmp.eq.s32.totalorder %s10, 1
    %p91 = scmp.ne.s32.totalorder %s86, %s88
    %p92 = scmp.eq.s32.totalorder %s10, 0
    %p93 = por %p91, %p92
    %p94 = scmp.ne.s32.totalorder %s86, %s88
    %p95 = scmp.eq.s32.totalorder %s15, 1
    %p96 = por %p94, %p95
    %p97 = scmp.ne.s32.totalorder %s88, %s89
    %p98 = scmp.eq.s32.totalorder %s15, 0
    %p99 = por %p97, %p98
    %p100 = scmp.ne.s32.totalorder %s88, %s89
    %p101 = scmp.eq.s32.totalorder %s16, 1
    %p102 = por %p100, %p101
    %p104 = scmp.ne.s32.totalorder %s89, %s103
    %p105 = scmp.eq.s32.totalorder %s16, 0
    %p106 = por %p104, %p105
    %s107 = ssub.s32 %s10, %s17
    %p108 = scmp.eq.s32.totalorder %s107, 0
    %s110 = sadd.s32 %s109, 1
    %s111 = scalar_select %p108, %s109, %s110
    %p114 = pneg %p108
    %p115 = scmp.eq.s32.totalorder %s10, 1
    %p116 = por %p114, %p115
    %p117 = scmp.ne.s32.totalorder %s109, %s112
    %p118 = scmp.eq.s32.totalorder %s10, 0
    %p119 = por %p117, %p118
    %p120 = scmp.ne.s32.totalorder %s109, %s112
    %p121 = scmp.eq.s32.totalorder %s15, 1
    %p122 = por %p120, %p121
    %p123 = scmp.ne.s32.totalorder %s112, %s113
    %p124 = scmp.eq.s32.totalorder %s15, 0
    %p125 = por %p123, %p124
    %p126 = scmp.ne.s32.totalorder %s112, %s113
    %p127 = scmp.eq.s32.totalorder %s16, 1
    %p128 = por %p126, %p127
    %p130 = scmp.ne.s32.totalorder %s113, %s129
    %p131 = scmp.eq.s32.totalorder %s16, 0
    %p132 = por %p130, %p131
    %p133 = scmp.le.s32.totalorder 1, %s10
    %p134 = scmp.lt.s32.totalorder %s10, 3
    %p135 = pnand %p133, %p134
    %p136 = pneg %p135
    // Predicated region
    $region9: #{conv_stem_forward.4} parent=5 // pred_check
      _
    $region10: #{conv_stem_forward.4} parent=5 // pred_check_branch
      %138 = sbr.rel (%p135) target = $region12
    $region11: #{conv_stem_forward.4} parent=5 // pred_region
      %s139 = ssub.s32 %s10, 1
      // Predicated region
      $region13: #{conv_stem_forward.4} parent=11 // pred_check
        %p140 = pneg %p57
      $region14: #{conv_stem_forward.4} parent=11 // pred_check_branch
        %142 = sbr.rel (%p140) target = $region16
      $region15: #{conv_stem_forward.4} parent=11 // pred_region
        _
      $region16: #{conv_stem_forward.4} parent=11 // pred_fallthru
        _
      // Predicated region
      $region17: #{conv_stem_forward.4} parent=11 // pred_check
        %p143 = pneg %p78
      $region18: #{conv_stem_forward.4} parent=11 // pred_check_branch
        %145 = sbr.rel (%p143) target = $region20
      $region19: #{conv_stem_forward.4} parent=11 // pred_region
        _
      $region20: #{conv_stem_forward.4} parent=11 // pred_fallthru
        _
      // Predicated region
      $region21: #{conv_stem_forward.4} parent=11 // pred_check
        %p146 = pneg %p99
      $region22: #{conv_stem_forward.4} parent=11 // pred_check_branch
        %148 = sbr.rel (%p146) target = $region24
      $region23: #{conv_stem_forward.4} parent=11 // pred_region
        _
      $region24: #{conv_stem_forward.4} parent=11 // pred_fallthru
        _
    $region12: #{conv_stem_forward.4} parent=5 // pred_fallthru
      _
    %p149 = scmp.lt.s32.totalorder %s10, 2
    // Predicated region
    $region25: #{conv_stem_forward.4} parent=5 // pred_check
      %p150 = pneg %p149
    $region26: #{conv_stem_forward.4} parent=5 // pred_check_branch
      %152 = sbr.rel (%p150) target = $region28
    $region27: #{conv_stem_forward.4} parent=5 // pred_region
      // Predicated region
      $region29: #{conv_stem_forward.4} parent=27 // pred_check
        %p153 = pneg %p30
      $region30: #{conv_stem_forward.4} parent=27 // pred_check_branch
        %155 = sbr.rel (%p153) target = $region32
      $region31: #{conv_stem_forward.4} parent=27 // pred_region
        %p156 = scmp.lt.s32.totalorder %s10, 1
        %s157 = scalar_select %p156, %s10, 1
        %s158 = smul.addr %s157, 37
        %s159 = smul.addr %s158, 4
        %s160 = scalar_lea.vmem %s0, %s159
      $region32: #{conv_stem_forward.4} parent=27 // pred_fallthru
        _
    $region28: #{conv_stem_forward.4} parent=5 // pred_fallthru
      _
    %p161 = scmp.le.s32.totalorder 1, %s10
    %p162 = scmp.lt.s32.totalorder %s10, 3
    %p163 = pnand %p161, %p162
    %p164 = pneg %p163
    // Predicated region
    $region33: #{conv_stem_forward.4} parent=5 // pred_check
      _
    $region34: #{conv_stem_forward.4} parent=5 // pred_check_branch
      %166 = sbr.rel (%p163) target = $region36
    $region35: #{conv_stem_forward.4} parent=5 // pred_region
      %s167 = ssub.s32 %s10, 1
      %p168 = scmp.lt.s32.totalorder %s15, 1
      %s169 = scalar_select %p168, %s15, 1
      %s170 = smul.addr %s169, 37
      %s171 = smul.addr %s170, 4
      %s172 = scalar_lea.vmem %s0, %s171
      %p173 = pneg %p36
      %p174 = pneg %p33
      %p175 = pneg %p57
      %p176 = pneg %p54
      %p177 = pneg %p78
      %p178 = pneg %p75
      %p179 = pneg %p99
      %p180 = pneg %p96
      %p181 = pneg %p125
      %p182 = pneg %p122
      %p183 = scmp.lt.s32.totalorder %s15, 1
      %s184 = scalar_select %p183, %s15, 1
      %s185 = smul.addr %s184, 34
      %s186 = smul.addr %s185, 4
      %s187 = scalar_lea.vmem %s4, %s186
      %p188 = scmp.lt.s32.totalorder %s15, 1
      %s189 = scalar_select %p188, %s15, 1
      %s190 = smul.addr %s189, 37
      %s191 = smul.addr %s190, 4
      %s192 = scalar_lea.vmem %s0, %s191
      %p193 = scmp.lt.s32.totalorder %s15, 1
      %s194 = scalar_select %p193, %s15, 1
      %s195 = smul.addr %s194, 34
      %s196 = smul.addr %s195, 4
      %s197 = scalar_lea.vmem %s4, %s196
      %v199 = vld [vmem:[%s192] sm:$0xf]
      %v200 = vld [vmem:[%s192 + $0x4] sm:$0xf]
      %v201 = vld [vmem:[%s192 + $0x8] sm:$0xf]
      %v202 = vld [vmem:[%s192 + $0xc] sm:$0xf]
      %v203 = vld [vmem:[%s192 + $0x10] sm:$0xf]
      %v204 = vld [vmem:[%s192 + $0x14] sm:$0xf]
      %v205 = vld [vmem:[%s192 + $0x18] sm:$0xf]
      %v206 = vld [vmem:[%s192 + $0x1c] sm:$0xf]
      %v207 = vld [vmem:[%s192 + $0x20] sm:$0xf]
      %v208 = vld [vmem:[%s192 + $0x24] sm:$0xf]
      %v209 = vld [vmem:[%s192 + $0x28] sm:$0xf]
      %v210 = vld [vmem:[%s192 + $0x2c] sm:$0xf]
      %v211 = vld [vmem:[%s192 + $0x30] sm:$0xf]
      %v212 = vld [vmem:[%s192 + $0x34] sm:$0xf]
      %v213 = vld [vmem:[%s192 + $0x38] sm:$0xf]
      %v214 = vld [vmem:[%s192 + $0x3c] sm:$0xf]
      %v215 = vld [vmem:[%s192 + $0x40] sm:$0xf]
      %v216 = vld [vmem:[%s192 + $0x44] sm:$0xf]
      %v217 = vld [vmem:[%s192 + $0x48] sm:$0xf]
      %v218 = vld [vmem:[%s192 + $0x4c] sm:$0xf]
      %v219 = vld [vmem:[%s192 + $0x50] sm:$0xf]
      %v220 = vld [vmem:[%s192 + $0x54] sm:$0xf]
      %v221 = vld [vmem:[%s192 + $0x58] sm:$0xf]
      %v222 = vld [vmem:[%s192 + $0x5c] sm:$0xf]
      %v223 = vld [vmem:[%s192 + $0x60] sm:$0xf]
      %v224 = vld [vmem:[%s192 + $0x64] sm:$0xf]
      %v225 = vld [vmem:[%s192 + $0x68] sm:$0xf]
      %v226 = vld [vmem:[%s192 + $0x6c] sm:$0xf]
      %v227 = vld [vmem:[%s192 + $0x70] sm:$0xf]
      %v228 = vld [vmem:[%s192 + $0x74] sm:$0xf]
      %v229 = vld [vmem:[%s192 + $0x78] sm:$0xf]
      %v230 = vld [vmem:[%s192 + $0x7c] sm:$0xf]
      %v231 = vld [vmem:[%s192 + $0x80] sm:$0xf]
      %v232 = vld [vmem:[%s192 + $0x84] sm:$0xf]
      %v233 = vld [vmem:[%s1] sm:$0xf]
      %v234 = vld [vmem:[%s1 + $0x4] sm:$0xf]
      %v235 = vld [vmem:[%s192 + $0x88] sm:$0x1]
      %s236 = scalar_lea.vmem %s1, 8
      %v237 = vld [vmem:[%s236] sm:$0xf]
      %v238 = vld [vmem:[%s236 + $0x4] sm:$0xf]
      %v274 = vunpack.c.l.b16 %v199
      %v275 = vunpack.c.l.b16 %v200
      %v276 = vunpack.c.l.b16 %v201
      %v277 = vunpack.c.l.b16 %v202
      %v278 = vunpack.c.l.b16 %v203
      %v279 = vunpack.c.l.b16 %v204
      %v280 = vunpack.c.l.b16 %v205
      %v281 = vunpack.c.l.b16 %v206
      %v282 = vunpack.c.l.b16 %v207
      %v283 = vunpack.c.l.b16 %v208
      %v284 = vunpack.c.l.b16 %v209
      %v285 = vunpack.c.l.b16 %v210
      %v286 = vunpack.c.l.b16 %v211
      %v287 = vunpack.c.l.b16 %v212
      %v288 = vunpack.c.l.b16 %v213
      %v289 = vunpack.c.l.b16 %v214
      %v290 = vunpack.c.l.b16 %v215
      %v291 = vunpack.c.l.b16 %v216
      %v292 = vunpack.c.l.b16 %v217
      %v293 = vunpack.c.l.b16 %v218
      %v294 = vunpack.c.l.b16 %v219
      %v295 = vunpack.c.l.b16 %v220
      %v296 = vunpack.c.l.b16 %v221
      %v297 = vunpack.c.l.b16 %v222
      %v298 = vunpack.c.l.b16 %v223
      %v299 = vunpack.c.l.b16 %v224
      %v300 = vunpack.c.l.b16 %v225
      %v301 = vunpack.c.l.b16 %v226
      %v302 = vunpack.c.l.b16 %v227
      %v303 = vunpack.c.l.b16 %v228
      %v304 = vunpack.c.l.b16 %v229
      %v305 = vunpack.c.l.b16 %v230
      %v306 = vunpack.c.l.b16 %v231
      %v307 = vunpack.c.l.b16 %v232
      %v308 = vunpack.c.l.b16 %v235
      %v309 = vpack.c.b16 %v275, %v274
      %v310 = vpack.c.b16 %v277, %v276
      %v311 = vpack.c.b16 %v279, %v278
      %v312 = vpack.c.b16 %v281, %v280
      %v313 = vpack.c.b16 %v283, %v282
      %v314 = vpack.c.b16 %v285, %v284
      %v315 = vpack.c.b16 %v287, %v286
      %v316 = vpack.c.b16 %v289, %v288
      %v317 = vpack.c.b16 %v291, %v290
      %v318 = vpack.c.b16 %v293, %v292
      %v319 = vpack.c.b16 %v295, %v294
      %v320 = vpack.c.b16 %v297, %v296
      %v321 = vpack.c.b16 %v299, %v298
      %v322 = vpack.c.b16 %v301, %v300
      %v323 = vpack.c.b16 %v303, %v302
      %v324 = vpack.c.b16 %v305, %v304
      %v325 = vpack.c.b16 %v307, %v306
      %v326 = vpack.c.b16 %v308, %v308
      %vm327 = vsmask.f32 7424
      %v329 = vshrl.u32 %v309, 16
      %v331 = vshll.u32 %v309, 16
      %v333 = vrot.slane %v331, 1
      %v334 = vor.u32 %v329, %v333
      %v336 = vshll.u32 %v310, 16
      %v338 = vrot.slane %v336, 1
      %v339 = vsel %vm327, %v334, %v338
      %v340 = vshrl.u32 %v310, 16
      %v342 = vor.u32 %v340, %v338
      %v344 = vshll.u32 %v311, 16
      %v346 = vrot.slane %v344, 1
      %v347 = vsel %vm327, %v342, %v346
      %v348 = vshrl.u32 %v311, 16
      %v350 = vor.u32 %v348, %v346
      %v352 = vshll.u32 %v312, 16
      %v354 = vrot.slane %v352, 1
      %v355 = vsel %vm327, %v350, %v354
      %v356 = vshrl.u32 %v312, 16
      %v358 = vor.u32 %v356, %v354
      %v360 = vshll.u32 %v313, 16
      %v362 = vrot.slane %v360, 1
      %v363 = vsel %vm327, %v358, %v362
      %v364 = vshrl.u32 %v313, 16
      %v366 = vor.u32 %v364, %v362
      %v368 = vshll.u32 %v314, 16
      %v370 = vrot.slane %v368, 1
      %v371 = vsel %vm327, %v366, %v370
      %v372 = vshrl.u32 %v314, 16
      %v374 = vor.u32 %v372, %v370
      %v376 = vshll.u32 %v315, 16
      %v378 = vrot.slane %v376, 1
      %v379 = vsel %vm327, %v374, %v378
      %v380 = vshrl.u32 %v315, 16
      %v382 = vor.u32 %v380, %v378
      %v384 = vshll.u32 %v316, 16
      %v386 = vrot.slane %v384, 1
      %v387 = vsel %vm327, %v382, %v386
      %v388 = vshrl.u32 %v316, 16
      %v390 = vor.u32 %v388, %v386
      %v392 = vshll.u32 %v317, 16
      %v394 = vrot.slane %v392, 1
      %v395 = vsel %vm327, %v390, %v394
      %v396 = vshrl.u32 %v317, 16
      %v398 = vor.u32 %v396, %v394
      %v400 = vshll.u32 %v318, 16
      %v402 = vrot.slane %v400, 1
      %v403 = vsel %vm327, %v398, %v402
      %v404 = vshrl.u32 %v318, 16
      %v406 = vor.u32 %v404, %v402
      %v408 = vshll.u32 %v319, 16
      %v410 = vrot.slane %v408, 1
      %v411 = vsel %vm327, %v406, %v410
      %v412 = vshrl.u32 %v319, 16
      %v414 = vor.u32 %v412, %v410
      %v416 = vshll.u32 %v320, 16
      %v418 = vrot.slane %v416, 1
      %v419 = vsel %vm327, %v414, %v418
      %v420 = vshrl.u32 %v320, 16
      %v422 = vor.u32 %v420, %v418
      %v424 = vshll.u32 %v321, 16
      %v426 = vrot.slane %v424, 1
      %v427 = vsel %vm327, %v422, %v426
      %v428 = vshrl.u32 %v321, 16
      %v430 = vor.u32 %v428, %v426
      %v432 = vshll.u32 %v322, 16
      %v434 = vrot.slane %v432, 1
      %v435 = vsel %vm327, %v430, %v434
      %v436 = vshrl.u32 %v322, 16
      %v438 = vor.u32 %v436, %v434
      %v440 = vshll.u32 %v323, 16
      %v442 = vrot.slane %v440, 1
      %v443 = vsel %vm327, %v438, %v442
      %v444 = vshrl.u32 %v323, 16
      %v446 = vor.u32 %v444, %v442
      %v448 = vshll.u32 %v324, 16
      %v450 = vrot.slane %v448, 1
      %v451 = vsel %vm327, %v446, %v450
      %v452 = vshrl.u32 %v324, 16
      %v454 = vor.u32 %v452, %v450
      %v456 = vshll.u32 %v325, 16
      %v458 = vrot.slane %v456, 1
      %v459 = vsel %vm327, %v454, %v458
      %v460 = vshrl.u32 %v325, 16
      %v462 = vor.u32 %v460, %v458
      %v464 = vshll.u32 %v326, 16
      %v466 = vrot.slane %v464, 1
      %v467 = vsel %vm327, %v462, %v466
      %v470 = vunpack.c.l.b16 %v237
      %v471 = vunpack.c.l.b16 %v238
      %v472 = vpack.c.b16 %v471, %v470
      %vm474 = vcmask 130048
      %v476 = vsel %vm474, %v339, 0
      %v479 = vsel %vm474, %v347, 0
      %v482 = vsel %vm474, %v355, 0
      %v485 = vsel %vm474, %v363, 0
      %v488 = vsel %vm474, %v371, 0
      %v491 = vsel %vm474, %v379, 0
      %v494 = vsel %vm474, %v387, 0
      %v497 = vsel %vm474, %v395, 0
      %v500 = vsel %vm474, %v403, 0
      %v503 = vsel %vm474, %v411, 0
      %v506 = vsel %vm474, %v419, 0
      %v509 = vsel %vm474, %v427, 0
      %v512 = vsel %vm474, %v435, 0
      %v515 = vsel %vm474, %v443, 0
      %v518 = vsel %vm474, %v451, 0
      %v521 = vsel %vm474, %v459, 0
      %v524 = vsel %vm474, %v467, 0
      %526 = vmatprep.subr.bf16.mxu0 0
      %527 = vmatpush1.bf16.msra.mxu0 0
      %528 = vmatprep.subr.bf16.mxu0 0
      %529 = vmatpush1.bf16.msra.mxu0 0
      %530 = vmatprep.subr.bf16.mxu0 0
      %531 = vmatpush1.bf16.msra.mxu0 0
      %532 = vmatprep.subr.bf16.mxu0 0
      %533 = vmatpush1.bf16.msra.mxu0 0
      %534 = vmatprep.subr.bf16.mxu0 0
      %535 = vmatpush1.bf16.msra.mxu0 0
      %536 = vmatprep.subr.bf16.mxu0 0
      %537 = vmatpush1.bf16.msra.mxu0 0
      %538 = vmatprep.subr.bf16.mxu0 0
      %539 = vmatpush1.bf16.msra.mxu0 0
      %540 = vmatprep.subr.bf16.mxu0 0
      %541 = vmatpush1.bf16.msra.mxu0 %v472
      %542 = vmatprep.subr.bf16.mxu0 0
      %543 = vmatpush2.bf16.msra.mxu0 0
      %544 = vmatprep.subr.bf16.mxu0 0
      %545 = vmatpush2.bf16.msra.mxu0 0
      %546 = vmatprep.subr.bf16.mxu0 0
      %547 = vmatpush2.bf16.msra.mxu0 0
      %548 = vmatprep.subr.bf16.mxu0 0
      %549 = vmatpush2.bf16.msra.mxu0 0
      %550 = vmatprep.subr.bf16.mxu0 0
      %551 = vmatpush2.bf16.msra.mxu0 0
      %552 = vmatprep.subr.bf16.mxu0 0
      %553 = vmatpush2.bf16.msra.mxu0 0
      %554 = vmatprep.subr.bf16.mxu0 0
      %555 = vmatpush2.bf16.msra.mxu0 0
      %556 = vmatprep.subr.bf16.mxu0 0
      %557 = vmatpush2.bf16.msra.mxu0 0
      %558 = vmatprep.mubr.bf16.mxu0 0
      %559 = vmatmul.mubr.bf16.gmra.mxu0 %v476
      %v560 = vpop.f32.mrf.mxu0
      %v561 = vadd.f32 0.0, %v560
      %v562 = vpop.f32.mrf.mxu0
      %v563 = vpop.f32.mrf.mxu0
      %v564 = vadd.f32 0.0, %v563
      %v565 = vpop.f32.mrf.mxu0
      %566 = vmatprep.mubr.bf16.mxu0 0
      %567 = vmatmul.mubr.bf16.gmra.mxu0 %v479
      %v568 = vpop.f32.mrf.mxu0
      %v569 = vadd.f32 0.0, %v568
      %v570 = vpop.f32.mrf.mxu0
      %v571 = vpop.f32.mrf.mxu0
      %v572 = vadd.f32 0.0, %v571
      %v573 = vpop.f32.mrf.mxu0
      %574 = vmatprep.mubr.bf16.mxu0 0
      %575 = vmatmul.mubr.bf16.gmra.mxu0 %v482
      %v576 = vpop.f32.mrf.mxu0
      %v577 = vadd.f32 0.0, %v576
      %v578 = vpop.f32.mrf.mxu0
      %v579 = vpop.f32.mrf.mxu0
      %v580 = vadd.f32 0.0, %v579
      %v581 = vpop.f32.mrf.mxu0
      %582 = vmatprep.mubr.bf16.mxu0 0
      %583 = vmatmul.mubr.bf16.gmra.mxu0 %v485
      %v584 = vpop.f32.mrf.mxu0
      %v585 = vadd.f32 0.0, %v584
      %v586 = vpop.f32.mrf.mxu0
      %v587 = vpop.f32.mrf.mxu0
      %v588 = vadd.f32 0.0, %v587
      %v589 = vpop.f32.mrf.mxu0
      %590 = vmatprep.mubr.bf16.mxu0 0
      %591 = vmatmul.mubr.bf16.gmra.mxu0 %v488
      %v592 = vpop.f32.mrf.mxu0
      %v593 = vadd.f32 0.0, %v592
      %v594 = vpop.f32.mrf.mxu0
      %v595 = vpop.f32.mrf.mxu0
      %v596 = vadd.f32 0.0, %v595
      %v597 = vpop.f32.mrf.mxu0
      %598 = vmatprep.mubr.bf16.mxu0 0
      %599 = vmatmul.mubr.bf16.gmra.mxu0 %v491
      %v600 = vpop.f32.mrf.mxu0
      %v601 = vadd.f32 0.0, %v600
      %v602 = vpop.f32.mrf.mxu0
      %v603 = vpop.f32.mrf.mxu0
      %v604 = vadd.f32 0.0, %v603
      %v605 = vpop.f32.mrf.mxu0
      %606 = vmatprep.mubr.bf16.mxu0 0
      %607 = vmatmul.mubr.bf16.gmra.mxu0 %v494
      %v608 = vpop.f32.mrf.mxu0
      %v609 = vadd.f32 0.0, %v608
      %v610 = vpop.f32.mrf.mxu0
      %v611 = vpop.f32.mrf.mxu0
      %v612 = vadd.f32 0.0, %v611
      %v613 = vpop.f32.mrf.mxu0
      %614 = vmatprep.mubr.bf16.mxu0 0
      %615 = vmatmul.mubr.bf16.gmra.mxu0 %v497
      %v616 = vpop.f32.mrf.mxu0
      %v617 = vadd.f32 0.0, %v616
      %v618 = vpop.f32.mrf.mxu0
      %v619 = vpop.f32.mrf.mxu0
      %v620 = vadd.f32 0.0, %v619
      %v621 = vpop.f32.mrf.mxu0
      %622 = vmatprep.mubr.bf16.mxu0 0
      %623 = vmatmul.mubr.bf16.gmra.mxu0 %v500
      %v624 = vpop.f32.mrf.mxu0
      %v625 = vadd.f32 0.0, %v624
      %v626 = vpop.f32.mrf.mxu0
      %v627 = vpop.f32.mrf.mxu0
      %v628 = vadd.f32 0.0, %v627
      %v629 = vpop.f32.mrf.mxu0
      %630 = vmatprep.mubr.bf16.mxu0 0
      %631 = vmatmul.mubr.bf16.gmra.mxu0 %v503
      %v632 = vpop.f32.mrf.mxu0
      %v633 = vadd.f32 0.0, %v632
      %v634 = vpop.f32.mrf.mxu0
      %v635 = vpop.f32.mrf.mxu0
      %v636 = vadd.f32 0.0, %v635
      %v637 = vpop.f32.mrf.mxu0
      %638 = vmatprep.mubr.bf16.mxu0 0
      %639 = vmatmul.mubr.bf16.gmra.mxu0 %v506
      %v640 = vpop.f32.mrf.mxu0
      %v641 = vadd.f32 0.0, %v640
      %v642 = vpop.f32.mrf.mxu0
      %v643 = vpop.f32.mrf.mxu0
      %v644 = vadd.f32 0.0, %v643
      %v645 = vpop.f32.mrf.mxu0
      %646 = vmatprep.mubr.bf16.mxu0 0
      %647 = vmatmul.mubr.bf16.gmra.mxu0 %v509
      %v648 = vpop.f32.mrf.mxu0
      %v649 = vadd.f32 0.0, %v648
      %v650 = vpop.f32.mrf.mxu0
      %v651 = vpop.f32.mrf.mxu0
      %v652 = vadd.f32 0.0, %v651
      %v653 = vpop.f32.mrf.mxu0
      %654 = vmatprep.mubr.bf16.mxu0 0
      %655 = vmatmul.mubr.bf16.gmra.mxu0 %v512
      %v656 = vpop.f32.mrf.mxu0
      %v657 = vadd.f32 0.0, %v656
      %v658 = vpop.f32.mrf.mxu0
      %v659 = vpop.f32.mrf.mxu0
      %v660 = vadd.f32 0.0, %v659
      %v661 = vpop.f32.mrf.mxu0
      %662 = vmatprep.mubr.bf16.mxu0 0
      %663 = vmatmul.mubr.bf16.gmra.mxu0 %v515
      %v664 = vpop.f32.mrf.mxu0
      %v665 = vadd.f32 0.0, %v664
      %v666 = vpop.f32.mrf.mxu0
      %v667 = vpop.f32.mrf.mxu0
      %v668 = vadd.f32 0.0, %v667
      %v669 = vpop.f32.mrf.mxu0
      %670 = vmatprep.mubr.bf16.mxu0 0
      %671 = vmatmul.mubr.bf16.gmra.mxu0 %v518
      %v672 = vpop.f32.mrf.mxu0
      %v673 = vadd.f32 0.0, %v672
      %v674 = vpop.f32.mrf.mxu0
      %v675 = vpop.f32.mrf.mxu0
      %v676 = vadd.f32 0.0, %v675
      %v677 = vpop.f32.mrf.mxu0
      %678 = vmatprep.mubr.bf16.mxu0 0
      %679 = vmatmul.mubr.bf16.gmra.mxu0 %v521
      %v680 = vpop.f32.mrf.mxu0
      %v681 = vadd.f32 0.0, %v680
      %v682 = vpop.f32.mrf.mxu0
      %v683 = vpop.f32.mrf.mxu0
      %v684 = vadd.f32 0.0, %v683
      %v685 = vpop.f32.mrf.mxu0
      %686 = vmatprep.mubr.bf16.mxu0 0
      %687 = vmatmul.mubr.bf16.gmra.mxu0 %v524
      %v688 = vpop.f32.mrf.mxu0
      %v689 = vadd.f32 0.0, %v688
      %v690 = vpop.f32.mrf.mxu0
      %v691 = vpop.f32.mrf.mxu0
      %v692 = vadd.f32 0.0, %v691
      %v693 = vpop.f32.mrf.mxu0
      %694 = vdwg.mxu0
      %v697 = vunpack.c.l.b16 %v233
      %v698 = vunpack.c.l.b16 %v234
      %v699 = vpack.c.b16 %v698, %v697
      %v701 = vsel %vm474, %v309, 0
      %v703 = vsel %vm474, %v310, 0
      %v705 = vsel %vm474, %v311, 0
      %v707 = vsel %vm474, %v312, 0
      %v709 = vsel %vm474, %v313, 0
      %v711 = vsel %vm474, %v314, 0
      %v713 = vsel %vm474, %v315, 0
      %v715 = vsel %vm474, %v316, 0
      %v717 = vsel %vm474, %v317, 0
      %v719 = vsel %vm474, %v318, 0
      %v721 = vsel %vm474, %v319, 0
      %v723 = vsel %vm474, %v320, 0
      %v725 = vsel %vm474, %v321, 0
      %v727 = vsel %vm474, %v322, 0
      %v729 = vsel %vm474, %v323, 0
      %v731 = vsel %vm474, %v324, 0
      %v733 = vsel %vm474, %v325, 0
      %735 = vmatprep.subr.bf16.mxu0 0
      %736 = vmatpush1.bf16.msra.mxu0 0
      %737 = vmatprep.subr.bf16.mxu0 0
      %738 = vmatpush1.bf16.msra.mxu0 0
      %739 = vmatprep.subr.bf16.mxu0 0
      %740 = vmatpush1.bf16.msra.mxu0 0
      %741 = vmatprep.subr.bf16.mxu0 0
      %742 = vmatpush1.bf16.msra.mxu0 0
      %743 = vmatprep.subr.bf16.mxu0 0
      %744 = vmatpush1.bf16.msra.mxu0 0
      %745 = vmatprep.subr.bf16.mxu0 0
      %746 = vmatpush1.bf16.msra.mxu0 0
      %747 = vmatprep.subr.bf16.mxu0 0
      %748 = vmatpush1.bf16.msra.mxu0 0
      %749 = vmatprep.subr.bf16.mxu0 0
      %750 = vmatpush1.bf16.msra.mxu0 %v699
      %751 = vmatprep.subr.bf16.mxu0 0
      %752 = vmatpush2.bf16.msra.mxu0 0
      %753 = vmatprep.subr.bf16.mxu0 0
      %754 = vmatpush2.bf16.msra.mxu0 0
      %755 = vmatprep.subr.bf16.mxu0 0
      %756 = vmatpush2.bf16.msra.mxu0 0
      %757 = vmatprep.subr.bf16.mxu0 0
      %758 = vmatpush2.bf16.msra.mxu0 0
      %759 = vmatprep.subr.bf16.mxu0 0
      %760 = vmatpush2.bf16.msra.mxu0 0
      %761 = vmatprep.subr.bf16.mxu0 0
      %762 = vmatpush2.bf16.msra.mxu0 0
      %763 = vmatprep.subr.bf16.mxu0 0
      %764 = vmatpush2.bf16.msra.mxu0 0
      %765 = vmatprep.subr.bf16.mxu0 0
      %766 = vmatpush2.bf16.msra.mxu0 0
      %767 = vmatprep.mubr.bf16.mxu0 0
      %768 = vmatmul.mubr.bf16.gmra.mxu0 %v701
      %v769 = vpop.f32.mrf.mxu0
      %v770 = vadd.f32 %v561, %v769
      %v771 = vpop.f32.mrf.mxu0
      %v772 = vpop.f32.mrf.mxu0
      %v773 = vadd.f32 %v564, %v772
      %v774 = vpop.f32.mrf.mxu0
      %775 = vmatprep.mubr.bf16.mxu0 0
      %776 = vmatmul.mubr.bf16.gmra.mxu0 %v703
      %v777 = vpop.f32.mrf.mxu0
      %v778 = vadd.f32 %v569, %v777
      %v779 = vpop.f32.mrf.mxu0
      %v780 = vpop.f32.mrf.mxu0
      %v781 = vadd.f32 %v572, %v780
      %v782 = vpop.f32.mrf.mxu0
      %783 = vmatprep.mubr.bf16.mxu0 0
      %784 = vmatmul.mubr.bf16.gmra.mxu0 %v705
      %v785 = vpop.f32.mrf.mxu0
      %v786 = vadd.f32 %v577, %v785
      %v787 = vpop.f32.mrf.mxu0
      %v788 = vpop.f32.mrf.mxu0
      %v789 = vadd.f32 %v580, %v788
      %v790 = vpop.f32.mrf.mxu0
      %791 = vmatprep.mubr.bf16.mxu0 0
      %792 = vmatmul.mubr.bf16.gmra.mxu0 %v707
      %v793 = vpop.f32.mrf.mxu0
      %v794 = vadd.f32 %v585, %v793
      %v795 = vpop.f32.mrf.mxu0
      %v796 = vpop.f32.mrf.mxu0
      %v797 = vadd.f32 %v588, %v796
      %v798 = vpop.f32.mrf.mxu0
      %799 = vmatprep.mubr.bf16.mxu0 0
      %800 = vmatmul.mubr.bf16.gmra.mxu0 %v709
      %v801 = vpop.f32.mrf.mxu0
      %v802 = vadd.f32 %v593, %v801
      %v803 = vpop.f32.mrf.mxu0
      %v804 = vpop.f32.mrf.mxu0
      %v805 = vadd.f32 %v596, %v804
      %v806 = vpop.f32.mrf.mxu0
      %807 = vmatprep.mubr.bf16.mxu0 0
      %808 = vmatmul.mubr.bf16.gmra.mxu0 %v711
      %v809 = vpop.f32.mrf.mxu0
      %v810 = vadd.f32 %v601, %v809
      %v811 = vpop.f32.mrf.mxu0
      %v812 = vpop.f32.mrf.mxu0
      %v813 = vadd.f32 %v604, %v812
      %v814 = vpop.f32.mrf.mxu0
      %815 = vmatprep.mubr.bf16.mxu0 0
      %816 = vmatmul.mubr.bf16.gmra.mxu0 %v713
      %v817 = vpop.f32.mrf.mxu0
      %v818 = vadd.f32 %v609, %v817
      %v819 = vpop.f32.mrf.mxu0
      %v820 = vpop.f32.mrf.mxu0
      %v821 = vadd.f32 %v612, %v820
      %v822 = vpop.f32.mrf.mxu0
      %823 = vmatprep.mubr.bf16.mxu0 0
      %824 = vmatmul.mubr.bf16.gmra.mxu0 %v715
      %v825 = vpop.f32.mrf.mxu0
      %v826 = vadd.f32 %v617, %v825
      %v827 = vpop.f32.mrf.mxu0
      %v828 = vpop.f32.mrf.mxu0
      %v829 = vadd.f32 %v620, %v828
      %v830 = vpop.f32.mrf.mxu0
      %831 = vmatprep.mubr.bf16.mxu0 0
      %832 = vmatmul.mubr.bf16.gmra.mxu0 %v717
      %v833 = vpop.f32.mrf.mxu0
      %v834 = vadd.f32 %v625, %v833
      %v835 = vpop.f32.mrf.mxu0
      %v836 = vpop.f32.mrf.mxu0
      %v837 = vadd.f32 %v628, %v836
      %v838 = vpop.f32.mrf.mxu0
      %839 = vmatprep.mubr.bf16.mxu0 0
      %840 = vmatmul.mubr.bf16.gmra.mxu0 %v719
      %v841 = vpop.f32.mrf.mxu0
      %v842 = vadd.f32 %v633, %v841
      %v843 = vpop.f32.mrf.mxu0
      %v844 = vpop.f32.mrf.mxu0
      %v845 = vadd.f32 %v636, %v844
      %v846 = vpop.f32.mrf.mxu0
      %847 = vmatprep.mubr.bf16.mxu0 0
      %848 = vmatmul.mubr.bf16.gmra.mxu0 %v721
      %v849 = vpop.f32.mrf.mxu0
      %v850 = vadd.f32 %v641, %v849
      %v851 = vpop.f32.mrf.mxu0
      %v852 = vpop.f32.mrf.mxu0
      %v853 = vadd.f32 %v644, %v852
      %v854 = vpop.f32.mrf.mxu0
      %855 = vmatprep.mubr.bf16.mxu0 0
      %856 = vmatmul.mubr.bf16.gmra.mxu0 %v723
      %v857 = vpop.f32.mrf.mxu0
      %v858 = vadd.f32 %v649, %v857
      %v859 = vpop.f32.mrf.mxu0
      %v860 = vpop.f32.mrf.mxu0
      %v861 = vadd.f32 %v652, %v860
      %v862 = vpop.f32.mrf.mxu0
      %863 = vmatprep.mubr.bf16.mxu0 0
      %864 = vmatmul.mubr.bf16.gmra.mxu0 %v725
      %v865 = vpop.f32.mrf.mxu0
      %v866 = vadd.f32 %v657, %v865
      %v867 = vpop.f32.mrf.mxu0
      %v868 = vpop.f32.mrf.mxu0
      %v869 = vadd.f32 %v660, %v868
      %v870 = vpop.f32.mrf.mxu0
      %871 = vmatprep.mubr.bf16.mxu0 0
      %872 = vmatmul.mubr.bf16.gmra.mxu0 %v727
      %v873 = vpop.f32.mrf.mxu0
      %v874 = vadd.f32 %v665, %v873
      %v875 = vpop.f32.mrf.mxu0
      %v876 = vpop.f32.mrf.mxu0
      %v877 = vadd.f32 %v668, %v876
      %v878 = vpop.f32.mrf.mxu0
      %879 = vmatprep.mubr.bf16.mxu0 0
      %880 = vmatmul.mubr.bf16.gmra.mxu0 %v729
      %v881 = vpop.f32.mrf.mxu0
      %v882 = vadd.f32 %v673, %v881
      %v883 = vpop.f32.mrf.mxu0
      %v884 = vpop.f32.mrf.mxu0
      %v885 = vadd.f32 %v676, %v884
      %v886 = vpop.f32.mrf.mxu0
      %887 = vmatprep.mubr.bf16.mxu0 0
      %888 = vmatmul.mubr.bf16.gmra.mxu0 %v731
      %v889 = vpop.f32.mrf.mxu0
      %v890 = vadd.f32 %v681, %v889
      %v891 = vpop.f32.mrf.mxu0
      %v892 = vpop.f32.mrf.mxu0
      %v893 = vadd.f32 %v684, %v892
      %v894 = vpop.f32.mrf.mxu0
      %895 = vmatprep.mubr.bf16.mxu0 0
      %896 = vmatmul.mubr.bf16.gmra.mxu0 %v733
      %v897 = vpop.f32.mrf.mxu0
      %v898 = vadd.f32 %v689, %v897
      %v899 = vpop.f32.mrf.mxu0
      %v900 = vpop.f32.mrf.mxu0
      %v901 = vadd.f32 %v692, %v900
      %v902 = vpop.f32.mrf.mxu0
      %903 = vdwg.mxu0
      %v904 = vld [vmem:[%s192 + $0x8] sm:$0xf]
      %v905 = vld [vmem:[%s192 + $0xc] sm:$0xf]
      %v906 = vld [vmem:[%s192 + $0x10] sm:$0xf]
      %v907 = vld [vmem:[%s192 + $0x14] sm:$0xf]
      %v908 = vld [vmem:[%s192 + $0x18] sm:$0xf]
      %v909 = vld [vmem:[%s192 + $0x1c] sm:$0xf]
      %v910 = vld [vmem:[%s192 + $0x20] sm:$0xf]
      %v911 = vld [vmem:[%s192 + $0x24] sm:$0xf]
      %v912 = vld [vmem:[%s192 + $0x28] sm:$0xf]
      %v913 = vld [vmem:[%s192 + $0x2c] sm:$0xf]
      %v914 = vld [vmem:[%s192 + $0x30] sm:$0xf]
      %v915 = vld [vmem:[%s192 + $0x34] sm:$0xf]
      %v916 = vld [vmem:[%s192 + $0x38] sm:$0xf]
      %v917 = vld [vmem:[%s192 + $0x3c] sm:$0xf]
      %v918 = vld [vmem:[%s192 + $0x40] sm:$0xf]
      %v919 = vld [vmem:[%s192 + $0x44] sm:$0xf]
      %v920 = vld [vmem:[%s192 + $0x48] sm:$0xf]
      %v921 = vld [vmem:[%s192 + $0x4c] sm:$0xf]
      %v922 = vld [vmem:[%s192 + $0x50] sm:$0xf]
      %v923 = vld [vmem:[%s192 + $0x54] sm:$0xf]
      %v924 = vld [vmem:[%s192 + $0x58] sm:$0xf]
      %v925 = vld [vmem:[%s192 + $0x5c] sm:$0xf]
      %v926 = vld [vmem:[%s192 + $0x60] sm:$0xf]
      %v927 = vld [vmem:[%s192 + $0x64] sm:$0xf]
      %v928 = vld [vmem:[%s192 + $0x68] sm:$0xf]
      %v929 = vld [vmem:[%s192 + $0x6c] sm:$0xf]
      %v930 = vld [vmem:[%s192 + $0x70] sm:$0xf]
      %v931 = vld [vmem:[%s192 + $0x74] sm:$0xf]
      %v932 = vld [vmem:[%s192 + $0x78] sm:$0xf]
      %v933 = vld [vmem:[%s192 + $0x7c] sm:$0xf]
      %v934 = vld [vmem:[%s192 + $0x80] sm:$0xf]
      %v935 = vld [vmem:[%s192 + $0x84] sm:$0xf]
      %v936 = vld [vmem:[%s192 + $0x88] sm:$0xf]
      %v937 = vld [vmem:[%s192 + $0x8c] sm:$0xf]
      %v938 = vld [vmem:[%s192 + $0x90] sm:$0x1]
      %s939 = scalar_lea.vmem %s1, 16
      %v940 = vld [vmem:[%s939] sm:$0xf]
      %v941 = vld [vmem:[%s939 + $0x4] sm:$0xf]
      %v977 = vunpack.c.l.b16 %v904
      %v978 = vunpack.c.l.b16 %v905
      %v979 = vunpack.c.l.b16 %v906
      %v980 = vunpack.c.l.b16 %v907
      %v981 = vunpack.c.l.b16 %v908
      %v982 = vunpack.c.l.b16 %v909
      %v983 = vunpack.c.l.b16 %v910
      %v984 = vunpack.c.l.b16 %v911
      %v985 = vunpack.c.l.b16 %v912
      %v986 = vunpack.c.l.b16 %v913
      %v987 = vunpack.c.l.b16 %v914
      %v988 = vunpack.c.l.b16 %v915
      %v989 = vunpack.c.l.b16 %v916
      %v990 = vunpack.c.l.b16 %v917
      %v991 = vunpack.c.l.b16 %v918
      %v992 = vunpack.c.l.b16 %v919
      %v993 = vunpack.c.l.b16 %v920
      %v994 = vunpack.c.l.b16 %v921
      %v995 = vunpack.c.l.b16 %v922
      %v996 = vunpack.c.l.b16 %v923
      %v997 = vunpack.c.l.b16 %v924
      %v998 = vunpack.c.l.b16 %v925
      %v999 = vunpack.c.l.b16 %v926
      %v1000 = vunpack.c.l.b16 %v927
      %v1001 = vunpack.c.l.b16 %v928
      %v1002 = vunpack.c.l.b16 %v929
      %v1003 = vunpack.c.l.b16 %v930
      %v1004 = vunpack.c.l.b16 %v931
      %v1005 = vunpack.c.l.b16 %v932
      %v1006 = vunpack.c.l.b16 %v933
      %v1007 = vunpack.c.l.b16 %v934
      %v1008 = vunpack.c.l.b16 %v935
      %v1009 = vunpack.c.l.b16 %v936
      %v1010 = vunpack.c.l.b16 %v937
      %v1011 = vunpack.c.l.b16 %v938
      %v1012 = vpack.c.b16 %v978, %v977
      %v1013 = vpack.c.b16 %v980, %v979
      %v1014 = vpack.c.b16 %v982, %v981
      %v1015 = vpack.c.b16 %v984, %v983
      %v1016 = vpack.c.b16 %v986, %v985
      %v1017 = vpack.c.b16 %v988, %v987
      %v1018 = vpack.c.b16 %v990, %v989
      %v1019 = vpack.c.b16 %v992, %v991
      %v1020 = vpack.c.b16 %v994, %v993
      %v1021 = vpack.c.b16 %v996, %v995
      %v1022 = vpack.c.b16 %v998, %v997
      %v1023 = vpack.c.b16 %v1000, %v999
      %v1024 = vpack.c.b16 %v1002, %v1001
      %v1025 = vpack.c.b16 %v1004, %v1003
      %v1026 = vpack.c.b16 %v1006, %v1005
      %v1027 = vpack.c.b16 %v1008, %v1007
      %v1028 = vpack.c.b16 %v1010, %v1009
      %v1029 = vpack.c.b16 %v1011, %v1011
      %v1031 = vshrl.u32 %v1012, 16
      %v1033 = vshll.u32 %v1012, 16
      %v1035 = vrot.slane %v1033, 1
      %v1036 = vor.u32 %v1031, %v1035
      %v1038 = vshll.u32 %v1013, 16
      %v1040 = vrot.slane %v1038, 1
      %v1041 = vsel %vm327, %v1036, %v1040
      %v1042 = vshrl.u32 %v1013, 16
      %v1044 = vor.u32 %v1042, %v1040
      %v1046 = vshll.u32 %v1014, 16
      %v1048 = vrot.slane %v1046, 1
      %v1049 = vsel %vm327, %v1044, %v1048
      %v1050 = vshrl.u32 %v1014, 16
      %v1052 = vor.u32 %v1050, %v1048
      %v1054 = vshll.u32 %v1015, 16
      %v1056 = vrot.slane %v1054, 1
      %v1057 = vsel %vm327, %v1052, %v1056
      %v1058 = vshrl.u32 %v1015, 16
      %v1060 = vor.u32 %v1058, %v1056
      %v1062 = vshll.u32 %v1016, 16
      %v1064 = vrot.slane %v1062, 1
      %v1065 = vsel %vm327, %v1060, %v1064
      %v1066 = vshrl.u32 %v1016, 16
      %v1068 = vor.u32 %v1066, %v1064
      %v1070 = vshll.u32 %v1017, 16
      %v1072 = vrot.slane %v1070, 1
      %v1073 = vsel %vm327, %v1068, %v1072
      %v1074 = vshrl.u32 %v1017, 16
      %v1076 = vor.u32 %v1074, %v1072
      %v1078 = vshll.u32 %v1018, 16
      %v1080 = vrot.slane %v1078, 1
      %v1081 = vsel %vm327, %v1076, %v1080
      %v1082 = vshrl.u32 %v1018, 16
      %v1084 = vor.u32 %v1082, %v1080
      %v1086 = vshll.u32 %v1019, 16
      %v1088 = vrot.slane %v1086, 1
      %v1089 = vsel %vm327, %v1084, %v1088
      %v1090 = vshrl.u32 %v1019, 16
      %v1092 = vor.u32 %v1090, %v1088
      %v1094 = vshll.u32 %v1020, 16
      %v1096 = vrot.slane %v1094, 1
      %v1097 = vsel %vm327, %v1092, %v1096
      %v1098 = vshrl.u32 %v1020, 16
      %v1100 = vor.u32 %v1098, %v1096
      %v1102 = vshll.u32 %v1021, 16
      %v1104 = vrot.slane %v1102, 1
      %v1105 = vsel %vm327, %v1100, %v1104
      %v1106 = vshrl.u32 %v1021, 16
      %v1108 = vor.u32 %v1106, %v1104
      %v1110 = vshll.u32 %v1022, 16
      %v1112 = vrot.slane %v1110, 1
      %v1113 = vsel %vm327, %v1108, %v1112
      %v1114 = vshrl.u32 %v1022, 16
      %v1116 = vor.u32 %v1114, %v1112
      %v1118 = vshll.u32 %v1023, 16
      %v1120 = vrot.slane %v1118, 1
      %v1121 = vsel %vm327, %v1116, %v1120
      %v1122 = vshrl.u32 %v1023, 16
      %v1124 = vor.u32 %v1122, %v1120
      %v1126 = vshll.u32 %v1024, 16
      %v1128 = vrot.slane %v1126, 1
      %v1129 = vsel %vm327, %v1124, %v1128
      %v1130 = vshrl.u32 %v1024, 16
      %v1132 = vor.u32 %v1130, %v1128
      %v1134 = vshll.u32 %v1025, 16
      %v1136 = vrot.slane %v1134, 1
      %v1137 = vsel %vm327, %v1132, %v1136
      %v1138 = vshrl.u32 %v1025, 16
      %v1140 = vor.u32 %v1138, %v1136
      %v1142 = vshll.u32 %v1026, 16
      %v1144 = vrot.slane %v1142, 1
      %v1145 = vsel %vm327, %v1140, %v1144
      %v1146 = vshrl.u32 %v1026, 16
      %v1148 = vor.u32 %v1146, %v1144
      %v1150 = vshll.u32 %v1027, 16
      %v1152 = vrot.slane %v1150, 1
      %v1153 = vsel %vm327, %v1148, %v1152
      %v1154 = vshrl.u32 %v1027, 16
      %v1156 = vor.u32 %v1154, %v1152
      %v1158 = vshll.u32 %v1028, 16
      %v1160 = vrot.slane %v1158, 1
      %v1161 = vsel %vm327, %v1156, %v1160
      %v1162 = vshrl.u32 %v1028, 16
      %v1164 = vor.u32 %v1162, %v1160
      %v1166 = vshll.u32 %v1029, 16
      %v1168 = vrot.slane %v1166, 1
      %v1169 = vsel %vm327, %v1164, %v1168
      %v1172 = vunpack.c.l.b16 %v940
      %v1173 = vunpack.c.l.b16 %v941
      %v1174 = vpack.c.b16 %v1173, %v1172
      %v1177 = vsel %vm474, %v1041, 0
      %v1180 = vsel %vm474, %v1049, 0
      %v1183 = vsel %vm474, %v1057, 0
      %v1186 = vsel %vm474, %v1065, 0
      %v1189 = vsel %vm474, %v1073, 0
      %v1192 = vsel %vm474, %v1081, 0
      %v1195 = vsel %vm474, %v1089, 0
      %v1198 = vsel %vm474, %v1097, 0
      %v1201 = vsel %vm474, %v1105, 0
      %v1204 = vsel %vm474, %v1113, 0
      %v1207 = vsel %vm474, %v1121, 0
      %v1210 = vsel %vm474, %v1129, 0
      %v1213 = vsel %vm474, %v1137, 0
      %v1216 = vsel %vm474, %v1145, 0
      %v1219 = vsel %vm474, %v1153, 0
      %v1222 = vsel %vm474, %v1161, 0
      %v1225 = vsel %vm474, %v1169, 0
      %1227 = vmatprep.subr.bf16.mxu0 0
      %1228 = vmatpush1.bf16.msra.mxu0 0
      %1229 = vmatprep.subr.bf16.mxu0 0
      %1230 = vmatpush1.bf16.msra.mxu0 0
      %1231 = vmatprep.subr.bf16.mxu0 0
      %1232 = vmatpush1.bf16.msra.mxu0 0
      %1233 = vmatprep.subr.bf16.mxu0 0
      %1234 = vmatpush1.bf16.msra.mxu0 0
      %1235 = vmatprep.subr.bf16.mxu0 0
      %1236 = vmatpush1.bf16.msra.mxu0 0
      %1237 = vmatprep.subr.bf16.mxu0 0
      %1238 = vmatpush1.bf16.msra.mxu0 0
      %1239 = vmatprep.subr.bf16.mxu0 0
      %1240 = vmatpush1.bf16.msra.mxu0 0
      %1241 = vmatprep.subr.bf16.mxu0 0
      %1242 = vmatpush1.bf16.msra.mxu0 %v1174
      %1243 = vmatprep.subr.bf16.mxu0 0
      %1244 = vmatpush2.bf16.msra.mxu0 0
      %1245 = vmatprep.subr.bf16.mxu0 0
      %1246 = vmatpush2.bf16.msra.mxu0 0
      %1247 = vmatprep.subr.bf16.mxu0 0
      %1248 = vmatpush2.bf16.msra.mxu0 0
      %1249 = vmatprep.subr.bf16.mxu0 0
      %1250 = vmatpush2.bf16.msra.mxu0 0
      %1251 = vmatprep.subr.bf16.mxu0 0
      %1252 = vmatpush2.bf16.msra.mxu0 0
      %1253 = vmatprep.subr.bf16.mxu0 0
      %1254 = vmatpush2.bf16.msra.mxu0 0
      %1255 = vmatprep.subr.bf16.mxu0 0
      %1256 = vmatpush2.bf16.msra.mxu0 0
      %1257 = vmatprep.subr.bf16.mxu0 0
      %1258 = vmatpush2.bf16.msra.mxu0 0
      %1259 = vmatprep.mubr.bf16.mxu0 0
      %1260 = vmatmul.mubr.bf16.gmra.mxu0 %v1177
      %v1261 = vpop.f32.mrf.mxu0
      %v1262 = vadd.f32 0.0, %v1261
      %v1263 = vpop.f32.mrf.mxu0
      %v1264 = vpop.f32.mrf.mxu0
      %v1265 = vadd.f32 0.0, %v1264
      %v1266 = vpop.f32.mrf.mxu0
      %1267 = vmatprep.mubr.bf16.mxu0 0
      %1268 = vmatmul.mubr.bf16.gmra.mxu0 %v1180
      %v1269 = vpop.f32.mrf.mxu0
      %v1270 = vadd.f32 0.0, %v1269
      %v1271 = vpop.f32.mrf.mxu0
      %v1272 = vpop.f32.mrf.mxu0
      %v1273 = vadd.f32 0.0, %v1272
      %v1274 = vpop.f32.mrf.mxu0
      %1275 = vmatprep.mubr.bf16.mxu0 0
      %1276 = vmatmul.mubr.bf16.gmra.mxu0 %v1183
      %v1277 = vpop.f32.mrf.mxu0
      %v1278 = vadd.f32 0.0, %v1277
      %v1279 = vpop.f32.mrf.mxu0
      %v1280 = vpop.f32.mrf.mxu0
      %v1281 = vadd.f32 0.0, %v1280
      %v1282 = vpop.f32.mrf.mxu0
      %1283 = vmatprep.mubr.bf16.mxu0 0
      %1284 = vmatmul.mubr.bf16.gmra.mxu0 %v1186
      %v1285 = vpop.f32.mrf.mxu0
      %v1286 = vadd.f32 0.0, %v1285
      %v1287 = vpop.f32.mrf.mxu0
      %v1288 = vpop.f32.mrf.mxu0
      %v1289 = vadd.f32 0.0, %v1288
      %v1290 = vpop.f32.mrf.mxu0
      %1291 = vmatprep.mubr.bf16.mxu0 0
      %1292 = vmatmul.mubr.bf16.gmra.mxu0 %v1189
      %v1293 = vpop.f32.mrf.mxu0
      %v1294 = vadd.f32 0.0, %v1293
      %v1295 = vpop.f32.mrf.mxu0
      %v1296 = vpop.f32.mrf.mxu0
      %v1297 = vadd.f32 0.0, %v1296
      %v1298 = vpop.f32.mrf.mxu0
      %1299 = vmatprep.mubr.bf16.mxu0 0
      %1300 = vmatmul.mubr.bf16.gmra.mxu0 %v1192
      %v1301 = vpop.f32.mrf.mxu0
      %v1302 = vadd.f32 0.0, %v1301
      %v1303 = vpop.f32.mrf.mxu0
      %v1304 = vpop.f32.mrf.mxu0
      %v1305 = vadd.f32 0.0, %v1304
      %v1306 = vpop.f32.mrf.mxu0
      %1307 = vmatprep.mubr.bf16.mxu0 0
      %1308 = vmatmul.mubr.bf16.gmra.mxu0 %v1195
      %v1309 = vpop.f32.mrf.mxu0
      %v1310 = vadd.f32 0.0, %v1309
      %v1311 = vpop.f32.mrf.mxu0
      %v1312 = vpop.f32.mrf.mxu0
      %v1313 = vadd.f32 0.0, %v1312
      %v1314 = vpop.f32.mrf.mxu0
      %1315 = vmatprep.mubr.bf16.mxu0 0
      %1316 = vmatmul.mubr.bf16.gmra.mxu0 %v1198
      %v1317 = vpop.f32.mrf.mxu0
      %v1318 = vadd.f32 0.0, %v1317
      %v1319 = vpop.f32.mrf.mxu0
      %v1320 = vpop.f32.mrf.mxu0
      %v1321 = vadd.f32 0.0, %v1320
      %v1322 = vpop.f32.mrf.mxu0
      %1323 = vmatprep.mubr.bf16.mxu0 0
      %1324 = vmatmul.mubr.bf16.gmra.mxu0 %v1201
      %v1325 = vpop.f32.mrf.mxu0
      %v1326 = vadd.f32 0.0, %v1325
      %v1327 = vpop.f32.mrf.mxu0
      %v1328 = vpop.f32.mrf.mxu0
      %v1329 = vadd.f32 0.0, %v1328
      %v1330 = vpop.f32.mrf.mxu0
      %1331 = vmatprep.mubr.bf16.mxu0 0
      %1332 = vmatmul.mubr.bf16.gmra.mxu0 %v1204
      %v1333 = vpop.f32.mrf.mxu0
      %v1334 = vadd.f32 0.0, %v1333
      %v1335 = vpop.f32.mrf.mxu0
      %v1336 = vpop.f32.mrf.mxu0
      %v1337 = vadd.f32 0.0, %v1336
      %v1338 = vpop.f32.mrf.mxu0
      %1339 = vmatprep.mubr.bf16.mxu0 0
      %1340 = vmatmul.mubr.bf16.gmra.mxu0 %v1207
      %v1341 = vpop.f32.mrf.mxu0
      %v1342 = vadd.f32 0.0, %v1341
      %v1343 = vpop.f32.mrf.mxu0
      %v1344 = vpop.f32.mrf.mxu0
      %v1345 = vadd.f32 0.0, %v1344
      %v1346 = vpop.f32.mrf.mxu0
      %1347 = vmatprep.mubr.bf16.mxu0 0
      %1348 = vmatmul.mubr.bf16.gmra.mxu0 %v1210
      %v1349 = vpop.f32.mrf.mxu0
      %v1350 = vadd.f32 0.0, %v1349
      %v1351 = vpop.f32.mrf.mxu0
      %v1352 = vpop.f32.mrf.mxu0
      %v1353 = vadd.f32 0.0, %v1352
      %v1354 = vpop.f32.mrf.mxu0
      %1355 = vmatprep.mubr.bf16.mxu0 0
      %1356 = vmatmul.mubr.bf16.gmra.mxu0 %v1213
      %v1357 = vpop.f32.mrf.mxu0
      %v1358 = vadd.f32 0.0, %v1357
      %v1359 = vpop.f32.mrf.mxu0
      %v1360 = vpop.f32.mrf.mxu0
      %v1361 = vadd.f32 0.0, %v1360
      %v1362 = vpop.f32.mrf.mxu0
      %1363 = vmatprep.mubr.bf16.mxu0 0
      %1364 = vmatmul.mubr.bf16.gmra.mxu0 %v1216
      %v1365 = vpop.f32.mrf.mxu0
      %v1366 = vadd.f32 0.0, %v1365
      %v1367 = vpop.f32.mrf.mxu0
      %v1368 = vpop.f32.mrf.mxu0
      %v1369 = vadd.f32 0.0, %v1368
      %v1370 = vpop.f32.mrf.mxu0
      %1371 = vmatprep.mubr.bf16.mxu0 0
      %1372 = vmatmul.mubr.bf16.gmra.mxu0 %v1219
      %v1373 = vpop.f32.mrf.mxu0
      %v1374 = vadd.f32 0.0, %v1373
      %v1375 = vpop.f32.mrf.mxu0
      %v1376 = vpop.f32.mrf.mxu0
      %v1377 = vadd.f32 0.0, %v1376
      %v1378 = vpop.f32.mrf.mxu0
      %1379 = vmatprep.mubr.bf16.mxu0 0
      %1380 = vmatmul.mubr.bf16.gmra.mxu0 %v1222
      %v1381 = vpop.f32.mrf.mxu0
      %v1382 = vadd.f32 0.0, %v1381
      %v1383 = vpop.f32.mrf.mxu0
      %v1384 = vpop.f32.mrf.mxu0
      %v1385 = vadd.f32 0.0, %v1384
      %v1386 = vpop.f32.mrf.mxu0
      %1387 = vmatprep.mubr.bf16.mxu0 0
      %1388 = vmatmul.mubr.bf16.gmra.mxu0 %v1225
      %v1389 = vpop.f32.mrf.mxu0
      %v1390 = vadd.f32 0.0, %v1389
      %v1391 = vpop.f32.mrf.mxu0
      %v1392 = vpop.f32.mrf.mxu0
      %v1393 = vadd.f32 0.0, %v1392
      %v1394 = vpop.f32.mrf.mxu0
      %1395 = vdwg.mxu0
      %v1396 = vadd.f32 %v770, %v1262
      %v1397 = vadd.f32 %v773, %v1265
      %v1398 = vadd.f32 %v778, %v1270
      %v1399 = vadd.f32 %v781, %v1273
      %v1400 = vadd.f32 %v786, %v1278
      %v1401 = vadd.f32 %v789, %v1281
      %v1402 = vadd.f32 %v794, %v1286
      %v1403 = vadd.f32 %v797, %v1289
      %v1404 = vadd.f32 %v802, %v1294
      %v1405 = vadd.f32 %v805, %v1297
      %v1406 = vadd.f32 %v810, %v1302
      %v1407 = vadd.f32 %v813, %v1305
      %v1408 = vadd.f32 %v818, %v1310
      %v1409 = vadd.f32 %v821, %v1313
      %v1410 = vadd.f32 %v826, %v1318
      %v1411 = vadd.f32 %v829, %v1321
      %v1412 = vadd.f32 %v834, %v1326
      %v1413 = vadd.f32 %v837, %v1329
      %v1414 = vadd.f32 %v842, %v1334
      %v1415 = vadd.f32 %v845, %v1337
      %v1416 = vadd.f32 %v850, %v1342
      %v1417 = vadd.f32 %v853, %v1345
      %v1418 = vadd.f32 %v858, %v1350
      %v1419 = vadd.f32 %v861, %v1353
      %v1420 = vadd.f32 %v866, %v1358
      %v1421 = vadd.f32 %v869, %v1361
      %v1422 = vadd.f32 %v874, %v1366
      %v1423 = vadd.f32 %v877, %v1369
      %v1424 = vadd.f32 %v882, %v1374
      %v1425 = vadd.f32 %v885, %v1377
      %v1426 = vadd.f32 %v890, %v1382
      %v1427 = vadd.f32 %v893, %v1385
      %v1428 = vadd.f32 %v898, %v1390
      %v1429 = vadd.f32 %v901, %v1393
      %v1430 = vld [vmem:[%s192 + $0x8] sm:$0xe]
      %s1431 = scalar_lea.vmem %s1, 24
      %v1432 = vld [vmem:[%s1431] sm:$0xf]
      %v1433 = vld [vmem:[%s1431 + $0x4] sm:$0xf]
      %v1435 = vunpack.c.l.b16 %v1430
      %v1436 = vpack.c.b16 %v978, %v1435
      %vm1437 = vcmask 1046528
      %v1438 = vrot.slane %v1436, 1
      %v1439 = vrot.slane %v1013, 1
      %v1440 = vsel %vm1437, %v1438, %v1439
      %v1441 = vrot.slane %v1014, 1
      %v1442 = vsel %vm1437, %v1439, %v1441
      %v1443 = vrot.slane %v1015, 1
      %v1444 = vsel %vm1437, %v1441, %v1443
      %v1445 = vrot.slane %v1016, 1
      %v1446 = vsel %vm1437, %v1443, %v1445
      %v1447 = vrot.slane %v1017, 1
      %v1448 = vsel %vm1437, %v1445, %v1447
      %v1449 = vrot.slane %v1018, 1
      %v1450 = vsel %vm1437, %v1447, %v1449
      %v1451 = vrot.slane %v1019, 1
      %v1452 = vsel %vm1437, %v1449, %v1451
      %v1453 = vrot.slane %v1020, 1
      %v1454 = vsel %vm1437, %v1451, %v1453
      %v1455 = vrot.slane %v1021, 1
      %v1456 = vsel %vm1437, %v1453, %v1455
      %v1457 = vrot.slane %v1022, 1
      %v1458 = vsel %vm1437, %v1455, %v1457
      %v1459 = vrot.slane %v1023, 1
      %v1460 = vsel %vm1437, %v1457, %v1459
      %v1461 = vrot.slane %v1024, 1
      %v1462 = vsel %vm1437, %v1459, %v1461
      %v1463 = vrot.slane %v1025, 1
      %v1464 = vsel %vm1437, %v1461, %v1463
      %v1465 = vrot.slane %v1026, 1
      %v1466 = vsel %vm1437, %v1463, %v1465
      %v1467 = vrot.slane %v1027, 1
      %v1468 = vsel %vm1437, %v1465, %v1467
      %v1469 = vrot.slane %v1028, 1
      %v1470 = vsel %vm1437, %v1467, %v1469
      %v1471 = vrot.slane %v1029, 1
      %v1472 = vsel %vm1437, %v1469, %v1471
      %v1475 = vunpack.c.l.b16 %v1432
      %v1476 = vunpack.c.l.b16 %v1433
      %v1477 = vpack.c.b16 %v1476, %v1475
      %v1480 = vsel %vm474, %v1440, 0
      %v1483 = vsel %vm474, %v1442, 0
      %v1486 = vsel %vm474, %v1444, 0
      %v1489 = vsel %vm474, %v1446, 0
      %v1492 = vsel %vm474, %v1448, 0
      %v1495 = vsel %vm474, %v1450, 0
      %v1498 = vsel %vm474, %v1452, 0
      %v1501 = vsel %vm474, %v1454, 0
      %v1504 = vsel %vm474, %v1456, 0
      %v1507 = vsel %vm474, %v1458, 0
      %v1510 = vsel %vm474, %v1460, 0
      %v1513 = vsel %vm474, %v1462, 0
      %v1516 = vsel %vm474, %v1464, 0
      %v1519 = vsel %vm474, %v1466, 0
      %v1522 = vsel %vm474, %v1468, 0
      %v1525 = vsel %vm474, %v1470, 0
      %v1528 = vsel %vm474, %v1472, 0
      %1530 = vmatprep.subr.bf16.mxu0 0
      %1531 = vmatpush1.bf16.msra.mxu0 0
      %1532 = vmatprep.subr.bf16.mxu0 0
      %1533 = vmatpush1.bf16.msra.mxu0 0
      %1534 = vmatprep.subr.bf16.mxu0 0
      %1535 = vmatpush1.bf16.msra.mxu0 0
      %1536 = vmatprep.subr.bf16.mxu0 0
      %1537 = vmatpush1.bf16.msra.mxu0 0
      %1538 = vmatprep.subr.bf16.mxu0 0
      %1539 = vmatpush1.bf16.msra.mxu0 0
      %1540 = vmatprep.subr.bf16.mxu0 0
      %1541 = vmatpush1.bf16.msra.mxu0 0
      %1542 = vmatprep.subr.bf16.mxu0 0
      %1543 = vmatpush1.bf16.msra.mxu0 0
      %1544 = vmatprep.subr.bf16.mxu0 0
      %1545 = vmatpush1.bf16.msra.mxu0 %v1477
      %1546 = vmatprep.subr.bf16.mxu0 0
      %1547 = vmatpush2.bf16.msra.mxu0 0
      %1548 = vmatprep.subr.bf16.mxu0 0
      %1549 = vmatpush2.bf16.msra.mxu0 0
      %1550 = vmatprep.subr.bf16.mxu0 0
      %1551 = vmatpush2.bf16.msra.mxu0 0
      %1552 = vmatprep.subr.bf16.mxu0 0
      %1553 = vmatpush2.bf16.msra.mxu0 0
      %1554 = vmatprep.subr.bf16.mxu0 0
      %1555 = vmatpush2.bf16.msra.mxu0 0
      %1556 = vmatprep.subr.bf16.mxu0 0
      %1557 = vmatpush2.bf16.msra.mxu0 0
      %1558 = vmatprep.subr.bf16.mxu0 0
      %1559 = vmatpush2.bf16.msra.mxu0 0
      %1560 = vmatprep.subr.bf16.mxu0 0
      %1561 = vmatpush2.bf16.msra.mxu0 0
      %1562 = vmatprep.mubr.bf16.mxu0 0
      %1563 = vmatmul.mubr.bf16.gmra.mxu0 %v1480
      %v1564 = vpop.f32.mrf.mxu0
      %v1565 = vadd.f32 0.0, %v1564
      %v1566 = vpop.f32.mrf.mxu0
      %v1567 = vpop.f32.mrf.mxu0
      %v1568 = vadd.f32 0.0, %v1567
      %v1569 = vpop.f32.mrf.mxu0
      %1570 = vmatprep.mubr.bf16.mxu0 0
      %1571 = vmatmul.mubr.bf16.gmra.mxu0 %v1483
      %v1572 = vpop.f32.mrf.mxu0
      %v1573 = vadd.f32 0.0, %v1572
      %v1574 = vpop.f32.mrf.mxu0
      %v1575 = vpop.f32.mrf.mxu0
      %v1576 = vadd.f32 0.0, %v1575
      %v1577 = vpop.f32.mrf.mxu0
      %1578 = vmatprep.mubr.bf16.mxu0 0
      %1579 = vmatmul.mubr.bf16.gmra.mxu0 %v1486
      %v1580 = vpop.f32.mrf.mxu0
      %v1581 = vadd.f32 0.0, %v1580
      %v1582 = vpop.f32.mrf.mxu0
      %v1583 = vpop.f32.mrf.mxu0
      %v1584 = vadd.f32 0.0, %v1583
      %v1585 = vpop.f32.mrf.mxu0
      %1586 = vmatprep.mubr.bf16.mxu0 0
      %1587 = vmatmul.mubr.bf16.gmra.mxu0 %v1489
      %v1588 = vpop.f32.mrf.mxu0
      %v1589 = vadd.f32 0.0, %v1588
      %v1590 = vpop.f32.mrf.mxu0
      %v1591 = vpop.f32.mrf.mxu0
      %v1592 = vadd.f32 0.0, %v1591
      %v1593 = vpop.f32.mrf.mxu0
      %1594 = vmatprep.mubr.bf16.mxu0 0
      %1595 = vmatmul.mubr.bf16.gmra.mxu0 %v1492
      %v1596 = vpop.f32.mrf.mxu0
      %v1597 = vadd.f32 0.0, %v1596
      %v1598 = vpop.f32.mrf.mxu0
      %v1599 = vpop.f32.mrf.mxu0
      %v1600 = vadd.f32 0.0, %v1599
      %v1601 = vpop.f32.mrf.mxu0
      %1602 = vmatprep.mubr.bf16.mxu0 0
      %1603 = vmatmul.mubr.bf16.gmra.mxu0 %v1495
      %v1604 = vpop.f32.mrf.mxu0
      %v1605 = vadd.f32 0.0, %v1604
      %v1606 = vpop.f32.mrf.mxu0
      %v1607 = vpop.f32.mrf.mxu0
      %v1608 = vadd.f32 0.0, %v1607
      %v1609 = vpop.f32.mrf.mxu0
      %1610 = vmatprep.mubr.bf16.mxu0 0
      %1611 = vmatmul.mubr.bf16.gmra.mxu0 %v1498
      %v1612 = vpop.f32.mrf.mxu0
      %v1613 = vadd.f32 0.0, %v1612
      %v1614 = vpop.f32.mrf.mxu0
      %v1615 = vpop.f32.mrf.mxu0
      %v1616 = vadd.f32 0.0, %v1615
      %v1617 = vpop.f32.mrf.mxu0
      %1618 = vmatprep.mubr.bf16.mxu0 0
      %1619 = vmatmul.mubr.bf16.gmra.mxu0 %v1501
      %v1620 = vpop.f32.mrf.mxu0
      %v1621 = vadd.f32 0.0, %v1620
      %v1622 = vpop.f32.mrf.mxu0
      %v1623 = vpop.f32.mrf.mxu0
      %v1624 = vadd.f32 0.0, %v1623
      %v1625 = vpop.f32.mrf.mxu0
      %1626 = vmatprep.mubr.bf16.mxu0 0
      %1627 = vmatmul.mubr.bf16.gmra.mxu0 %v1504
      %v1628 = vpop.f32.mrf.mxu0
      %v1629 = vadd.f32 0.0, %v1628
      %v1630 = vpop.f32.mrf.mxu0
      %v1631 = vpop.f32.mrf.mxu0
      %v1632 = vadd.f32 0.0, %v1631
      %v1633 = vpop.f32.mrf.mxu0
      %1634 = vmatprep.mubr.bf16.mxu0 0
      %1635 = vmatmul.mubr.bf16.gmra.mxu0 %v1507
      %v1636 = vpop.f32.mrf.mxu0
      %v1637 = vadd.f32 0.0, %v1636
      %v1638 = vpop.f32.mrf.mxu0
      %v1639 = vpop.f32.mrf.mxu0
      %v1640 = vadd.f32 0.0, %v1639
      %v1641 = vpop.f32.mrf.mxu0
      %1642 = vmatprep.mubr.bf16.mxu0 0
      %1643 = vmatmul.mubr.bf16.gmra.mxu0 %v1510
      %v1644 = vpop.f32.mrf.mxu0
      %v1645 = vadd.f32 0.0, %v1644
      %v1646 = vpop.f32.mrf.mxu0
      %v1647 = vpop.f32.mrf.mxu0
      %v1648 = vadd.f32 0.0, %v1647
      %v1649 = vpop.f32.mrf.mxu0
      %1650 = vmatprep.mubr.bf16.mxu0 0
      %1651 = vmatmul.mubr.bf16.gmra.mxu0 %v1513
      %v1652 = vpop.f32.mrf.mxu0
      %v1653 = vadd.f32 0.0, %v1652
      %v1654 = vpop.f32.mrf.mxu0
      %v1655 = vpop.f32.mrf.mxu0
      %v1656 = vadd.f32 0.0, %v1655
      %v1657 = vpop.f32.mrf.mxu0
      %1658 = vmatprep.mubr.bf16.mxu0 0
      %1659 = vmatmul.mubr.bf16.gmra.mxu0 %v1516
      %v1660 = vpop.f32.mrf.mxu0
      %v1661 = vadd.f32 0.0, %v1660
      %v1662 = vpop.f32.mrf.mxu0
      %v1663 = vpop.f32.mrf.mxu0
      %v1664 = vadd.f32 0.0, %v1663
      %v1665 = vpop.f32.mrf.mxu0
      %1666 = vmatprep.mubr.bf16.mxu0 0
      %1667 = vmatmul.mubr.bf16.gmra.mxu0 %v1519
      %v1668 = vpop.f32.mrf.mxu0
      %v1669 = vadd.f32 0.0, %v1668
      %v1670 = vpop.f32.mrf.mxu0
      %v1671 = vpop.f32.mrf.mxu0
      %v1672 = vadd.f32 0.0, %v1671
      %v1673 = vpop.f32.mrf.mxu0
      %1674 = vmatprep.mubr.bf16.mxu0 0
      %1675 = vmatmul.mubr.bf16.gmra.mxu0 %v1522
      %v1676 = vpop.f32.mrf.mxu0
      %v1677 = vadd.f32 0.0, %v1676
      %v1678 = vpop.f32.mrf.mxu0
      %v1679 = vpop.f32.mrf.mxu0
      %v1680 = vadd.f32 0.0, %v1679
      %v1681 = vpop.f32.mrf.mxu0
      %1682 = vmatprep.mubr.bf16.mxu0 0
      %1683 = vmatmul.mubr.bf16.gmra.mxu0 %v1525
      %v1684 = vpop.f32.mrf.mxu0
      %v1685 = vadd.f32 0.0, %v1684
      %v1686 = vpop.f32.mrf.mxu0
      %v1687 = vpop.f32.mrf.mxu0
      %v1688 = vadd.f32 0.0, %v1687
      %v1689 = vpop.f32.mrf.mxu0
      %1690 = vmatprep.mubr.bf16.mxu0 0
      %1691 = vmatmul.mubr.bf16.gmra.mxu0 %v1528
      %v1692 = vpop.f32.mrf.mxu0
      %v1693 = vadd.f32 0.0, %v1692
      %v1694 = vpop.f32.mrf.mxu0
      %v1695 = vpop.f32.mrf.mxu0
      %v1696 = vadd.f32 0.0, %v1695
      %v1697 = vpop.f32.mrf.mxu0
      %1698 = vdwg.mxu0
      %v1699 = vadd.f32 %v1396, %v1565
      %v1700 = vadd.f32 %v1397, %v1568
      %v1701 = vadd.f32 %v1398, %v1573
      %v1702 = vadd.f32 %v1399, %v1576
      %v1703 = vadd.f32 %v1400, %v1581
      %v1704 = vadd.f32 %v1401, %v1584
      %v1705 = vadd.f32 %v1402, %v1589
      %v1706 = vadd.f32 %v1403, %v1592
      %v1707 = vadd.f32 %v1404, %v1597
      %v1708 = vadd.f32 %v1405, %v1600
      %v1709 = vadd.f32 %v1406, %v1605
      %v1710 = vadd.f32 %v1407, %v1608
      %v1711 = vadd.f32 %v1408, %v1613
      %v1712 = vadd.f32 %v1409, %v1616
      %v1713 = vadd.f32 %v1410, %v1621
      %v1714 = vadd.f32 %v1411, %v1624
      %v1715 = vadd.f32 %v1412, %v1629
      %v1716 = vadd.f32 %v1413, %v1632
      %v1717 = vadd.f32 %v1414, %v1637
      %v1718 = vadd.f32 %v1415, %v1640
      %v1719 = vadd.f32 %v1416, %v1645
      %v1720 = vadd.f32 %v1417, %v1648
      %v1721 = vadd.f32 %v1418, %v1653
      %v1722 = vadd.f32 %v1419, %v1656
      %v1723 = vadd.f32 %v1420, %v1661
      %v1724 = vadd.f32 %v1421, %v1664
      %v1725 = vadd.f32 %v1422, %v1669
      %v1726 = vadd.f32 %v1423, %v1672
      %v1727 = vadd.f32 %v1424, %v1677
      %v1728 = vadd.f32 %v1425, %v1680
      %v1729 = vadd.f32 %v1426, %v1685
      %v1730 = vadd.f32 %v1427, %v1688
      %v1731 = vadd.f32 %v1428, %v1693
      %v1732 = vadd.f32 %v1429, %v1696
      %v1733 = vld [vmem:[%s2] sm:$0x1]
      %v1735 = vlaneseq
      %v1736 = vshrl.u32 %v1735, 7
      %v1737 = vsub.s32 0, %v1736
      %v1738 = vrot.slane %v1733, %v1737
      %v1740 = vmul.f32 %v1699, %v1738
      %v1741 = vmul.f32 %v1700, %v1738
      %v1742 = vmul.f32 %v1701, %v1738
      %v1743 = vmul.f32 %v1702, %v1738
      %v1744 = vmul.f32 %v1703, %v1738
      %v1745 = vmul.f32 %v1704, %v1738
      %v1746 = vmul.f32 %v1705, %v1738
      %v1747 = vmul.f32 %v1706, %v1738
      %v1748 = vmul.f32 %v1707, %v1738
      %v1749 = vmul.f32 %v1708, %v1738
      %v1750 = vmul.f32 %v1709, %v1738
      %v1751 = vmul.f32 %v1710, %v1738
      %v1752 = vmul.f32 %v1711, %v1738
      %v1753 = vmul.f32 %v1712, %v1738
      %v1754 = vmul.f32 %v1713, %v1738
      %v1755 = vmul.f32 %v1714, %v1738
      %v1756 = vmul.f32 %v1715, %v1738
      %v1757 = vmul.f32 %v1716, %v1738
      %v1758 = vmul.f32 %v1717, %v1738
      %v1759 = vmul.f32 %v1718, %v1738
      %v1760 = vmul.f32 %v1719, %v1738
      %v1761 = vmul.f32 %v1720, %v1738
      %v1762 = vmul.f32 %v1721, %v1738
      %v1763 = vmul.f32 %v1722, %v1738
      %v1764 = vmul.f32 %v1723, %v1738
      %v1765 = vmul.f32 %v1724, %v1738
      %v1766 = vmul.f32 %v1725, %v1738
      %v1767 = vmul.f32 %v1726, %v1738
      %v1768 = vmul.f32 %v1727, %v1738
      %v1769 = vmul.f32 %v1728, %v1738
      %v1770 = vmul.f32 %v1729, %v1738
      %v1771 = vmul.f32 %v1730, %v1738
      %v1772 = vmul.f32 %v1731, %v1738
      %v1773 = vmul.f32 %v1732, %v1738
      %v1774 = vld [vmem:[%s3] sm:$0x1]
      %v1776 = vlaneseq
      %v1777 = vshrl.u32 %v1776, 7
      %v1778 = vsub.s32 0, %v1777
      %v1779 = vrot.slane %v1774, %v1778
      %v1781 = vadd.f32 %v1740, %v1779
      %v1782 = vadd.f32 %v1741, %v1779
      %v1783 = vadd.f32 %v1742, %v1779
      %v1784 = vadd.f32 %v1743, %v1779
      %v1785 = vadd.f32 %v1744, %v1779
      %v1786 = vadd.f32 %v1745, %v1779
      %v1787 = vadd.f32 %v1746, %v1779
      %v1788 = vadd.f32 %v1747, %v1779
      %v1789 = vadd.f32 %v1748, %v1779
      %v1790 = vadd.f32 %v1749, %v1779
      %v1791 = vadd.f32 %v1750, %v1779
      %v1792 = vadd.f32 %v1751, %v1779
      %v1793 = vadd.f32 %v1752, %v1779
      %v1794 = vadd.f32 %v1753, %v1779
      %v1795 = vadd.f32 %v1754, %v1779
      %v1796 = vadd.f32 %v1755, %v1779
      %v1797 = vadd.f32 %v1756, %v1779
      %v1798 = vadd.f32 %v1757, %v1779
      %v1799 = vadd.f32 %v1758, %v1779
      %v1800 = vadd.f32 %v1759, %v1779
      %v1801 = vadd.f32 %v1760, %v1779
      %v1802 = vadd.f32 %v1761, %v1779
      %v1803 = vadd.f32 %v1762, %v1779
      %v1804 = vadd.f32 %v1763, %v1779
      %v1805 = vadd.f32 %v1764, %v1779
      %v1806 = vadd.f32 %v1765, %v1779
      %v1807 = vadd.f32 %v1766, %v1779
      %v1808 = vadd.f32 %v1767, %v1779
      %v1809 = vadd.f32 %v1768, %v1779
      %v1810 = vadd.f32 %v1769, %v1779
      %v1811 = vadd.f32 %v1770, %v1779
      %v1812 = vadd.f32 %v1771, %v1779
      %v1813 = vadd.f32 %v1772, %v1779
      %v1814 = vadd.f32 %v1773, %v1779
      %v1815 = vmax.f32 %v1781, 0.0
      %v1816 = vmax.f32 %v1782, 0.0
      %v1817 = vmax.f32 %v1783, 0.0
      %v1818 = vmax.f32 %v1784, 0.0
      %v1819 = vmax.f32 %v1785, 0.0
      %v1820 = vmax.f32 %v1786, 0.0
      %v1821 = vmax.f32 %v1787, 0.0
      %v1822 = vmax.f32 %v1788, 0.0
      %v1823 = vmax.f32 %v1789, 0.0
      %v1824 = vmax.f32 %v1790, 0.0
      %v1825 = vmax.f32 %v1791, 0.0
      %v1826 = vmax.f32 %v1792, 0.0
      %v1827 = vmax.f32 %v1793, 0.0
      %v1828 = vmax.f32 %v1794, 0.0
      %v1829 = vmax.f32 %v1795, 0.0
      %v1830 = vmax.f32 %v1796, 0.0
      %v1831 = vmax.f32 %v1797, 0.0
      %v1832 = vmax.f32 %v1798, 0.0
      %v1833 = vmax.f32 %v1799, 0.0
      %v1834 = vmax.f32 %v1800, 0.0
      %v1835 = vmax.f32 %v1801, 0.0
      %v1836 = vmax.f32 %v1802, 0.0
      %v1837 = vmax.f32 %v1803, 0.0
      %v1838 = vmax.f32 %v1804, 0.0
      %v1839 = vmax.f32 %v1805, 0.0
      %v1840 = vmax.f32 %v1806, 0.0
      %v1841 = vmax.f32 %v1807, 0.0
      %v1842 = vmax.f32 %v1808, 0.0
      %v1843 = vmax.f32 %v1809, 0.0
      %v1844 = vmax.f32 %v1810, 0.0
      %v1845 = vmax.f32 %v1811, 0.0
      %v1846 = vmax.f32 %v1812, 0.0
      %v1847 = vmax.f32 %v1813, 0.0
      %v1848 = vmax.f32 %v1814, 0.0
      %v1849 = vpack.c.bf16 %v1816, %v1815
      %v1850 = vpack.c.bf16 %v1818, %v1817
      %v1851 = vpack.c.bf16 %v1820, %v1819
      %v1852 = vpack.c.bf16 %v1822, %v1821
      %v1853 = vpack.c.bf16 %v1824, %v1823
      %v1854 = vpack.c.bf16 %v1826, %v1825
      %v1855 = vpack.c.bf16 %v1828, %v1827
      %v1856 = vpack.c.bf16 %v1830, %v1829
      %v1857 = vpack.c.bf16 %v1832, %v1831
      %v1858 = vpack.c.bf16 %v1834, %v1833
      %v1859 = vpack.c.bf16 %v1836, %v1835
      %v1860 = vpack.c.bf16 %v1838, %v1837
      %v1861 = vpack.c.bf16 %v1840, %v1839
      %v1862 = vpack.c.bf16 %v1842, %v1841
      %v1863 = vpack.c.bf16 %v1844, %v1843
      %v1864 = vpack.c.bf16 %v1846, %v1845
      %v1865 = vpack.c.bf16 %v1848, %v1847
      %v1883 = vunpack.c.l.b16 %v1849
      %v1884 = vunpack.c.h.b16 %v1849
      %v1885 = vunpack.c.l.b16 %v1850
      %v1886 = vunpack.c.h.b16 %v1850
      %v1887 = vunpack.c.l.b16 %v1851
      %v1888 = vunpack.c.h.b16 %v1851
      %v1889 = vunpack.c.l.b16 %v1852
      %v1890 = vunpack.c.h.b16 %v1852
      %v1891 = vunpack.c.l.b16 %v1853
      %v1892 = vunpack.c.h.b16 %v1853
      %v1893 = vunpack.c.l.b16 %v1854
      %v1894 = vunpack.c.h.b16 %v1854
      %v1895 = vunpack.c.l.b16 %v1855
      %v1896 = vunpack.c.h.b16 %v1855
      %v1897 = vunpack.c.l.b16 %v1856
      %v1898 = vunpack.c.h.b16 %v1856
      %v1899 = vunpack.c.l.b16 %v1857
      %v1900 = vunpack.c.h.b16 %v1857
      %v1901 = vunpack.c.l.b16 %v1858
      %v1902 = vunpack.c.h.b16 %v1858
      %v1903 = vunpack.c.l.b16 %v1859
      %v1904 = vunpack.c.h.b16 %v1859
      %v1905 = vunpack.c.l.b16 %v1860
      %v1906 = vunpack.c.h.b16 %v1860
      %v1907 = vunpack.c.l.b16 %v1861
      %v1908 = vunpack.c.h.b16 %v1861
      %v1909 = vunpack.c.l.b16 %v1862
      %v1910 = vunpack.c.h.b16 %v1862
      %v1911 = vunpack.c.l.b16 %v1863
      %v1912 = vunpack.c.h.b16 %v1863
      %v1913 = vunpack.c.l.b16 %v1864
      %v1914 = vunpack.c.h.b16 %v1864
      %v1915 = vunpack.c.l.b16 %v1865
      %v1916 = vunpack.c.h.b16 %v1865
      %v1917 = vpack.c.b16 %v1883, %v1883
      %v1918 = vpack.c.b16 %v1884, %v1884
      %v1919 = vpack.c.b16 %v1885, %v1885
      %v1920 = vpack.c.b16 %v1886, %v1886
      %v1921 = vpack.c.b16 %v1887, %v1887
      %v1922 = vpack.c.b16 %v1888, %v1888
      %v1923 = vpack.c.b16 %v1889, %v1889
      %v1924 = vpack.c.b16 %v1890, %v1890
      %v1925 = vpack.c.b16 %v1891, %v1891
      %v1926 = vpack.c.b16 %v1892, %v1892
      %v1927 = vpack.c.b16 %v1893, %v1893
      %v1928 = vpack.c.b16 %v1894, %v1894
      %v1929 = vpack.c.b16 %v1895, %v1895
      %v1930 = vpack.c.b16 %v1896, %v1896
      %v1931 = vpack.c.b16 %v1897, %v1897
      %v1932 = vpack.c.b16 %v1898, %v1898
      %v1933 = vpack.c.b16 %v1899, %v1899
      %v1934 = vpack.c.b16 %v1900, %v1900
      %v1935 = vpack.c.b16 %v1901, %v1901
      %v1936 = vpack.c.b16 %v1902, %v1902
      %v1937 = vpack.c.b16 %v1903, %v1903
      %v1938 = vpack.c.b16 %v1904, %v1904
      %v1939 = vpack.c.b16 %v1905, %v1905
      %v1940 = vpack.c.b16 %v1906, %v1906
      %v1941 = vpack.c.b16 %v1907, %v1907
      %v1942 = vpack.c.b16 %v1908, %v1908
      %v1943 = vpack.c.b16 %v1909, %v1909
      %v1944 = vpack.c.b16 %v1910, %v1910
      %v1945 = vpack.c.b16 %v1911, %v1911
      %v1946 = vpack.c.b16 %v1912, %v1912
      %v1947 = vpack.c.b16 %v1913, %v1913
      %v1948 = vpack.c.b16 %v1914, %v1914
      %v1949 = vpack.c.b16 %v1915, %v1915
      %v1950 = vpack.c.b16 %v1916, %v1916
      %vm1985 = vcmask 60416
      %1986 = vst.msk [vmem:[%s197] sm:$0xf] %vm1985, %v1917
      %1987 = vst.msk [vmem:[%s197 + $0x4] sm:$0xf] %vm1985, %v1918
      %1988 = vst.msk [vmem:[%s197 + $0x8] sm:$0xf] %vm1985, %v1919
      %1989 = vst.msk [vmem:[%s197 + $0xc] sm:$0xf] %vm1985, %v1920
      %1990 = vst.msk [vmem:[%s197 + $0x10] sm:$0xf] %vm1985, %v1921
      %1991 = vst.msk [vmem:[%s197 + $0x14] sm:$0xf] %vm1985, %v1922
      %1992 = vst.msk [vmem:[%s197 + $0x18] sm:$0xf] %vm1985, %v1923
      %1993 = vst.msk [vmem:[%s197 + $0x1c] sm:$0xf] %vm1985, %v1924
      %1994 = vst.msk [vmem:[%s197 + $0x20] sm:$0xf] %vm1985, %v1925
      %1995 = vst.msk [vmem:[%s197 + $0x24] sm:$0xf] %vm1985, %v1926
      %1996 = vst.msk [vmem:[%s197 + $0x28] sm:$0xf] %vm1985, %v1927
      %1997 = vst.msk [vmem:[%s197 + $0x2c] sm:$0xf] %vm1985, %v1928
      %1998 = vst.msk [vmem:[%s197 + $0x30] sm:$0xf] %vm1985, %v1929
      %1999 = vst.msk [vmem:[%s197 + $0x34] sm:$0xf] %vm1985, %v1930
      %2000 = vst.msk [vmem:[%s197 + $0x38] sm:$0xf] %vm1985, %v1931
      %2001 = vst.msk [vmem:[%s197 + $0x3c] sm:$0xf] %vm1985, %v1932
      %2002 = vst.msk [vmem:[%s197 + $0x40] sm:$0xf] %vm1985, %v1933
      %2003 = vst.msk [vmem:[%s197 + $0x44] sm:$0xf] %vm1985, %v1934
      %2004 = vst.msk [vmem:[%s197 + $0x48] sm:$0xf] %vm1985, %v1935
      %2005 = vst.msk [vmem:[%s197 + $0x4c] sm:$0xf] %vm1985, %v1936
      %2006 = vst.msk [vmem:[%s197 + $0x50] sm:$0xf] %vm1985, %v1937
      %2007 = vst.msk [vmem:[%s197 + $0x54] sm:$0xf] %vm1985, %v1938
      %2008 = vst.msk [vmem:[%s197 + $0x58] sm:$0xf] %vm1985, %v1939
      %2009 = vst.msk [vmem:[%s197 + $0x5c] sm:$0xf] %vm1985, %v1940
      %2010 = vst.msk [vmem:[%s197 + $0x60] sm:$0xf] %vm1985, %v1941
      %2011 = vst.msk [vmem:[%s197 + $0x64] sm:$0xf] %vm1985, %v1942
      %2012 = vst.msk [vmem:[%s197 + $0x68] sm:$0xf] %vm1985, %v1943
      %2013 = vst.msk [vmem:[%s197 + $0x6c] sm:$0xf] %vm1985, %v1944
      %2014 = vst.msk [vmem:[%s197 + $0x70] sm:$0xf] %vm1985, %v1945
      %2015 = vst.msk [vmem:[%s197 + $0x74] sm:$0xf] %vm1985, %v1946
      %2016 = vst.msk [vmem:[%s197 + $0x78] sm:$0xf] %vm1985, %v1947
      %2017 = vst.msk [vmem:[%s197 + $0x7c] sm:$0xf] %vm1985, %v1948
      %2018 = vst.msk [vmem:[%s197 + $0x80] sm:$0xf] %vm1985, %v1949
      %2019 = vst.msk [vmem:[%s197 + $0x84] sm:$0xf] %vm1985, %v1950
      %p2020 = scmp.lt.s32.totalorder %s15, 1
      %s2021 = scalar_select %p2020, %s15, 1
      %s2022 = smul.addr %s2021, 34
      %s2023 = smul.addr %s2022, 4
      %s2024 = scalar_lea.vmem %s4, %s2023
      // Predicated region
      $region37: #{conv_stem_forward.4} parent=35 // pred_check
        %p2025 = pneg %p122
      $region38: #{conv_stem_forward.4} parent=35 // pred_check_branch
        %2027 = sbr.rel (%p2025) target = $region40
      $region39: #{conv_stem_forward.4} parent=35 // pred_region
        _
      $region40: #{conv_stem_forward.4} parent=35 // pred_fallthru
        _
    $region36: #{conv_stem_forward.4} parent=5 // pred_fallthru
      _
    %p2028 = scmp.le.s32.totalorder 2, %s10
    // Predicated region
    $region41: #{conv_stem_forward.4} parent=5 // pred_check
      %p2029 = pneg %p2028
    $region42: #{conv_stem_forward.4} parent=5 // pred_check_branch
      %2031 = sbr.rel (%p2029) target = $region44
    $region43: #{conv_stem_forward.4} parent=5 // pred_region
      %s2032 = ssub.s32 %s10, 2
      // Predicated region
      $region45: #{conv_stem_forward.4} parent=43 // pred_check
        %p2033 = pneg %p128
      $region46: #{conv_stem_forward.4} parent=43 // pred_check_branch
        %2035 = sbr.rel (%p2033) target = $region48
      $region47: #{conv_stem_forward.4} parent=43 // pred_region
        %p2036 = scmp.lt.s32.totalorder %s16, 1
        %s2037 = scalar_select %p2036, %s16, 1
        %s2038 = smul.addr %s2037, 34
        %s2039 = smul.addr %s2038, 4
        %s2040 = scalar_lea.vmem %s4, %s2039
      $region48: #{conv_stem_forward.4} parent=43 // pred_fallthru
        _
    $region44: #{conv_stem_forward.4} parent=5 // pred_fallthru
      _
  $region6: #{conv_stem_forward.4} parent=0 // loop_footer
    %s14 = sadd.s32 1, %s10
  $region7: #{conv_stem_forward.4} parent=0 // loop_footer_branch
    %9 = sbr.rel target = $region3
  $region8: #{conv_stem_forward.4} parent=0 // loop_exit
    _

// kernel: conv_stem_forward.5
$region0: #{conv_stem_forward.5}
  #allocation0 [shape = 'u32[]', space=smem, size = 0x4, offset = 0x4, fixed_abs, tag = 'smem constant byte address 0x4 - core index']
  #allocation1 [shape = 'u32[144,128]{1,0:T(1,128)}', space=vmem, size = 0x12000, scoped, tag = 'internal scratch']
  %s0 = inlined_call_operand.vmem [shape: bf16[2,88,32], index: 0, kind: input, shape index: {}]
  %s1 = inlined_call_operand.vmem [shape: bf16[4,32,16], index: 1, kind: input, shape index: {}]
  %s2 = inlined_call_operand.vmem [shape: f32[1,16], index: 2, kind: input, shape index: {}]
  %s3 = inlined_call_operand.vmem [shape: f32[1,16], index: 3, kind: input, shape index: {}]
  %s4 = inlined_call_operand.vmem [shape: bf16[2,72,16], index: 4, kind: output, shape index: {}]
  %s5 = sld [smem:[#allocation0]]
  $region49: #{conv_stem_forward.5} parent=0
    _
  %s7 = ssub.s32 1, %s5
  %s8 = scalar_select 0, %s7, %s5
  loop: start=0, step=1, limit=4
  $region2: #{conv_stem_forward.5} parent=0 // loop_pre_header
    _
  $region3: #{conv_stem_forward.5} parent=0 // loop_header
    %s10 = sphi 0, %s14
    %p11 = scmp.ge.s32.totalorder %s10, 4
    %s20 = sphi 0, %s22
    %s23 = sphi 0, %s20
    %s24 = sphi 0, %s23
    %s40 = sphi 0, %s24
    %s44 = sphi 0, %s44
    %s46 = sphi 0, %s44
    %s47 = sphi 0, %s46
    %s61 = sphi 0, %s47
    %s65 = sphi 0, %s65
    %s67 = sphi 0, %s65
    %s68 = sphi 0, %s67
    %s82 = sphi 0, %s68
    %s86 = sphi 0, %s86
    %s88 = sphi 0, %s86
    %s89 = sphi 0, %s88
    %s103 = sphi 0, %s89
    %s109 = sphi 0, %s111
    %s112 = sphi 0, %s109
    %s113 = sphi 0, %s112
    %s129 = sphi 0, %s113
  $region4: #{conv_stem_forward.5} parent=0 // loop_header_branch
    %13 = sbr.rel (%p11) target = $region8
  $region5: #{conv_stem_forward.5} parent=0 // loop_body
    %s15 = ssub.s32 %s10, 1
    %s16 = ssub.s32 %s10, 2
    %s17 = sadd.s32 %s10, 1
    %s18 = ssub.s32 %s10, %s17
    %p19 = scmp.eq.s32.totalorder %s18, 0
    %s21 = sadd.s32 %s20, 1
    %s22 = scalar_select %p19, %s20, %s21
    %p25 = pneg %p19
    %p26 = scmp.eq.s32.totalorder %s10, 1
    %p27 = por %p25, %p26
    %p28 = scmp.ne.s32.totalorder %s20, %s23
    %p29 = scmp.eq.s32.totalorder %s10, 0
    %p30 = por %p28, %p29
    %p31 = scmp.ne.s32.totalorder %s20, %s23
    %p32 = scmp.eq.s32.totalorder %s15, 1
    %p33 = por %p31, %p32
    %p34 = scmp.ne.s32.totalorder %s23, %s24
    %p35 = scmp.eq.s32.totalorder %s15, 0
    %p36 = por %p34, %p35
    %p37 = scmp.ne.s32.totalorder %s23, %s24
    %p38 = scmp.eq.s32.totalorder %s16, 1
    %p39 = por %p37, %p38
    %p41 = scmp.ne.s32.totalorder %s24, %s40
    %p42 = scmp.eq.s32.totalorder %s16, 0
    %p43 = por %p41, %p42
    %s45 = sadd.s32 %s44, 1
    %p48 = scmp.eq.s32.totalorder %s10, 1
    %p49 = scmp.ne.s32.totalorder %s44, %s46
    %p50 = scmp.eq.s32.totalorder %s10, 0
    %p51 = por %p49, %p50
    %p52 = scmp.ne.s32.totalorder %s44, %s46
    %p53 = scmp.eq.s32.totalorder %s15, 1
    %p54 = por %p52, %p53
    %p55 = scmp.ne.s32.totalorder %s46, %s47
    %p56 = scmp.eq.s32.totalorder %s15, 0
    %p57 = por %p55, %p56
    %p58 = scmp.ne.s32.totalorder %s46, %s47
    %p59 = scmp.eq.s32.totalorder %s16, 1
    %p60 = por %p58, %p59
    %p62 = scmp.ne.s32.totalorder %s47, %s61
    %p63 = scmp.eq.s32.totalorder %s16, 0
    %p64 = por %p62, %p63
    %s66 = sadd.s32 %s65, 1
    %p69 = scmp.eq.s32.totalorder %s10, 1
    %p70 = scmp.ne.s32.totalorder %s65, %s67
    %p71 = scmp.eq.s32.totalorder %s10, 0
    %p72 = por %p70, %p71
    %p73 = scmp.ne.s32.totalorder %s65, %s67
    %p74 = scmp.eq.s32.totalorder %s15, 1
    %p75 = por %p73, %p74
    %p76 = scmp.ne.s32.totalorder %s67, %s68
    %p77 = scmp.eq.s32.totalorder %s15, 0
    %p78 = por %p76, %p77
    %p79 = scmp.ne.s32.totalorder %s67, %s68
    %p80 = scmp.eq.s32.totalorder %s16, 1
    %p81 = por %p79, %p80
    %p83 = scmp.ne.s32.totalorder %s68, %s82
    %p84 = scmp.eq.s32.totalorder %s16, 0
    %p85 = por %p83, %p84
    %s87 = sadd.s32 %s86, 1
    %p90 = scmp.eq.s32.totalorder %s10, 1
    %p91 = scmp.ne.s32.totalorder %s86, %s88
    %p92 = scmp.eq.s32.totalorder %s10, 0
    %p93 = por %p91, %p92
    %p94 = scmp.ne.s32.totalorder %s86, %s88
    %p95 = scmp.eq.s32.totalorder %s15, 1
    %p96 = por %p94, %p95
    %p97 = scmp.ne.s32.totalorder %s88, %s89
    %p98 = scmp.eq.s32.totalorder %s15, 0
    %p99 = por %p97, %p98
    %p100 = scmp.ne.s32.totalorder %s88, %s89
    %p101 = scmp.eq.s32.totalorder %s16, 1
    %p102 = por %p100, %p101
    %p104 = scmp.ne.s32.totalorder %s89, %s103
    %p105 = scmp.eq.s32.totalorder %s16, 0
    %p106 = por %p104, %p105
    %s107 = ssub.s32 %s10, %s17
    %p108 = scmp.eq.s32.totalorder %s107, 0
    %s110 = sadd.s32 %s109, 1
    %s111 = scalar_select %p108, %s109, %s110
    %p114 = pneg %p108
    %p115 = scmp.eq.s32.totalorder %s10, 1
    %p116 = por %p114, %p115
    %p117 = scmp.ne.s32.totalorder %s109, %s112
    %p118 = scmp.eq.s32.totalorder %s10, 0
    %p119 = por %p117, %p118
    %p120 = scmp.ne.s32.totalorder %s109, %s112
    %p121 = scmp.eq.s32.totalorder %s15, 1
    %p122 = por %p120, %p121
    %p123 = scmp.ne.s32.totalorder %s112, %s113
    %p124 = scmp.eq.s32.totalorder %s15, 0
    %p125 = por %p123, %p124
    %p126 = scmp.ne.s32.totalorder %s112, %s113
    %p127 = scmp.eq.s32.totalorder %s16, 1
    %p128 = por %p126, %p127
    %p130 = scmp.ne.s32.totalorder %s113, %s129
    %p131 = scmp.eq.s32.totalorder %s16, 0
    %p132 = por %p130, %p131
    %p133 = scmp.le.s32.totalorder 1, %s10
    %p134 = scmp.lt.s32.totalorder %s10, 3
    %p135 = pnand %p133, %p134
    %p136 = pneg %p135
    // Predicated region
    $region9: #{conv_stem_forward.5} parent=5 // pred_check
      _
    $region10: #{conv_stem_forward.5} parent=5 // pred_check_branch
      %138 = sbr.rel (%p135) target = $region12
    $region11: #{conv_stem_forward.5} parent=5 // pred_region
      %s139 = ssub.s32 %s10, 1
      // Predicated region
      $region13: #{conv_stem_forward.5} parent=11 // pred_check
        %p140 = pneg %p57
      $region14: #{conv_stem_forward.5} parent=11 // pred_check_branch
        %142 = sbr.rel (%p140) target = $region16
      $region15: #{conv_stem_forward.5} parent=11 // pred_region
        _
      $region16: #{conv_stem_forward.5} parent=11 // pred_fallthru
        _
      // Predicated region
      $region17: #{conv_stem_forward.5} parent=11 // pred_check
        %p143 = pneg %p78
      $region18: #{conv_stem_forward.5} parent=11 // pred_check_branch
        %145 = sbr.rel (%p143) target = $region20
      $region19: #{conv_stem_forward.5} parent=11 // pred_region
        _
      $region20: #{conv_stem_forward.5} parent=11 // pred_fallthru
        _
      // Predicated region
      $region21: #{conv_stem_forward.5} parent=11 // pred_check
        %p146 = pneg %p99
      $region22: #{conv_stem_forward.5} parent=11 // pred_check_branch
        %148 = sbr.rel (%p146) target = $region24
      $region23: #{conv_stem_forward.5} parent=11 // pred_region
        _
      $region24: #{conv_stem_forward.5} parent=11 // pred_fallthru
        _
    $region12: #{conv_stem_forward.5} parent=5 // pred_fallthru
      _
    %p149 = scmp.lt.s32.totalorder %s10, 2
    // Predicated region
    $region25: #{conv_stem_forward.5} parent=5 // pred_check
      %p150 = pneg %p149
    $region26: #{conv_stem_forward.5} parent=5 // pred_check_branch
      %152 = sbr.rel (%p150) target = $region28
    $region27: #{conv_stem_forward.5} parent=5 // pred_region
      // Predicated region
      $region29: #{conv_stem_forward.5} parent=27 // pred_check
        %p153 = pneg %p30
      $region30: #{conv_stem_forward.5} parent=27 // pred_check_branch
        %155 = sbr.rel (%p153) target = $region32
      $region31: #{conv_stem_forward.5} parent=27 // pred_region
        %p156 = scmp.lt.s32.totalorder %s10, 1
        %s157 = scalar_select %p156, %s10, 1
        %s158 = smul.addr %s157, 11
        %s159 = smul.addr %s158, 4
        %s160 = scalar_lea.vmem %s0, %s159
      $region32: #{conv_stem_forward.5} parent=27 // pred_fallthru
        _
    $region28: #{conv_stem_forward.5} parent=5 // pred_fallthru
      _
    %p161 = scmp.le.s32.totalorder 1, %s10
    %p162 = scmp.lt.s32.totalorder %s10, 3
    %p163 = pnand %p161, %p162
    %p164 = pneg %p163
    // Predicated region
    $region33: #{conv_stem_forward.5} parent=5 // pred_check
      _
    $region34: #{conv_stem_forward.5} parent=5 // pred_check_branch
      %166 = sbr.rel (%p163) target = $region36
    $region35: #{conv_stem_forward.5} parent=5 // pred_region
      %s167 = ssub.s32 %s10, 1
      %p168 = scmp.lt.s32.totalorder %s15, 1
      %s169 = scalar_select %p168, %s15, 1
      %s170 = smul.addr %s169, 11
      %s171 = smul.addr %s170, 4
      %s172 = scalar_lea.vmem %s0, %s171
      %p173 = pneg %p36
      %p174 = pneg %p33
      %p175 = pneg %p57
      %p176 = pneg %p54
      %p177 = pneg %p78
      %p178 = pneg %p75
      %p179 = pneg %p99
      %p180 = pneg %p96
      %p181 = pneg %p125
      %p182 = pneg %p122
      %p183 = scmp.lt.s32.totalorder %s15, 1
      %s184 = scalar_select %p183, %s15, 1
      %s185 = smul.addr %s184, 9
      %s186 = smul.addr %s185, 4
      %s187 = scalar_lea.vmem %s4, %s186
      %p188 = scmp.lt.s32.totalorder %s15, 1
      %s189 = scalar_select %p188, %s15, 1
      %s190 = smul.addr %s189, 11
      %s191 = smul.addr %s190, 4
      %s192 = scalar_lea.vmem %s0, %s191
      %p193 = scmp.lt.s32.totalorder %s15, 1
      %s194 = scalar_select %p193, %s15, 1
      %s195 = smul.addr %s194, 9
      %s196 = smul.addr %s195, 4
      %s197 = scalar_lea.vmem %s4, %s196
      %v199 = vld [vmem:[%s192] sm:$0xf]
      %v200 = vld [vmem:[%s192 + $0x4] sm:$0xf]
      %v201 = vld [vmem:[%s192 + $0x8] sm:$0xf]
      %v202 = vld [vmem:[%s192 + $0xc] sm:$0xf]
      %v203 = vld [vmem:[%s192 + $0x10] sm:$0xf]
      %v204 = vld [vmem:[%s192 + $0x14] sm:$0xf]
      %v205 = vld [vmem:[%s192 + $0x18] sm:$0xf]
      %v206 = vld [vmem:[%s192 + $0x1c] sm:$0xf]
      %v207 = vld [vmem:[%s192 + $0x20] sm:$0xf]
      %v208 = vld [vmem:[%s1] sm:$0xf]
      %v209 = vld [vmem:[%s1 + $0x4] sm:$0xf]
      %v210 = vld [vmem:[%s1 + $0x8] sm:$0xf]
      %v211 = vld [vmem:[%s1 + $0xc] sm:$0xf]
      %v212 = vld [vmem:[%s192 + $0x24] sm:$0x1]
      %s213 = scalar_lea.vmem %s1, 16
      %v214 = vld [vmem:[%s213] sm:$0xf]
      %v215 = vld [vmem:[%s213 + $0x4] sm:$0xf]
      %v216 = vld [vmem:[%s213 + $0x8] sm:$0xf]
      %v217 = vld [vmem:[%s213 + $0xc] sm:$0xf]
      %v228 = vunpack.c.l.b16 %v199
      %v229 = vunpack.c.l.b16 %v200
      %v230 = vunpack.c.l.b16 %v201
      %v231 = vunpack.c.l.b16 %v202
      %v232 = vunpack.c.l.b16 %v203
      %v233 = vunpack.c.l.b16 %v204
      %v234 = vunpack.c.l.b16 %v205
      %v235 = vunpack.c.l.b16 %v206
      %v236 = vunpack.c.l.b16 %v207
      %v237 = vunpack.c.l.b16 %v212
      %v238 = vpack.c.b16 %v229, %v228
      %v239 = vpack.c.b16 %v231, %v230
      %v240 = vpack.c.b16 %v233, %v232
      %v241 = vpack.c.b16 %v235, %v234
      %v242 = vpack.c.b16 %v237, %v236
      %vm243 = vsmask.f32 7424
      %v245 = vshrl.u32 %v238, 16
      %v247 = vshll.u32 %v238, 16
      %v249 = vrot.slane %v247, 1
      %v250 = vor.u32 %v245, %v249
      %v252 = vshll.u32 %v239, 16
      %v254 = vrot.slane %v252, 1
      %v255 = vsel %vm243, %v250, %v254
      %v256 = vshrl.u32 %v239, 16
      %v258 = vor.u32 %v256, %v254
      %v260 = vshll.u32 %v240, 16
      %v262 = vrot.slane %v260, 1
      %v263 = vsel %vm243, %v258, %v262
      %v264 = vshrl.u32 %v240, 16
      %v266 = vor.u32 %v264, %v262
      %v268 = vshll.u32 %v241, 16
      %v270 = vrot.slane %v268, 1
      %v271 = vsel %vm243, %v266, %v270
      %v272 = vshrl.u32 %v241, 16
      %v274 = vor.u32 %v272, %v270
      %v276 = vshll.u32 %v242, 16
      %v278 = vrot.slane %v276, 1
      %v279 = vsel %vm243, %v274, %v278
      %v280 = vshrl.u32 %v242, 16
      %v282 = vor.u32 %v280, %v278
      %v287 = vunpack.c.l.b16 %v214
      %v288 = vunpack.c.l.b16 %v215
      %v289 = vunpack.c.l.b16 %v216
      %v290 = vunpack.c.l.b16 %v217
      %v291 = vpack.c.b16 %v288, %v287
      %v292 = vpack.c.b16 %v290, %v289
      %vm295 = vcmask 261120
      %v297 = vsel %vm295, %v255, 0
      %v300 = vsel %vm295, %v263, 0
      %v303 = vsel %vm295, %v271, 0
      %v306 = vsel %vm295, %v279, 0
      %v309 = vsel %vm295, %v282, 0
      %311 = vmatprep.subr.bf16.mxu0 0
      %312 = vmatpush1.bf16.msra.mxu0 0
      %313 = vmatprep.subr.bf16.mxu0 0
      %314 = vmatpush1.bf16.msra.mxu0 0
      %315 = vmatprep.subr.bf16.mxu0 0
      %316 = vmatpush1.bf16.msra.mxu0 0
      %317 = vmatprep.subr.bf16.mxu0 0
      %318 = vmatpush1.bf16.msra.mxu0 0
      %319 = vmatprep.subr.bf16.mxu0 0
      %320 = vmatpush1.bf16.msra.mxu0 0
      %321 = vmatprep.subr.bf16.mxu0 0
      %322 = vmatpush1.bf16.msra.mxu0 0
      %323 = vmatprep.subr.bf16.mxu0 0
      %324 = vmatpush1.bf16.msra.mxu0 %v292
      %325 = vmatprep.subr.bf16.mxu0 0
      %326 = vmatpush1.bf16.msra.mxu0 %v291
      %327 = vmatprep.subr.bf16.mxu0 0
      %328 = vmatpush2.bf16.msra.mxu0 0
      %329 = vmatprep.subr.bf16.mxu0 0
      %330 = vmatpush2.bf16.msra.mxu0 0
      %331 = vmatprep.subr.bf16.mxu0 0
      %332 = vmatpush2.bf16.msra.mxu0 0
      %333 = vmatprep.subr.bf16.mxu0 0
      %334 = vmatpush2.bf16.msra.mxu0 0
      %335 = vmatprep.subr.bf16.mxu0 0
      %336 = vmatpush2.bf16.msra.mxu0 0
      %337 = vmatprep.subr.bf16.mxu0 0
      %338 = vmatpush2.bf16.msra.mxu0 0
      %339 = vmatprep.subr.bf16.mxu0 0
      %340 = vmatpush2.bf16.msra.mxu0 0
      %341 = vmatprep.subr.bf16.mxu0 0
      %342 = vmatpush2.bf16.msra.mxu0 0
      %343 = vmatprep.mubr.bf16.mxu0 0
      %344 = vmatmul.mubr.bf16.gmra.mxu0 %v297
      %v345 = vpop.f32.mrf.mxu0
      %v346 = vadd.f32 0.0, %v345
      %v347 = vpop.f32.mrf.mxu0
      %v348 = vpop.f32.mrf.mxu0
      %v349 = vadd.f32 0.0, %v348
      %v350 = vpop.f32.mrf.mxu0
      %351 = vmatprep.mubr.bf16.mxu0 0
      %352 = vmatmul.mubr.bf16.gmra.mxu0 %v300
      %v353 = vpop.f32.mrf.mxu0
      %v354 = vadd.f32 0.0, %v353
      %v355 = vpop.f32.mrf.mxu0
      %v356 = vpop.f32.mrf.mxu0
      %v357 = vadd.f32 0.0, %v356
      %v358 = vpop.f32.mrf.mxu0
      %359 = vmatprep.mubr.bf16.mxu0 0
      %360 = vmatmul.mubr.bf16.gmra.mxu0 %v303
      %v361 = vpop.f32.mrf.mxu0
      %v362 = vadd.f32 0.0, %v361
      %v363 = vpop.f32.mrf.mxu0
      %v364 = vpop.f32.mrf.mxu0
      %v365 = vadd.f32 0.0, %v364
      %v366 = vpop.f32.mrf.mxu0
      %367 = vmatprep.mubr.bf16.mxu0 0
      %368 = vmatmul.mubr.bf16.gmra.mxu0 %v306
      %v369 = vpop.f32.mrf.mxu0
      %v370 = vadd.f32 0.0, %v369
      %v371 = vpop.f32.mrf.mxu0
      %v372 = vpop.f32.mrf.mxu0
      %v373 = vadd.f32 0.0, %v372
      %v374 = vpop.f32.mrf.mxu0
      %375 = vmatprep.mubr.bf16.mxu0 0
      %376 = vmatmul.mubr.bf16.gmra.mxu0 %v309
      %v377 = vpop.f32.mrf.mxu0
      %v378 = vadd.f32 0.0, %v377
      %v379 = vpop.f32.mrf.mxu0
      %v380 = vpop.f32.mrf.mxu0
      %v381 = vpop.f32.mrf.mxu0
      %382 = vdwg.mxu0
      %v383 = vpack.c.b16 %v236, %v236
      %v388 = vunpack.c.l.b16 %v208
      %v389 = vunpack.c.l.b16 %v209
      %v390 = vunpack.c.l.b16 %v210
      %v391 = vunpack.c.l.b16 %v211
      %v392 = vpack.c.b16 %v389, %v388
      %v393 = vpack.c.b16 %v391, %v390
      %v396 = vsel %vm295, %v238, 0
      %v398 = vsel %vm295, %v239, 0
      %v400 = vsel %vm295, %v240, 0
      %v402 = vsel %vm295, %v241, 0
      %v405 = vsel %vm295, %v383, 0
      %407 = vmatprep.subr.bf16.mxu0 0
      %408 = vmatpush1.bf16.msra.mxu0 0
      %409 = vmatprep.subr.bf16.mxu0 0
      %410 = vmatpush1.bf16.msra.mxu0 0
      %411 = vmatprep.subr.bf16.mxu0 0
      %412 = vmatpush1.bf16.msra.mxu0 0
      %413 = vmatprep.subr.bf16.mxu0 0
      %414 = vmatpush1.bf16.msra.mxu0 0
      %415 = vmatprep.subr.bf16.mxu0 0
      %416 = vmatpush1.bf16.msra.mxu0 0
      %417 = vmatprep.subr.bf16.mxu0 0
      %418 = vmatpush1.bf16.msra.mxu0 0
      %419 = vmatprep.subr.bf16.mxu0 0
      %420 = vmatpush1.bf16.msra.mxu0 %v393
      %421 = vmatprep.subr.bf16.mxu0 0
      %422 = vmatpush1.bf16.msra.mxu0 %v392
      %423 = vmatprep.subr.bf16.mxu0 0
      %424 = vmatpush2.bf16.msra.mxu0 0
      %425 = vmatprep.subr.bf16.mxu0 0
      %426 = vmatpush2.bf16.msra.mxu0 0
      %427 = vmatprep.subr.bf16.mxu0 0
      %428 = vmatpush2.bf16.msra.mxu0 0
      %429 = vmatprep.subr.bf16.mxu0 0
      %430 = vmatpush2.bf16.msra.mxu0 0
      %431 = vmatprep.subr.bf16.mxu0 0
      %432 = vmatpush2.bf16.msra.mxu0 0
      %433 = vmatprep.subr.bf16.mxu0 0
      %434 = vmatpush2.bf16.msra.mxu0 0
      %435 = vmatprep.subr.bf16.mxu0 0
      %436 = vmatpush2.bf16.msra.mxu0 0
      %437 = vmatprep.subr.bf16.mxu0 0
      %438 = vmatpush2.bf16.msra.mxu0 0
      %439 = vmatprep.mubr.bf16.mxu0 0
      %440 = vmatmul.mubr.bf16.gmra.mxu0 %v396
      %v441 = vpop.f32.mrf.mxu0
      %v442 = vadd.f32 %v346, %v441
      %v443 = vpop.f32.mrf.mxu0
      %v444 = vpop.f32.mrf.mxu0
      %v445 = vadd.f32 %v349, %v444
      %v446 = vpop.f32.mrf.mxu0
      %447 = vmatprep.mubr.bf16.mxu0 0
      %448 = vmatmul.mubr.bf16.gmra.mxu0 %v398
      %v449 = vpop.f32.mrf.mxu0
      %v450 = vadd.f32 %v354, %v449
      %v451 = vpop.f32.mrf.mxu0
      %v452 = vpop.f32.mrf.mxu0
      %v453 = vadd.f32 %v357, %v452
      %v454 = vpop.f32.mrf.mxu0
      %455 = vmatprep.mubr.bf16.mxu0 0
      %456 = vmatmul.mubr.bf16.gmra.mxu0 %v400
      %v457 = vpop.f32.mrf.mxu0
      %v458 = vadd.f32 %v362, %v457
      %v459 = vpop.f32.mrf.mxu0
      %v460 = vpop.f32.mrf.mxu0
      %v461 = vadd.f32 %v365, %v460
      %v462 = vpop.f32.mrf.mxu0
      %463 = vmatprep.mubr.bf16.mxu0 0
      %464 = vmatmul.mubr.bf16.gmra.mxu0 %v402
      %v465 = vpop.f32.mrf.mxu0
      %v466 = vadd.f32 %v370, %v465
      %v467 = vpop.f32.mrf.mxu0
      %v468 = vpop.f32.mrf.mxu0
      %v469 = vadd.f32 %v373, %v468
      %v470 = vpop.f32.mrf.mxu0
      %471 = vmatprep.mubr.bf16.mxu0 0
      %472 = vmatmul.mubr.bf16.gmra.mxu0 %v405
      %v473 = vpop.f32.mrf.mxu0
      %v474 = vadd.f32 %v378, %v473
      %v475 = vpop.f32.mrf.mxu0
      %v476 = vpop.f32.mrf.mxu0
      %v477 = vpop.f32.mrf.mxu0
      %478 = vdwg.mxu0
      %v479 = vld [vmem:[%s192 + $0x4] sm:$0xf]
      %v480 = vld [vmem:[%s192 + $0x8] sm:$0xf]
      %v481 = vld [vmem:[%s192 + $0xc] sm:$0xf]
      %v482 = vld [vmem:[%s192 + $0x10] sm:$0xf]
      %v483 = vld [vmem:[%s192 + $0x14] sm:$0xf]
      %v484 = vld [vmem:[%s192 + $0x18] sm:$0xf]
      %v485 = vld [vmem:[%s192 + $0x1c] sm:$0xf]
      %v486 = vld [vmem:[%s192 + $0x20] sm:$0xf]
      %v487 = vld [vmem:[%s192 + $0x24] sm:$0xf]
      %v488 = vld [vmem:[%s192 + $0x28] sm:$0x1]
      %s489 = scalar_lea.vmem %s1, 32
      %v490 = vld [vmem:[%s489] sm:$0xf]
      %v491 = vld [vmem:[%s489 + $0x4] sm:$0xf]
      %v492 = vld [vmem:[%s489 + $0x8] sm:$0xf]
      %v493 = vld [vmem:[%s489 + $0xc] sm:$0xf]
      %v504 = vunpack.c.l.b16 %v479
      %v505 = vunpack.c.l.b16 %v480
      %v506 = vunpack.c.l.b16 %v481
      %v507 = vunpack.c.l.b16 %v482
      %v508 = vunpack.c.l.b16 %v483
      %v509 = vunpack.c.l.b16 %v484
      %v510 = vunpack.c.l.b16 %v485
      %v511 = vunpack.c.l.b16 %v486
      %v512 = vunpack.c.l.b16 %v487
      %v513 = vunpack.c.l.b16 %v488
      %v514 = vpack.c.b16 %v505, %v504
      %v515 = vpack.c.b16 %v507, %v506
      %v516 = vpack.c.b16 %v509, %v508
      %v517 = vpack.c.b16 %v511, %v510
      %v518 = vpack.c.b16 %v513, %v512
      %v520 = vshrl.u32 %v514, 16
      %v522 = vshll.u32 %v514, 16
      %v524 = vrot.slane %v522, 1
      %v525 = vor.u32 %v520, %v524
      %v527 = vshll.u32 %v515, 16
      %v529 = vrot.slane %v527, 1
      %v530 = vsel %vm243, %v525, %v529
      %v531 = vshrl.u32 %v515, 16
      %v533 = vor.u32 %v531, %v529
      %v535 = vshll.u32 %v516, 16
      %v537 = vrot.slane %v535, 1
      %v538 = vsel %vm243, %v533, %v537
      %v539 = vshrl.u32 %v516, 16
      %v541 = vor.u32 %v539, %v537
      %v543 = vshll.u32 %v517, 16
      %v545 = vrot.slane %v543, 1
      %v546 = vsel %vm243, %v541, %v545
      %v547 = vshrl.u32 %v517, 16
      %v549 = vor.u32 %v547, %v545
      %v551 = vshll.u32 %v518, 16
      %v553 = vrot.slane %v551, 1
      %v554 = vsel %vm243, %v549, %v553
      %v555 = vshrl.u32 %v518, 16
      %v557 = vor.u32 %v555, %v553
      %v562 = vunpack.c.l.b16 %v490
      %v563 = vunpack.c.l.b16 %v491
      %v564 = vunpack.c.l.b16 %v492
      %v565 = vunpack.c.l.b16 %v493
      %v566 = vpack.c.b16 %v563, %v562
      %v567 = vpack.c.b16 %v565, %v564
      %v571 = vsel %vm295, %v530, 0
      %v574 = vsel %vm295, %v538, 0
      %v577 = vsel %vm295, %v546, 0
      %v580 = vsel %vm295, %v554, 0
      %v583 = vsel %vm295, %v557, 0
      %585 = vmatprep.subr.bf16.mxu0 0
      %586 = vmatpush1.bf16.msra.mxu0 0
      %587 = vmatprep.subr.bf16.mxu0 0
      %588 = vmatpush1.bf16.msra.mxu0 0
      %589 = vmatprep.subr.bf16.mxu0 0
      %590 = vmatpush1.bf16.msra.mxu0 0
      %591 = vmatprep.subr.bf16.mxu0 0
      %592 = vmatpush1.bf16.msra.mxu0 0
      %593 = vmatprep.subr.bf16.mxu0 0
      %594 = vmatpush1.bf16.msra.mxu0 0
      %595 = vmatprep.subr.bf16.mxu0 0
      %596 = vmatpush1.bf16.msra.mxu0 0
      %597 = vmatprep.subr.bf16.mxu0 0
      %598 = vmatpush1.bf16.msra.mxu0 %v567
      %599 = vmatprep.subr.bf16.mxu0 0
      %600 = vmatpush1.bf16.msra.mxu0 %v566
      %601 = vmatprep.subr.bf16.mxu0 0
      %602 = vmatpush2.bf16.msra.mxu0 0
      %603 = vmatprep.subr.bf16.mxu0 0
      %604 = vmatpush2.bf16.msra.mxu0 0
      %605 = vmatprep.subr.bf16.mxu0 0
      %606 = vmatpush2.bf16.msra.mxu0 0
      %607 = vmatprep.subr.bf16.mxu0 0
      %608 = vmatpush2.bf16.msra.mxu0 0
      %609 = vmatprep.subr.bf16.mxu0 0
      %610 = vmatpush2.bf16.msra.mxu0 0
      %611 = vmatprep.subr.bf16.mxu0 0
      %612 = vmatpush2.bf16.msra.mxu0 0
      %613 = vmatprep.subr.bf16.mxu0 0
      %614 = vmatpush2.bf16.msra.mxu0 0
      %615 = vmatprep.subr.bf16.mxu0 0
      %616 = vmatpush2.bf16.msra.mxu0 0
      %617 = vmatprep.mubr.bf16.mxu0 0
      %618 = vmatmul.mubr.bf16.gmra.mxu0 %v571
      %v619 = vpop.f32.mrf.mxu0
      %v620 = vadd.f32 0.0, %v619
      %v621 = vpop.f32.mrf.mxu0
      %v622 = vpop.f32.mrf.mxu0
      %v623 = vadd.f32 0.0, %v622
      %v624 = vpop.f32.mrf.mxu0
      %625 = vmatprep.mubr.bf16.mxu0 0
      %626 = vmatmul.mubr.bf16.gmra.mxu0 %v574
      %v627 = vpop.f32.mrf.mxu0
      %v628 = vadd.f32 0.0, %v627
      %v629 = vpop.f32.mrf.mxu0
      %v630 = vpop.f32.mrf.mxu0
      %v631 = vadd.f32 0.0, %v630
      %v632 = vpop.f32.mrf.mxu0
      %633 = vmatprep.mubr.bf16.mxu0 0
      %634 = vmatmul.mubr.bf16.gmra.mxu0 %v577
      %v635 = vpop.f32.mrf.mxu0
      %v636 = vadd.f32 0.0, %v635
      %v637 = vpop.f32.mrf.mxu0
      %v638 = vpop.f32.mrf.mxu0
      %v639 = vadd.f32 0.0, %v638
      %v640 = vpop.f32.mrf.mxu0
      %641 = vmatprep.mubr.bf16.mxu0 0
      %642 = vmatmul.mubr.bf16.gmra.mxu0 %v580
      %v643 = vpop.f32.mrf.mxu0
      %v644 = vadd.f32 0.0, %v643
      %v645 = vpop.f32.mrf.mxu0
      %v646 = vpop.f32.mrf.mxu0
      %v647 = vadd.f32 0.0, %v646
      %v648 = vpop.f32.mrf.mxu0
      %649 = vmatprep.mubr.bf16.mxu0 0
      %650 = vmatmul.mubr.bf16.gmra.mxu0 %v583
      %v651 = vpop.f32.mrf.mxu0
      %v652 = vadd.f32 0.0, %v651
      %v653 = vpop.f32.mrf.mxu0
      %v654 = vpop.f32.mrf.mxu0
      %v655 = vpop.f32.mrf.mxu0
      %656 = vdwg.mxu0
      %v657 = vadd.f32 %v442, %v620
      %v658 = vadd.f32 %v445, %v623
      %v659 = vadd.f32 %v450, %v628
      %v660 = vadd.f32 %v453, %v631
      %v661 = vadd.f32 %v458, %v636
      %v662 = vadd.f32 %v461, %v639
      %v663 = vadd.f32 %v466, %v644
      %v664 = vadd.f32 %v469, %v647
      %v665 = vadd.f32 %v474, %v652
      %v666 = vld [vmem:[%s192 + $0x4] sm:$0xe]
      %s667 = scalar_lea.vmem %s1, 48
      %v668 = vld [vmem:[%s667] sm:$0xf]
      %v669 = vld [vmem:[%s667 + $0x4] sm:$0xf]
      %v670 = vld [vmem:[%s667 + $0x8] sm:$0xf]
      %v671 = vld [vmem:[%s667 + $0xc] sm:$0xf]
      %v673 = vunpack.c.l.b16 %v666
      %v674 = vpack.c.b16 %v505, %v673
      %vm675 = vcmask 1046528
      %v676 = vrot.slane %v674, 1
      %v677 = vrot.slane %v515, 1
      %v678 = vsel %vm675, %v676, %v677
      %v679 = vrot.slane %v516, 1
      %v680 = vsel %vm675, %v677, %v679
      %v681 = vrot.slane %v517, 1
      %v682 = vsel %vm675, %v679, %v681
      %v683 = vrot.slane %v518, 1
      %v684 = vsel %vm675, %v681, %v683
      %v689 = vunpack.c.l.b16 %v668
      %v690 = vunpack.c.l.b16 %v669
      %v691 = vunpack.c.l.b16 %v670
      %v692 = vunpack.c.l.b16 %v671
      %v693 = vpack.c.b16 %v690, %v689
      %v694 = vpack.c.b16 %v692, %v691
      %v698 = vsel %vm295, %v678, 0
      %v701 = vsel %vm295, %v680, 0
      %v704 = vsel %vm295, %v682, 0
      %v707 = vsel %vm295, %v684, 0
      %v710 = vsel %vm295, %v683, 0
      %712 = vmatprep.subr.bf16.mxu0 0
      %713 = vmatpush1.bf16.msra.mxu0 0
      %714 = vmatprep.subr.bf16.mxu0 0
      %715 = vmatpush1.bf16.msra.mxu0 0
      %716 = vmatprep.subr.bf16.mxu0 0
      %717 = vmatpush1.bf16.msra.mxu0 0
      %718 = vmatprep.subr.bf16.mxu0 0
      %719 = vmatpush1.bf16.msra.mxu0 0
      %720 = vmatprep.subr.bf16.mxu0 0
      %721 = vmatpush1.bf16.msra.mxu0 0
      %722 = vmatprep.subr.bf16.mxu0 0
      %723 = vmatpush1.bf16.msra.mxu0 0
      %724 = vmatprep.subr.bf16.mxu0 0
      %725 = vmatpush1.bf16.msra.mxu0 %v694
      %726 = vmatprep.subr.bf16.mxu0 0
      %727 = vmatpush1.bf16.msra.mxu0 %v693
      %728 = vmatprep.subr.bf16.mxu0 0
      %729 = vmatpush2.bf16.msra.mxu0 0
      %730 = vmatprep.subr.bf16.mxu0 0
      %731 = vmatpush2.bf16.msra.mxu0 0
      %732 = vmatprep.subr.bf16.mxu0 0
      %733 = vmatpush2.bf16.msra.mxu0 0
      %734 = vmatprep.subr.bf16.mxu0 0
      %735 = vmatpush2.bf16.msra.mxu0 0
      %736 = vmatprep.subr.bf16.mxu0 0
      %737 = vmatpush2.bf16.msra.mxu0 0
      %738 = vmatprep.subr.bf16.mxu0 0
      %739 = vmatpush2.bf16.msra.mxu0 0
      %740 = vmatprep.subr.bf16.mxu0 0
      %741 = vmatpush2.bf16.msra.mxu0 0
      %742 = vmatprep.subr.bf16.mxu0 0
      %743 = vmatpush2.bf16.msra.mxu0 0
      %744 = vmatprep.mubr.bf16.mxu0 0
      %745 = vmatmul.mubr.bf16.gmra.mxu0 %v698
      %v746 = vpop.f32.mrf.mxu0
      %v747 = vadd.f32 0.0, %v746
      %v748 = vpop.f32.mrf.mxu0
      %v749 = vpop.f32.mrf.mxu0
      %v750 = vadd.f32 0.0, %v749
      %v751 = vpop.f32.mrf.mxu0
      %752 = vmatprep.mubr.bf16.mxu0 0
      %753 = vmatmul.mubr.bf16.gmra.mxu0 %v701
      %v754 = vpop.f32.mrf.mxu0
      %v755 = vadd.f32 0.0, %v754
      %v756 = vpop.f32.mrf.mxu0
      %v757 = vpop.f32.mrf.mxu0
      %v758 = vadd.f32 0.0, %v757
      %v759 = vpop.f32.mrf.mxu0
      %760 = vmatprep.mubr.bf16.mxu0 0
      %761 = vmatmul.mubr.bf16.gmra.mxu0 %v704
      %v762 = vpop.f32.mrf.mxu0
      %v763 = vadd.f32 0.0, %v762
      %v764 = vpop.f32.mrf.mxu0
      %v765 = vpop.f32.mrf.mxu0
      %v766 = vadd.f32 0.0, %v765
      %v767 = vpop.f32.mrf.mxu0
      %768 = vmatprep.mubr.bf16.mxu0 0
      %769 = vmatmul.mubr.bf16.gmra.mxu0 %v707
      %v770 = vpop.f32.mrf.mxu0
      %v771 = vadd.f32 0.0, %v770
      %v772 = vpop.f32.mrf.mxu0
      %v773 = vpop.f32.mrf.mxu0
      %v774 = vadd.f32 0.0, %v773
      %v775 = vpop.f32.mrf.mxu0
      %776 = vmatprep.mubr.bf16.mxu0 0
      %777 = vmatmul.mubr.bf16.gmra.mxu0 %v710
      %v778 = vpop.f32.mrf.mxu0
      %v779 = vadd.f32 0.0, %v778
      %v780 = vpop.f32.mrf.mxu0
      %v781 = vpop.f32.mrf.mxu0
      %v782 = vpop.f32.mrf.mxu0
      %783 = vdwg.mxu0
      %v784 = vadd.f32 %v657, %v747
      %v785 = vadd.f32 %v658, %v750
      %v786 = vadd.f32 %v659, %v755
      %v787 = vadd.f32 %v660, %v758
      %v788 = vadd.f32 %v661, %v763
      %v789 = vadd.f32 %v662, %v766
      %v790 = vadd.f32 %v663, %v771
      %v791 = vadd.f32 %v664, %v774
      %v792 = vadd.f32 %v665, %v779
      %v793 = vld [vmem:[%s2] sm:$0x1]
      %v795 = vlaneseq
      %v796 = vshrl.u32 %v795, 7
      %v797 = vsub.s32 0, %v796
      %v798 = vrot.slane %v793, %v797
      %v800 = vmul.f32 %v784, %v798
      %v801 = vmul.f32 %v785, %v798
      %v802 = vmul.f32 %v786, %v798
      %v803 = vmul.f32 %v787, %v798
      %v804 = vmul.f32 %v788, %v798
      %v805 = vmul.f32 %v789, %v798
      %v806 = vmul.f32 %v790, %v798
      %v807 = vmul.f32 %v791, %v798
      %v808 = vmul.f32 %v792, %v798
      %v809 = vld [vmem:[%s3] sm:$0x1]
      %v811 = vlaneseq
      %v812 = vshrl.u32 %v811, 7
      %v813 = vsub.s32 0, %v812
      %v814 = vrot.slane %v809, %v813
      %v816 = vadd.f32 %v800, %v814
      %v817 = vadd.f32 %v801, %v814
      %v818 = vadd.f32 %v802, %v814
      %v819 = vadd.f32 %v803, %v814
      %v820 = vadd.f32 %v804, %v814
      %v821 = vadd.f32 %v805, %v814
      %v822 = vadd.f32 %v806, %v814
      %v823 = vadd.f32 %v807, %v814
      %v824 = vadd.f32 %v808, %v814
      %v825 = vmax.f32 %v816, 0.0
      %v826 = vmax.f32 %v817, 0.0
      %v827 = vmax.f32 %v818, 0.0
      %v828 = vmax.f32 %v819, 0.0
      %v829 = vmax.f32 %v820, 0.0
      %v830 = vmax.f32 %v821, 0.0
      %v831 = vmax.f32 %v822, 0.0
      %v832 = vmax.f32 %v823, 0.0
      %v833 = vmax.f32 %v824, 0.0
      %v834 = vpack.c.bf16 %v826, %v825
      %v835 = vpack.c.bf16 %v828, %v827
      %v836 = vpack.c.bf16 %v830, %v829
      %v837 = vpack.c.bf16 %v832, %v831
      %v838 = vpack.c.bf16 %v833, %v833
      %v844 = vunpack.c.l.b16 %v834
      %v845 = vunpack.c.h.b16 %v834
      %v846 = vunpack.c.l.b16 %v835
      %v847 = vunpack.c.h.b16 %v835
      %v848 = vunpack.c.l.b16 %v836
      %v849 = vunpack.c.h.b16 %v836
      %v850 = vunpack.c.l.b16 %v837
      %v851 = vunpack.c.h.b16 %v837
      %v852 = vunpack.c.l.b16 %v838
      %v853 = vpack.c.b16 %v844, %v844
      %v854 = vpack.c.b16 %v845, %v845
      %v855 = vpack.c.b16 %v846, %v846
      %v856 = vpack.c.b16 %v847, %v847
      %v857 = vpack.c.b16 %v848, %v848
      %v858 = vpack.c.b16 %v849, %v849
      %v859 = vpack.c.b16 %v850, %v850
      %v860 = vpack.c.b16 %v851, %v851
      %v861 = vpack.c.b16 %v852, %v852
      %vm871 = vcmask 125952
      %872 = vst.msk [vmem:[%s197] sm:$0xf] %vm871, %v853
      %873 = vst.msk [vmem:[%s197 + $0x4] sm:$0xf] %vm871, %v854
      %874 = vst.msk [vmem:[%s197 + $0x8] sm:$0xf] %vm871, %v855
      %875 = vst.msk [vmem:[%s197 + $0xc] sm:$0xf] %vm871, %v856
      %876 = vst.msk [vmem:[%s197 + $0x10] sm:$0xf] %vm871, %v857
      %877 = vst.msk [vmem:[%s197 + $0x14] sm:$0xf] %vm871, %v858
      %878 = vst.msk [vmem:[%s197 + $0x18] sm:$0xf] %vm871, %v859
      %879 = vst.msk [vmem:[%s197 + $0x1c] sm:$0xf] %vm871, %v860
      %880 = vst.msk [vmem:[%s197 + $0x20] sm:$0xf] %vm871, %v861
      %p881 = scmp.lt.s32.totalorder %s15, 1
      %s882 = scalar_select %p881, %s15, 1
      %s883 = smul.addr %s882, 9
      %s884 = smul.addr %s883, 4
      %s885 = scalar_lea.vmem %s4, %s884
      // Predicated region
      $region37: #{conv_stem_forward.5} parent=35 // pred_check
        %p886 = pneg %p122
      $region38: #{conv_stem_forward.5} parent=35 // pred_check_branch
        %888 = sbr.rel (%p886) target = $region40
      $region39: #{conv_stem_forward.5} parent=35 // pred_region
        _
      $region40: #{conv_stem_forward.5} parent=35 // pred_fallthru
        _
    $region36: #{conv_stem_forward.5} parent=5 // pred_fallthru
      _
    %p889 = scmp.le.s32.totalorder 2, %s10
    // Predicated region
    $region41: #{conv_stem_forward.5} parent=5 // pred_check
      %p890 = pneg %p889
    $region42: #{conv_stem_forward.5} parent=5 // pred_check_branch
      %892 = sbr.rel (%p890) target = $region44
    $region43: #{conv_stem_forward.5} parent=5 // pred_region
      %s893 = ssub.s32 %s10, 2
      // Predicated region
      $region45: #{conv_stem_forward.5} parent=43 // pred_check
        %p894 = pneg %p128
      $region46: #{conv_stem_forward.5} parent=43 // pred_check_branch
        %896 = sbr.rel (%p894) target = $region48
      $region47: #{conv_stem_forward.5} parent=43 // pred_region
        %p897 = scmp.lt.s32.totalorder %s16, 1
        %s898 = scalar_select %p897, %s16, 1
        %s899 = smul.addr %s898, 9
        %s900 = smul.addr %s899, 4
        %s901 = scalar_lea.vmem %s4, %s900
      $region48: #{conv_stem_forward.5} parent=43 // pred_fallthru
        _
    $region44: #{conv_stem_forward.5} parent=5 // pred_fallthru
      _
  $region6: #{conv_stem_forward.5} parent=0 // loop_footer
    %s14 = sadd.s32 1, %s10
  $region7: #{conv_stem_forward.5} parent=0 // loop_footer_branch
    %9 = sbr.rel target = $region3
  $region8: #{conv_stem_forward.5} parent=0 // loop_exit
    _

// kernel: conv_stem_forward.6
$region0: #{conv_stem_forward.6}
  #allocation0 [shape = 'u32[]', space=smem, size = 0x4, offset = 0x4, fixed_abs, tag = 'smem constant byte address 0x4 - core index']
  #allocation1 [shape = 'u32[144,128]{1,0:T(1,128)}', space=vmem, size = 0x12000, scoped, tag = 'internal scratch']
  %s0 = inlined_call_operand.vmem [shape: bf16[2,32,64], index: 0, kind: input, shape index: {}]
  %s1 = inlined_call_operand.vmem [shape: bf16[4,64,32], index: 1, kind: input, shape index: {}]
  %s2 = inlined_call_operand.vmem [shape: f32[1,32], index: 2, kind: input, shape index: {}]
  %s3 = inlined_call_operand.vmem [shape: f32[1,32], index: 3, kind: input, shape index: {}]
  %s4 = inlined_call_operand.vmem [shape: bf16[2,24,32], index: 4, kind: output, shape index: {}]
  %s5 = sld [smem:[#allocation0]]
  $region49: #{conv_stem_forward.6} parent=0
    _
  %s7 = ssub.s32 1, %s5
  %s8 = scalar_select 0, %s7, %s5
  loop: start=0, step=1, limit=4
  $region2: #{conv_stem_forward.6} parent=0 // loop_pre_header
    _
  $region3: #{conv_stem_forward.6} parent=0 // loop_header
    %s10 = sphi 0, %s14
    %p11 = scmp.ge.s32.totalorder %s10, 4
    %s20 = sphi 0, %s22
    %s23 = sphi 0, %s20
    %s24 = sphi 0, %s23
    %s40 = sphi 0, %s24
    %s44 = sphi 0, %s44
    %s46 = sphi 0, %s44
    %s47 = sphi 0, %s46
    %s61 = sphi 0, %s47
    %s65 = sphi 0, %s65
    %s67 = sphi 0, %s65
    %s68 = sphi 0, %s67
    %s82 = sphi 0, %s68
    %s86 = sphi 0, %s86
    %s88 = sphi 0, %s86
    %s89 = sphi 0, %s88
    %s103 = sphi 0, %s89
    %s109 = sphi 0, %s111
    %s112 = sphi 0, %s109
    %s113 = sphi 0, %s112
    %s129 = sphi 0, %s113
  $region4: #{conv_stem_forward.6} parent=0 // loop_header_branch
    %13 = sbr.rel (%p11) target = $region8
  $region5: #{conv_stem_forward.6} parent=0 // loop_body
    %s15 = ssub.s32 %s10, 1
    %s16 = ssub.s32 %s10, 2
    %s17 = sadd.s32 %s10, 1
    %s18 = ssub.s32 %s10, %s17
    %p19 = scmp.eq.s32.totalorder %s18, 0
    %s21 = sadd.s32 %s20, 1
    %s22 = scalar_select %p19, %s20, %s21
    %p25 = pneg %p19
    %p26 = scmp.eq.s32.totalorder %s10, 1
    %p27 = por %p25, %p26
    %p28 = scmp.ne.s32.totalorder %s20, %s23
    %p29 = scmp.eq.s32.totalorder %s10, 0
    %p30 = por %p28, %p29
    %p31 = scmp.ne.s32.totalorder %s20, %s23
    %p32 = scmp.eq.s32.totalorder %s15, 1
    %p33 = por %p31, %p32
    %p34 = scmp.ne.s32.totalorder %s23, %s24
    %p35 = scmp.eq.s32.totalorder %s15, 0
    %p36 = por %p34, %p35
    %p37 = scmp.ne.s32.totalorder %s23, %s24
    %p38 = scmp.eq.s32.totalorder %s16, 1
    %p39 = por %p37, %p38
    %p41 = scmp.ne.s32.totalorder %s24, %s40
    %p42 = scmp.eq.s32.totalorder %s16, 0
    %p43 = por %p41, %p42
    %s45 = sadd.s32 %s44, 1
    %p48 = scmp.eq.s32.totalorder %s10, 1
    %p49 = scmp.ne.s32.totalorder %s44, %s46
    %p50 = scmp.eq.s32.totalorder %s10, 0
    %p51 = por %p49, %p50
    %p52 = scmp.ne.s32.totalorder %s44, %s46
    %p53 = scmp.eq.s32.totalorder %s15, 1
    %p54 = por %p52, %p53
    %p55 = scmp.ne.s32.totalorder %s46, %s47
    %p56 = scmp.eq.s32.totalorder %s15, 0
    %p57 = por %p55, %p56
    %p58 = scmp.ne.s32.totalorder %s46, %s47
    %p59 = scmp.eq.s32.totalorder %s16, 1
    %p60 = por %p58, %p59
    %p62 = scmp.ne.s32.totalorder %s47, %s61
    %p63 = scmp.eq.s32.totalorder %s16, 0
    %p64 = por %p62, %p63
    %s66 = sadd.s32 %s65, 1
    %p69 = scmp.eq.s32.totalorder %s10, 1
    %p70 = scmp.ne.s32.totalorder %s65, %s67
    %p71 = scmp.eq.s32.totalorder %s10, 0
    %p72 = por %p70, %p71
    %p73 = scmp.ne.s32.totalorder %s65, %s67
    %p74 = scmp.eq.s32.totalorder %s15, 1
    %p75 = por %p73, %p74
    %p76 = scmp.ne.s32.totalorder %s67, %s68
    %p77 = scmp.eq.s32.totalorder %s15, 0
    %p78 = por %p76, %p77
    %p79 = scmp.ne.s32.totalorder %s67, %s68
    %p80 = scmp.eq.s32.totalorder %s16, 1
    %p81 = por %p79, %p80
    %p83 = scmp.ne.s32.totalorder %s68, %s82
    %p84 = scmp.eq.s32.totalorder %s16, 0
    %p85 = por %p83, %p84
    %s87 = sadd.s32 %s86, 1
    %p90 = scmp.eq.s32.totalorder %s10, 1
    %p91 = scmp.ne.s32.totalorder %s86, %s88
    %p92 = scmp.eq.s32.totalorder %s10, 0
    %p93 = por %p91, %p92
    %p94 = scmp.ne.s32.totalorder %s86, %s88
    %p95 = scmp.eq.s32.totalorder %s15, 1
    %p96 = por %p94, %p95
    %p97 = scmp.ne.s32.totalorder %s88, %s89
    %p98 = scmp.eq.s32.totalorder %s15, 0
    %p99 = por %p97, %p98
    %p100 = scmp.ne.s32.totalorder %s88, %s89
    %p101 = scmp.eq.s32.totalorder %s16, 1
    %p102 = por %p100, %p101
    %p104 = scmp.ne.s32.totalorder %s89, %s103
    %p105 = scmp.eq.s32.totalorder %s16, 0
    %p106 = por %p104, %p105
    %s107 = ssub.s32 %s10, %s17
    %p108 = scmp.eq.s32.totalorder %s107, 0
    %s110 = sadd.s32 %s109, 1
    %s111 = scalar_select %p108, %s109, %s110
    %p114 = pneg %p108
    %p115 = scmp.eq.s32.totalorder %s10, 1
    %p116 = por %p114, %p115
    %p117 = scmp.ne.s32.totalorder %s109, %s112
    %p118 = scmp.eq.s32.totalorder %s10, 0
    %p119 = por %p117, %p118
    %p120 = scmp.ne.s32.totalorder %s109, %s112
    %p121 = scmp.eq.s32.totalorder %s15, 1
    %p122 = por %p120, %p121
    %p123 = scmp.ne.s32.totalorder %s112, %s113
    %p124 = scmp.eq.s32.totalorder %s15, 0
    %p125 = por %p123, %p124
    %p126 = scmp.ne.s32.totalorder %s112, %s113
    %p127 = scmp.eq.s32.totalorder %s16, 1
    %p128 = por %p126, %p127
    %p130 = scmp.ne.s32.totalorder %s113, %s129
    %p131 = scmp.eq.s32.totalorder %s16, 0
    %p132 = por %p130, %p131
    %p133 = scmp.le.s32.totalorder 1, %s10
    %p134 = scmp.lt.s32.totalorder %s10, 3
    %p135 = pnand %p133, %p134
    %p136 = pneg %p135
    // Predicated region
    $region9: #{conv_stem_forward.6} parent=5 // pred_check
      _
    $region10: #{conv_stem_forward.6} parent=5 // pred_check_branch
      %138 = sbr.rel (%p135) target = $region12
    $region11: #{conv_stem_forward.6} parent=5 // pred_region
      %s139 = ssub.s32 %s10, 1
      // Predicated region
      $region13: #{conv_stem_forward.6} parent=11 // pred_check
        %p140 = pneg %p57
      $region14: #{conv_stem_forward.6} parent=11 // pred_check_branch
        %142 = sbr.rel (%p140) target = $region16
      $region15: #{conv_stem_forward.6} parent=11 // pred_region
        _
      $region16: #{conv_stem_forward.6} parent=11 // pred_fallthru
        _
      // Predicated region
      $region17: #{conv_stem_forward.6} parent=11 // pred_check
        %p143 = pneg %p78
      $region18: #{conv_stem_forward.6} parent=11 // pred_check_branch
        %145 = sbr.rel (%p143) target = $region20
      $region19: #{conv_stem_forward.6} parent=11 // pred_region
        _
      $region20: #{conv_stem_forward.6} parent=11 // pred_fallthru
        _
      // Predicated region
      $region21: #{conv_stem_forward.6} parent=11 // pred_check
        %p146 = pneg %p99
      $region22: #{conv_stem_forward.6} parent=11 // pred_check_branch
        %148 = sbr.rel (%p146) target = $region24
      $region23: #{conv_stem_forward.6} parent=11 // pred_region
        _
      $region24: #{conv_stem_forward.6} parent=11 // pred_fallthru
        _
    $region12: #{conv_stem_forward.6} parent=5 // pred_fallthru
      _
    %p149 = scmp.lt.s32.totalorder %s10, 2
    // Predicated region
    $region25: #{conv_stem_forward.6} parent=5 // pred_check
      %p150 = pneg %p149
    $region26: #{conv_stem_forward.6} parent=5 // pred_check_branch
      %152 = sbr.rel (%p150) target = $region28
    $region27: #{conv_stem_forward.6} parent=5 // pred_region
      // Predicated region
      $region29: #{conv_stem_forward.6} parent=27 // pred_check
        %p153 = pneg %p30
      $region30: #{conv_stem_forward.6} parent=27 // pred_check_branch
        %155 = sbr.rel (%p153) target = $region32
      $region31: #{conv_stem_forward.6} parent=27 // pred_region
        %p156 = scmp.lt.s32.totalorder %s10, 1
        %s157 = scalar_select %p156, %s10, 1
        %s158 = smul.addr %s157, 4
        %s159 = smul.addr %s158, 4
        %s160 = scalar_lea.vmem %s0, %s159
      $region32: #{conv_stem_forward.6} parent=27 // pred_fallthru
        _
    $region28: #{conv_stem_forward.6} parent=5 // pred_fallthru
      _
    %p161 = scmp.le.s32.totalorder 1, %s10
    %p162 = scmp.lt.s32.totalorder %s10, 3
    %p163 = pnand %p161, %p162
    %p164 = pneg %p163
    // Predicated region
    $region33: #{conv_stem_forward.6} parent=5 // pred_check
      _
    $region34: #{conv_stem_forward.6} parent=5 // pred_check_branch
      %166 = sbr.rel (%p163) target = $region36
    $region35: #{conv_stem_forward.6} parent=5 // pred_region
      %s167 = ssub.s32 %s10, 1
      %p168 = scmp.lt.s32.totalorder %s15, 1
      %s169 = scalar_select %p168, %s15, 1
      %s170 = smul.addr %s169, 4
      %s171 = smul.addr %s170, 4
      %s172 = scalar_lea.vmem %s0, %s171
      %p173 = pneg %p36
      %p174 = pneg %p33
      %p175 = pneg %p57
      %p176 = pneg %p54
      %p177 = pneg %p78
      %p178 = pneg %p75
      %p179 = pneg %p99
      %p180 = pneg %p96
      %p181 = pneg %p125
      %p182 = pneg %p122
      %p183 = scmp.lt.s32.totalorder %s15, 1
      %s184 = scalar_select %p183, %s15, 1
      %s185 = smul.addr %s184, 3
      %s186 = smul.addr %s185, 4
      %s187 = scalar_lea.vmem %s4, %s186
      %p188 = scmp.lt.s32.totalorder %s15, 1
      %s189 = scalar_select %p188, %s15, 1
      %s190 = smul.addr %s189, 4
      %s191 = smul.addr %s190, 4
      %s192 = scalar_lea.vmem %s0, %s191
      %p193 = scmp.lt.s32.totalorder %s15, 1
      %s194 = scalar_select %p193, %s15, 1
      %s195 = smul.addr %s194, 3
      %s196 = smul.addr %s195, 4
      %s197 = scalar_lea.vmem %s4, %s196
      %v199 = vld [vmem:[%s192] sm:$0xf]
      %v200 = vld [vmem:[%s192 + $0x4] sm:$0xf]
      %v201 = vld [vmem:[%s192 + $0x8] sm:$0xf]
      %v202 = vld [vmem:[%s1] sm:$0xf]
      %v203 = vld [vmem:[%s1 + $0x4] sm:$0xf]
      %v204 = vld [vmem:[%s1 + $0x8] sm:$0xf]
      %v205 = vld [vmem:[%s1 + $0xc] sm:$0xf]
      %v206 = vld [vmem:[%s1 + $0x10] sm:$0xf]
      %v207 = vld [vmem:[%s1 + $0x14] sm:$0xf]
      %v208 = vld [vmem:[%s1 + $0x18] sm:$0xf]
      %v209 = vld [vmem:[%s1 + $0x1c] sm:$0xf]
      %v210 = vld [vmem:[%s192 + $0xc] sm:$0x1]
      %s211 = scalar_lea.vmem %s1, 32
      %v212 = vld [vmem:[%s211] sm:$0xf]
      %v213 = vld [vmem:[%s211 + $0x4] sm:$0xf]
      %v214 = vld [vmem:[%s211 + $0x8] sm:$0xf]
      %v215 = vld [vmem:[%s211 + $0xc] sm:$0xf]
      %v216 = vld [vmem:[%s211 + $0x10] sm:$0xf]
      %v217 = vld [vmem:[%s211 + $0x14] sm:$0xf]
      %v218 = vld [vmem:[%s211 + $0x18] sm:$0xf]
      %v219 = vld [vmem:[%s211 + $0x1c] sm:$0xf]
      %v224 = vunpack.c.l.b16 %v199
      %v225 = vunpack.c.l.b16 %v200
      %v226 = vunpack.c.l.b16 %v201
      %v227 = vunpack.c.l.b16 %v210
      %v228 = vpack.c.b16 %v225, %v224
      %v229 = vpack.c.b16 %v227, %v226
      %vm230 = vsmask.f32 7424
      %v232 = vshrl.u32 %v228, 16
      %v234 = vshll.u32 %v228, 16
      %v236 = vrot.slane %v234, 1
      %v237 = vor.u32 %v232, %v236
      %v239 = vshll.u32 %v229, 16
      %v241 = vrot.slane %v239, 1
      %v242 = vsel %vm230, %v237, %v241
      %v243 = vshrl.u32 %v229, 16
      %v245 = vor.u32 %v243, %v241
      %v254 = vunpack.c.l.b16 %v212
      %v255 = vunpack.c.l.b16 %v213
      %v256 = vunpack.c.l.b16 %v214
      %v257 = vunpack.c.l.b16 %v215
      %v258 = vunpack.c.l.b16 %v216
      %v259 = vunpack.c.l.b16 %v217
      %v260 = vunpack.c.l.b16 %v218
      %v261 = vunpack.c.l.b16 %v219
      %v262 = vpack.c.b16 %v255, %v254
      %v263 = vpack.c.b16 %v257, %v256
      %v264 = vpack.c.b16 %v259, %v258
      %v265 = vpack.c.b16 %v261, %v260
      %vm270 = vcmask 523264
      %v272 = vsel %vm270, %v242, 0
      %v275 = vsel %vm270, %v245, 0
      %277 = vmatprep.subr.bf16.mxu0 0
      %278 = vmatpush1.bf16.msra.mxu0 0
      %279 = vmatprep.subr.bf16.mxu0 0
      %280 = vmatpush1.bf16.msra.mxu0 0
      %281 = vmatprep.subr.bf16.mxu0 0
      %282 = vmatpush1.bf16.msra.mxu0 0
      %283 = vmatprep.subr.bf16.mxu0 0
      %284 = vmatpush1.bf16.msra.mxu0 0
      %285 = vmatprep.subr.bf16.mxu0 0
      %286 = vmatpush1.bf16.msra.mxu0 %v265
      %287 = vmatprep.subr.bf16.mxu0 0
      %288 = vmatpush1.bf16.msra.mxu0 %v264
      %289 = vmatprep.subr.bf16.mxu0 0
      %290 = vmatpush1.bf16.msra.mxu0 %v263
      %291 = vmatprep.subr.bf16.mxu0 0
      %292 = vmatpush1.bf16.msra.mxu0 %v262
      %293 = vmatprep.subr.bf16.mxu0 0
      %294 = vmatpush2.bf16.msra.mxu0 0
      %295 = vmatprep.subr.bf16.mxu0 0
      %296 = vmatpush2.bf16.msra.mxu0 0
      %297 = vmatprep.subr.bf16.mxu0 0
      %298 = vmatpush2.bf16.msra.mxu0 0
      %299 = vmatprep.subr.bf16.mxu0 0
      %300 = vmatpush2.bf16.msra.mxu0 0
      %301 = vmatprep.subr.bf16.mxu0 0
      %302 = vmatpush2.bf16.msra.mxu0 0
      %303 = vmatprep.subr.bf16.mxu0 0
      %304 = vmatpush2.bf16.msra.mxu0 0
      %305 = vmatprep.subr.bf16.mxu0 0
      %306 = vmatpush2.bf16.msra.mxu0 0
      %307 = vmatprep.subr.bf16.mxu0 0
      %308 = vmatpush2.bf16.msra.mxu0 0
      %309 = vmatprep.mubr.bf16.mxu0 0
      %310 = vmatmul.mubr.bf16.gmra.mxu0 %v272
      %v311 = vpop.f32.mrf.mxu0
      %v312 = vadd.f32 0.0, %v311
      %v313 = vpop.f32.mrf.mxu0
      %v314 = vpop.f32.mrf.mxu0
      %v315 = vadd.f32 0.0, %v314
      %v316 = vpop.f32.mrf.mxu0
      %317 = vmatprep.mubr.bf16.mxu0 0
      %318 = vmatmul.mubr.bf16.gmra.mxu0 %v275
      %v319 = vpop.f32.mrf.mxu0
      %v320 = vadd.f32 0.0, %v319
      %v321 = vpop.f32.mrf.mxu0
      %v322 = vpop.f32.mrf.mxu0
      %v323 = vpop.f32.mrf.mxu0
      %324 = vdwg.mxu0
      %v325 = vpack.c.b16 %v226, %v226
      %v334 = vunpack.c.l.b16 %v202
      %v335 = vunpack.c.l.b16 %v203
      %v336 = vunpack.c.l.b16 %v204
      %v337 = vunpack.c.l.b16 %v205
      %v338 = vunpack.c.l.b16 %v206
      %v339 = vunpack.c.l.b16 %v207
      %v340 = vunpack.c.l.b16 %v208
      %v341 = vunpack.c.l.b16 %v209
      %v342 = vpack.c.b16 %v335, %v334
      %v343 = vpack.c.b16 %v337, %v336
      %v344 = vpack.c.b16 %v339, %v338
      %v345 = vpack.c.b16 %v341, %v340
      %v350 = vsel %vm270, %v228, 0
      %v353 = vsel %vm270, %v325, 0
      %355 = vmatprep.subr.bf16.mxu0 0
      %356 = vmatpush1.bf16.msra.mxu0 0
      %357 = vmatprep.subr.bf16.mxu0 0
      %358 = vmatpush1.bf16.msra.mxu0 0
      %359 = vmatprep.subr.bf16.mxu0 0
      %360 = vmatpush1.bf16.msra.mxu0 0
      %361 = vmatprep.subr.bf16.mxu0 0
      %362 = vmatpush1.bf16.msra.mxu0 0
      %363 = vmatprep.subr.bf16.mxu0 0
      %364 = vmatpush1.bf16.msra.mxu0 %v345
      %365 = vmatprep.subr.bf16.mxu0 0
      %366 = vmatpush1.bf16.msra.mxu0 %v344
      %367 = vmatprep.subr.bf16.mxu0 0
      %368 = vmatpush1.bf16.msra.mxu0 %v343
      %369 = vmatprep.subr.bf16.mxu0 0
      %370 = vmatpush1.bf16.msra.mxu0 %v342
      %371 = vmatprep.subr.bf16.mxu0 0
      %372 = vmatpush2.bf16.msra.mxu0 0
      %373 = vmatprep.subr.bf16.mxu0 0
      %374 = vmatpush2.bf16.msra.mxu0 0
      %375 = vmatprep.subr.bf16.mxu0 0
      %376 = vmatpush2.bf16.msra.mxu0 0
      %377 = vmatprep.subr.bf16.mxu0 0
      %378 = vmatpush2.bf16.msra.mxu0 0
      %379 = vmatprep.subr.bf16.mxu0 0
      %380 = vmatpush2.bf16.msra.mxu0 0
      %381 = vmatprep.subr.bf16.mxu0 0
      %382 = vmatpush2.bf16.msra.mxu0 0
      %383 = vmatprep.subr.bf16.mxu0 0
      %384 = vmatpush2.bf16.msra.mxu0 0
      %385 = vmatprep.subr.bf16.mxu0 0
      %386 = vmatpush2.bf16.msra.mxu0 0
      %387 = vmatprep.mubr.bf16.mxu0 0
      %388 = vmatmul.mubr.bf16.gmra.mxu0 %v350
      %v389 = vpop.f32.mrf.mxu0
      %v390 = vadd.f32 %v312, %v389
      %v391 = vpop.f32.mrf.mxu0
      %v392 = vpop.f32.mrf.mxu0
      %v393 = vadd.f32 %v315, %v392
      %v394 = vpop.f32.mrf.mxu0
      %395 = vmatprep.mubr.bf16.mxu0 0
      %396 = vmatmul.mubr.bf16.gmra.mxu0 %v353
      %v397 = vpop.f32.mrf.mxu0
      %v398 = vadd.f32 %v320, %v397
      %v399 = vpop.f32.mrf.mxu0
      %v400 = vpop.f32.mrf.mxu0
      %v401 = vpop.f32.mrf.mxu0
      %402 = vdwg.mxu0
      %v403 = vld [vmem:[%s192] sm:$0xc]
      %v404 = vld [vmem:[%s192 + $0xc] sm:$0x7]
      %s405 = scalar_lea.vmem %s1, 64
      %v406 = vld [vmem:[%s405] sm:$0xf]
      %v407 = vld [vmem:[%s405 + $0x4] sm:$0xf]
      %v408 = vld [vmem:[%s405 + $0x8] sm:$0xf]
      %v409 = vld [vmem:[%s405 + $0xc] sm:$0xf]
      %v410 = vld [vmem:[%s405 + $0x10] sm:$0xf]
      %v411 = vld [vmem:[%s405 + $0x14] sm:$0xf]
      %v412 = vld [vmem:[%s405 + $0x18] sm:$0xf]
      %v413 = vld [vmem:[%s405 + $0x1c] sm:$0xf]
      %v416 = vunpack.c.l.b16 %v403
      %v417 = vunpack.c.l.b16 %v404
      %v418 = vpack.c.b16 %v225, %v416
      %v419 = vpack.c.b16 %v417, %v226
      %vm420 = vsmask.f32 5376
      %v422 = vshrl.u32 %v418, 16
      %v424 = vrot.slane %v422, 2
      %v425 = vshll.u32 %v418, 16
      %v427 = vrot.slane %v425, 3
      %v428 = vor.u32 %v424, %v427
      %v430 = vshrl.u32 %v419, 16
      %v432 = vrot.slane %v430, 2
      %v433 = vshll.u32 %v419, 16
      %v435 = vrot.slane %v433, 3
      %v436 = vor.u32 %v432, %v435
      %v437 = vsel %vm420, %v428, %v436
      %v446 = vunpack.c.l.b16 %v406
      %v447 = vunpack.c.l.b16 %v407
      %v448 = vunpack.c.l.b16 %v408
      %v449 = vunpack.c.l.b16 %v409
      %v450 = vunpack.c.l.b16 %v410
      %v451 = vunpack.c.l.b16 %v411
      %v452 = vunpack.c.l.b16 %v412
      %v453 = vunpack.c.l.b16 %v413
      %v454 = vpack.c.b16 %v447, %v446
      %v455 = vpack.c.b16 %v449, %v448
      %v456 = vpack.c.b16 %v451, %v450
      %v457 = vpack.c.b16 %v453, %v452
      %v463 = vsel %vm270, %v437, 0
      %v466 = vsel %vm270, %v436, 0
      %468 = vmatprep.subr.bf16.mxu0 0
      %469 = vmatpush1.bf16.msra.mxu0 0
      %470 = vmatprep.subr.bf16.mxu0 0
      %471 = vmatpush1.bf16.msra.mxu0 0
      %472 = vmatprep.subr.bf16.mxu0 0
      %473 = vmatpush1.bf16.msra.mxu0 0
      %474 = vmatprep.subr.bf16.mxu0 0
      %475 = vmatpush1.bf16.msra.mxu0 0
      %476 = vmatprep.subr.bf16.mxu0 0
      %477 = vmatpush1.bf16.msra.mxu0 %v457
      %478 = vmatprep.subr.bf16.mxu0 0
      %479 = vmatpush1.bf16.msra.mxu0 %v456
      %480 = vmatprep.subr.bf16.mxu0 0
      %481 = vmatpush1.bf16.msra.mxu0 %v455
      %482 = vmatprep.subr.bf16.mxu0 0
      %483 = vmatpush1.bf16.msra.mxu0 %v454
      %484 = vmatprep.subr.bf16.mxu0 0
      %485 = vmatpush2.bf16.msra.mxu0 0
      %486 = vmatprep.subr.bf16.mxu0 0
      %487 = vmatpush2.bf16.msra.mxu0 0
      %488 = vmatprep.subr.bf16.mxu0 0
      %489 = vmatpush2.bf16.msra.mxu0 0
      %490 = vmatprep.subr.bf16.mxu0 0
      %491 = vmatpush2.bf16.msra.mxu0 0
      %492 = vmatprep.subr.bf16.mxu0 0
      %493 = vmatpush2.bf16.msra.mxu0 0
      %494 = vmatprep.subr.bf16.mxu0 0
      %495 = vmatpush2.bf16.msra.mxu0 0
      %496 = vmatprep.subr.bf16.mxu0 0
      %497 = vmatpush2.bf16.msra.mxu0 0
      %498 = vmatprep.subr.bf16.mxu0 0
      %499 = vmatpush2.bf16.msra.mxu0 0
      %500 = vmatprep.mubr.bf16.mxu0 0
      %501 = vmatmul.mubr.bf16.gmra.mxu0 %v463
      %v502 = vpop.f32.mrf.mxu0
      %v503 = vadd.f32 0.0, %v502
      %v504 = vpop.f32.mrf.mxu0
      %v505 = vpop.f32.mrf.mxu0
      %v506 = vadd.f32 0.0, %v505
      %v507 = vpop.f32.mrf.mxu0
      %508 = vmatprep.mubr.bf16.mxu0 0
      %509 = vmatmul.mubr.bf16.gmra.mxu0 %v466
      %v510 = vpop.f32.mrf.mxu0
      %v511 = vadd.f32 0.0, %v510
      %v512 = vpop.f32.mrf.mxu0
      %v513 = vpop.f32.mrf.mxu0
      %v514 = vpop.f32.mrf.mxu0
      %515 = vdwg.mxu0
      %v516 = vadd.f32 %v390, %v503
      %v517 = vadd.f32 %v393, %v506
      %v518 = vadd.f32 %v398, %v511
      %v519 = vld [vmem:[%s192] sm:$0x8]
      %s520 = scalar_lea.vmem %s1, 96
      %v521 = vld [vmem:[%s520] sm:$0xf]
      %v522 = vld [vmem:[%s520 + $0x4] sm:$0xf]
      %v523 = vld [vmem:[%s520 + $0x8] sm:$0xf]
      %v524 = vld [vmem:[%s520 + $0xc] sm:$0xf]
      %v525 = vld [vmem:[%s520 + $0x10] sm:$0xf]
      %v526 = vld [vmem:[%s520 + $0x14] sm:$0xf]
      %v527 = vld [vmem:[%s520 + $0x18] sm:$0xf]
      %v528 = vld [vmem:[%s520 + $0x1c] sm:$0xf]
      %v530 = vunpack.c.l.b16 %v519
      %v531 = vpack.c.b16 %v225, %v530
      %vm532 = vcmask 1044480
      %v533 = vrot.slane %v531, 3
      %v534 = vrot.slane %v419, 3
      %v535 = vsel %vm532, %v533, %v534
      %v544 = vunpack.c.l.b16 %v521
      %v545 = vunpack.c.l.b16 %v522
      %v546 = vunpack.c.l.b16 %v523
      %v547 = vunpack.c.l.b16 %v524
      %v548 = vunpack.c.l.b16 %v525
      %v549 = vunpack.c.l.b16 %v526
      %v550 = vunpack.c.l.b16 %v527
      %v551 = vunpack.c.l.b16 %v528
      %v552 = vpack.c.b16 %v545, %v544
      %v553 = vpack.c.b16 %v547, %v546
      %v554 = vpack.c.b16 %v549, %v548
      %v555 = vpack.c.b16 %v551, %v550
      %v561 = vsel %vm270, %v535, 0
      %v564 = vsel %vm270, %v534, 0
      %566 = vmatprep.subr.bf16.mxu0 0
      %567 = vmatpush1.bf16.msra.mxu0 0
      %568 = vmatprep.subr.bf16.mxu0 0
      %569 = vmatpush1.bf16.msra.mxu0 0
      %570 = vmatprep.subr.bf16.mxu0 0
      %571 = vmatpush1.bf16.msra.mxu0 0
      %572 = vmatprep.subr.bf16.mxu0 0
      %573 = vmatpush1.bf16.msra.mxu0 0
      %574 = vmatprep.subr.bf16.mxu0 0
      %575 = vmatpush1.bf16.msra.mxu0 %v555
      %576 = vmatprep.subr.bf16.mxu0 0
      %577 = vmatpush1.bf16.msra.mxu0 %v554
      %578 = vmatprep.subr.bf16.mxu0 0
      %579 = vmatpush1.bf16.msra.mxu0 %v553
      %580 = vmatprep.subr.bf16.mxu0 0
      %581 = vmatpush1.bf16.msra.mxu0 %v552
      %582 = vmatprep.subr.bf16.mxu0 0
      %583 = vmatpush2.bf16.msra.mxu0 0
      %584 = vmatprep.subr.bf16.mxu0 0
      %585 = vmatpush2.bf16.msra.mxu0 0
      %586 = vmatprep.subr.bf16.mxu0 0
      %587 = vmatpush2.bf16.msra.mxu0 0
      %588 = vmatprep.subr.bf16.mxu0 0
      %589 = vmatpush2.bf16.msra.mxu0 0
      %590 = vmatprep.subr.bf16.mxu0 0
      %591 = vmatpush2.bf16.msra.mxu0 0
      %592 = vmatprep.subr.bf16.mxu0 0
      %593 = vmatpush2.bf16.msra.mxu0 0
      %594 = vmatprep.subr.bf16.mxu0 0
      %595 = vmatpush2.bf16.msra.mxu0 0
      %596 = vmatprep.subr.bf16.mxu0 0
      %597 = vmatpush2.bf16.msra.mxu0 0
      %598 = vmatprep.mubr.bf16.mxu0 0
      %599 = vmatmul.mubr.bf16.gmra.mxu0 %v561
      %v600 = vpop.f32.mrf.mxu0
      %v601 = vadd.f32 0.0, %v600
      %v602 = vpop.f32.mrf.mxu0
      %v603 = vpop.f32.mrf.mxu0
      %v604 = vadd.f32 0.0, %v603
      %v605 = vpop.f32.mrf.mxu0
      %606 = vmatprep.mubr.bf16.mxu0 0
      %607 = vmatmul.mubr.bf16.gmra.mxu0 %v564
      %v608 = vpop.f32.mrf.mxu0
      %v609 = vadd.f32 0.0, %v608
      %v610 = vpop.f32.mrf.mxu0
      %v611 = vpop.f32.mrf.mxu0
      %v612 = vpop.f32.mrf.mxu0
      %613 = vdwg.mxu0
      %v614 = vadd.f32 %v516, %v601
      %v615 = vadd.f32 %v517, %v604
      %v616 = vadd.f32 %v518, %v609
      %v617 = vld [vmem:[%s2] sm:$0x1]
      %v619 = vlaneseq
      %v620 = vshrl.u32 %v619, 7
      %v621 = vsub.s32 0, %v620
      %v622 = vrot.slane %v617, %v621
      %v624 = vmul.f32 %v614, %v622
      %v625 = vmul.f32 %v615, %v622
      %v626 = vmul.f32 %v616, %v622
      %v627 = vld [vmem:[%s3] sm:$0x1]
      %v629 = vlaneseq
      %v630 = vshrl.u32 %v629, 7
      %v631 = vsub.s32 0, %v630
      %v632 = vrot.slane %v627, %v631
      %v634 = vadd.f32 %v624, %v632
      %v635 = vadd.f32 %v625, %v632
      %v636 = vadd.f32 %v626, %v632
      %v637 = vmax.f32 %v634, 0.0
      %v638 = vmax.f32 %v635, 0.0
      %v639 = vmax.f32 %v636, 0.0
      %v640 = vpack.c.bf16 %v638, %v637
      %v641 = vpack.c.bf16 %v639, %v639
      %v644 = vunpack.c.l.b16 %v640
      %v645 = vunpack.c.h.b16 %v640
      %v646 = vunpack.c.l.b16 %v641
      %v647 = vpack.c.b16 %v644, %v644
      %v648 = vpack.c.b16 %v645, %v645
      %v649 = vpack.c.b16 %v646, %v646
      %vm653 = vcmask 257024
      %654 = vst.msk [vmem:[%s197] sm:$0xf] %vm653, %v647
      %655 = vst.msk [vmem:[%s197 + $0x4] sm:$0xf] %vm653, %v648
      %656 = vst.msk [vmem:[%s197 + $0x8] sm:$0xf] %vm653, %v649
      %p657 = scmp.lt.s32.totalorder %s15, 1
      %s658 = scalar_select %p657, %s15, 1
      %s659 = smul.addr %s658, 3
      %s660 = smul.addr %s659, 4
      %s661 = scalar_lea.vmem %s4, %s660
      // Predicated region
      $region37: #{conv_stem_forward.6} parent=35 // pred_check
        %p662 = pneg %p122
      $region38: #{conv_stem_forward.6} parent=35 // pred_check_branch
        %664 = sbr.rel (%p662) target = $region40
      $region39: #{conv_stem_forward.6} parent=35 // pred_region
        _
      $region40: #{conv_stem_forward.6} parent=35 // pred_fallthru
        _
    $region36: #{conv_stem_forward.6} parent=5 // pred_fallthru
      _
    %p665 = scmp.le.s32.totalorder 2, %s10
    // Predicated region
    $region41: #{conv_stem_forward.6} parent=5 // pred_check
      %p666 = pneg %p665
    $region42: #{conv_stem_forward.6} parent=5 // pred_check_branch
      %668 = sbr.rel (%p666) target = $region44
    $region43: #{conv_stem_forward.6} parent=5 // pred_region
      %s669 = ssub.s32 %s10, 2
      // Predicated region
      $region45: #{conv_stem_forward.6} parent=43 // pred_check
        %p670 = pneg %p128
      $region46: #{conv_stem_forward.6} parent=43 // pred_check_branch
        %672 = sbr.rel (%p670) target = $region48
      $region47: #{conv_stem_forward.6} parent=43 // pred_region
        %p673 = scmp.lt.s32.totalorder %s16, 1
        %s674 = scalar_select %p673, %s16, 1
        %s675 = smul.addr %s674, 3
        %s676 = smul.addr %s675, 4
        %s677 = scalar_lea.vmem %s4, %s676
      $region48: #{conv_stem_forward.6} parent=43 // pred_fallthru
        _
    $region44: #{conv_stem_forward.6} parent=5 // pred_fallthru
      _
  $region6: #{conv_stem_forward.6} parent=0 // loop_footer
    %s14 = sadd.s32 1, %s10
  $region7: #{conv_stem_forward.6} parent=0 // loop_footer_branch
    %9 = sbr.rel target = $region3
  $region8: #{conv_stem_forward.6} parent=0 // loop_exit
    _

// kernel: conv_stem_forward.7
$region0: #{conv_stem_forward.7}
  #allocation0 [shape = 'u32[]', space=smem, size = 0x4, offset = 0x4, fixed_abs, tag = 'smem constant byte address 0x4 - core index']
  #allocation1 [shape = 'u32[144,128]{1,0:T(1,128)}', space=vmem, size = 0x12000, scoped, tag = 'internal scratch']
  %s0 = inlined_call_operand.vmem [shape: bf16[2,16,128], index: 0, kind: input, shape index: {}]
  %s1 = inlined_call_operand.vmem [shape: bf16[4,128,64], index: 1, kind: input, shape index: {}]
  %s2 = inlined_call_operand.vmem [shape: f32[1,64], index: 2, kind: input, shape index: {}]
  %s3 = inlined_call_operand.vmem [shape: f32[1,64], index: 3, kind: input, shape index: {}]
  %s4 = inlined_call_operand.vmem [shape: bf16[64,64], index: 4, kind: input, shape index: {}]
  %s5 = inlined_call_operand.vmem [shape: f32[1,64], index: 5, kind: input, shape index: {}]
  %s6 = inlined_call_operand.vmem [shape: bf16[2,8,64], index: 6, kind: output, shape index: {}]
  %s7 = sld [smem:[#allocation0]]
  $region57: #{conv_stem_forward.7} parent=0
    _
  %s9 = ssub.s32 1, %s7
  %s10 = scalar_select 0, %s9, %s7
  loop: start=0, step=1, limit=4
  $region2: #{conv_stem_forward.7} parent=0 // loop_pre_header
    _
  $region3: #{conv_stem_forward.7} parent=0 // loop_header
    %s12 = sphi 0, %s16
    %p13 = scmp.ge.s32.totalorder %s12, 4
    %s22 = sphi 0, %s24
    %s25 = sphi 0, %s22
    %s26 = sphi 0, %s25
    %s42 = sphi 0, %s26
    %s46 = sphi 0, %s46
    %s48 = sphi 0, %s46
    %s49 = sphi 0, %s48
    %s63 = sphi 0, %s49
    %s67 = sphi 0, %s67
    %s69 = sphi 0, %s67
    %s70 = sphi 0, %s69
    %s84 = sphi 0, %s70
    %s88 = sphi 0, %s88
    %s90 = sphi 0, %s88
    %s91 = sphi 0, %s90
    %s105 = sphi 0, %s91
    %s109 = sphi 0, %s109
    %s111 = sphi 0, %s109
    %s112 = sphi 0, %s111
    %s126 = sphi 0, %s112
    %s130 = sphi 0, %s130
    %s132 = sphi 0, %s130
    %s133 = sphi 0, %s132
    %s147 = sphi 0, %s133
    %s153 = sphi 0, %s155
    %s156 = sphi 0, %s153
    %s157 = sphi 0, %s156
    %s173 = sphi 0, %s157
  $region4: #{conv_stem_forward.7} parent=0 // loop_header_branch
    %15 = sbr.rel (%p13) target = $region8
  $region5: #{conv_stem_forward.7} parent=0 // loop_body
    %s17 = ssub.s32 %s12, 1
    %s18 = ssub.s32 %s12, 2
    %s19 = sadd.s32 %s12, 1
    %s20 = ssub.s32 %s12, %s19
    %p21 = scmp.eq.s32.totalorder %s20, 0
    %s23 = sadd.s32 %s22, 1
    %s24 = scalar_select %p21, %s22, %s23
    %p27 = pneg %p21
    %p28 = scmp.eq.s32.totalorder %s12, 1
    %p29 = por %p27, %p28
    %p30 = scmp.ne.s32.totalorder %s22, %s25
    %p31 = scmp.eq.s32.totalorder %s12, 0
    %p32 = por %p30, %p31
    %p33 = scmp.ne.s32.totalorder %s22, %s25
    %p34 = scmp.eq.s32.totalorder %s17, 1
    %p35 = por %p33, %p34
    %p36 = scmp.ne.s32.totalorder %s25, %s26
    %p37 = scmp.eq.s32.totalorder %s17, 0
    %p38 = por %p36, %p37
    %p39 = scmp.ne.s32.totalorder %s25, %s26
    %p40 = scmp.eq.s32.totalorder %s18, 1
    %p41 = por %p39, %p40
    %p43 = scmp.ne.s32.totalorder %s26, %s42
    %p44 = scmp.eq.s32.totalorder %s18, 0
    %p45 = por %p43, %p44
    %s47 = sadd.s32 %s46, 1
    %p50 = scmp.eq.s32.totalorder %s12, 1
    %p51 = scmp.ne.s32.totalorder %s46, %s48
    %p52 = scmp.eq.s32.totalorder %s12, 0
    %p53 = por %p51, %p52
    %p54 = scmp.ne.s32.totalorder %s46, %s48
    %p55 = scmp.eq.s32.totalorder %s17, 1
    %p56 = por %p54, %p55
    %p57 = scmp.ne.s32.totalorder %s48, %s49
    %p58 = scmp.eq.s32.totalorder %s17, 0
    %p59 = por %p57, %p58
    %p60 = scmp.ne.s32.totalorder %s48, %s49
    %p61 = scmp.eq.s32.totalorder %s18, 1
    %p62 = por %p60, %p61
    %p64 = scmp.ne.s32.totalorder %s49, %s63
    %p65 = scmp.eq.s32.totalorder %s18, 0
    %p66 = por %p64, %p65
    %s68 = sadd.s32 %s67, 1
    %p71 = scmp.eq.s32.totalorder %s12, 1
    %p72 = scmp.ne.s32.totalorder %s67, %s69
    %p73 = scmp.eq.s32.totalorder %s12, 0
    %p74 = por %p72, %p73
    %p75 = scmp.ne.s32.totalorder %s67, %s69
    %p76 = scmp.eq.s32.totalorder %s17, 1
    %p77 = por %p75, %p76
    %p78 = scmp.ne.s32.totalorder %s69, %s70
    %p79 = scmp.eq.s32.totalorder %s17, 0
    %p80 = por %p78, %p79
    %p81 = scmp.ne.s32.totalorder %s69, %s70
    %p82 = scmp.eq.s32.totalorder %s18, 1
    %p83 = por %p81, %p82
    %p85 = scmp.ne.s32.totalorder %s70, %s84
    %p86 = scmp.eq.s32.totalorder %s18, 0
    %p87 = por %p85, %p86
    %s89 = sadd.s32 %s88, 1
    %p92 = scmp.eq.s32.totalorder %s12, 1
    %p93 = scmp.ne.s32.totalorder %s88, %s90
    %p94 = scmp.eq.s32.totalorder %s12, 0
    %p95 = por %p93, %p94
    %p96 = scmp.ne.s32.totalorder %s88, %s90
    %p97 = scmp.eq.s32.totalorder %s17, 1
    %p98 = por %p96, %p97
    %p99 = scmp.ne.s32.totalorder %s90, %s91
    %p100 = scmp.eq.s32.totalorder %s17, 0
    %p101 = por %p99, %p100
    %p102 = scmp.ne.s32.totalorder %s90, %s91
    %p103 = scmp.eq.s32.totalorder %s18, 1
    %p104 = por %p102, %p103
    %p106 = scmp.ne.s32.totalorder %s91, %s105
    %p107 = scmp.eq.s32.totalorder %s18, 0
    %p108 = por %p106, %p107
    %s110 = sadd.s32 %s109, 1
    %p113 = scmp.eq.s32.totalorder %s12, 1
    %p114 = scmp.ne.s32.totalorder %s109, %s111
    %p115 = scmp.eq.s32.totalorder %s12, 0
    %p116 = por %p114, %p115
    %p117 = scmp.ne.s32.totalorder %s109, %s111
    %p118 = scmp.eq.s32.totalorder %s17, 1
    %p119 = por %p117, %p118
    %p120 = scmp.ne.s32.totalorder %s111, %s112
    %p121 = scmp.eq.s32.totalorder %s17, 0
    %p122 = por %p120, %p121
    %p123 = scmp.ne.s32.totalorder %s111, %s112
    %p124 = scmp.eq.s32.totalorder %s18, 1
    %p125 = por %p123, %p124
    %p127 = scmp.ne.s32.totalorder %s112, %s126
    %p128 = scmp.eq.s32.totalorder %s18, 0
    %p129 = por %p127, %p128
    %s131 = sadd.s32 %s130, 1
    %p134 = scmp.eq.s32.totalorder %s12, 1
    %p135 = scmp.ne.s32.totalorder %s130, %s132
    %p136 = scmp.eq.s32.totalorder %s12, 0
    %p137 = por %p135, %p136
    %p138 = scmp.ne.s32.totalorder %s130, %s132
    %p139 = scmp.eq.s32.totalorder %s17, 1
    %p140 = por %p138, %p139
    %p141 = scmp.ne.s32.totalorder %s132, %s133
    %p142 = scmp.eq.s32.totalorder %s17, 0
    %p143 = por %p141, %p142
    %p144 = scmp.ne.s32.totalorder %s132, %s133
    %p145 = scmp.eq.s32.totalorder %s18, 1
    %p146 = por %p144, %p145
    %p148 = scmp.ne.s32.totalorder %s133, %s147
    %p149 = scmp.eq.s32.totalorder %s18, 0
    %p150 = por %p148, %p149
    %s151 = ssub.s32 %s12, %s19
    %p152 = scmp.eq.s32.totalorder %s151, 0
    %s154 = sadd.s32 %s153, 1
    %s155 = scalar_select %p152, %s153, %s154
    %p158 = pneg %p152
    %p159 = scmp.eq.s32.totalorder %s12, 1
    %p160 = por %p158, %p159
    %p161 = scmp.ne.s32.totalorder %s153, %s156
    %p162 = scmp.eq.s32.totalorder %s12, 0
    %p163 = por %p161, %p162
    %p164 = scmp.ne.s32.totalorder %s153, %s156
    %p165 = scmp.eq.s32.totalorder %s17, 1
    %p166 = por %p164, %p165
    %p167 = scmp.ne.s32.totalorder %s156, %s157
    %p168 = scmp.eq.s32.totalorder %s17, 0
    %p169 = por %p167, %p168
    %p170 = scmp.ne.s32.totalorder %s156, %s157
    %p171 = scmp.eq.s32.totalorder %s18, 1
    %p172 = por %p170, %p171
    %p174 = scmp.ne.s32.totalorder %s157, %s173
    %p175 = scmp.eq.s32.totalorder %s18, 0
    %p176 = por %p174, %p175
    %p177 = scmp.le.s32.totalorder 1, %s12
    %p178 = scmp.lt.s32.totalorder %s12, 3
    %p179 = pnand %p177, %p178
    %p180 = pneg %p179
    // Predicated region
    $region9: #{conv_stem_forward.7} parent=5 // pred_check
      _
    $region10: #{conv_stem_forward.7} parent=5 // pred_check_branch
      %182 = sbr.rel (%p179) target = $region12
    $region11: #{conv_stem_forward.7} parent=5 // pred_region
      %s183 = ssub.s32 %s12, 1
      // Predicated region
      $region13: #{conv_stem_forward.7} parent=11 // pred_check
        %p184 = pneg %p59
      $region14: #{conv_stem_forward.7} parent=11 // pred_check_branch
        %186 = sbr.rel (%p184) target = $region16
      $region15: #{conv_stem_forward.7} parent=11 // pred_region
        _
      $region16: #{conv_stem_forward.7} parent=11 // pred_fallthru
        _
      // Predicated region
      $region17: #{conv_stem_forward.7} parent=11 // pred_check
        %p187 = pneg %p80
      $region18: #{conv_stem_forward.7} parent=11 // pred_check_branch
        %189 = sbr.rel (%p187) target = $region20
      $region19: #{conv_stem_forward.7} parent=11 // pred_region
        _
      $region20: #{conv_stem_forward.7} parent=11 // pred_fallthru
        _
      // Predicated region
      $region21: #{conv_stem_forward.7} parent=11 // pred_check
        %p190 = pneg %p101
      $region22: #{conv_stem_forward.7} parent=11 // pred_check_branch
        %192 = sbr.rel (%p190) target = $region24
      $region23: #{conv_stem_forward.7} parent=11 // pred_region
        _
      $region24: #{conv_stem_forward.7} parent=11 // pred_fallthru
        _
      // Predicated region
      $region25: #{conv_stem_forward.7} parent=11 // pred_check
        %p193 = pneg %p122
      $region26: #{conv_stem_forward.7} parent=11 // pred_check_branch
        %195 = sbr.rel (%p193) target = $region28
      $region27: #{conv_stem_forward.7} parent=11 // pred_region
        _
      $region28: #{conv_stem_forward.7} parent=11 // pred_fallthru
        _
      // Predicated region
      $region29: #{conv_stem_forward.7} parent=11 // pred_check
        %p196 = pneg %p143
      $region30: #{conv_stem_forward.7} parent=11 // pred_check_branch
        %198 = sbr.rel (%p196) target = $region32
      $region31: #{conv_stem_forward.7} parent=11 // pred_region
        _
      $region32: #{conv_stem_forward.7} parent=11 // pred_fallthru
        _
    $region12: #{conv_stem_forward.7} parent=5 // pred_fallthru
      _
    %p199 = scmp.lt.s32.totalorder %s12, 2
    // Predicated region
    $region33: #{conv_stem_forward.7} parent=5 // pred_check
      %p200 = pneg %p199
    $region34: #{conv_stem_forward.7} parent=5 // pred_check_branch
      %202 = sbr.rel (%p200) target = $region36
    $region35: #{conv_stem_forward.7} parent=5 // pred_region
      // Predicated region
      $region37: #{conv_stem_forward.7} parent=35 // pred_check
        %p203 = pneg %p32
      $region38: #{conv_stem_forward.7} parent=35 // pred_check_branch
        %205 = sbr.rel (%p203) target = $region40
      $region39: #{conv_stem_forward.7} parent=35 // pred_region
        %p206 = scmp.lt.s32.totalorder %s12, 1
        %s207 = scalar_select %p206, %s12, 1
        %s208 = smul.addr %s207, 2
        %s209 = smul.addr %s208, 4
        %s210 = scalar_lea.vmem %s0, %s209
      $region40: #{conv_stem_forward.7} parent=35 // pred_fallthru
        _
    $region36: #{conv_stem_forward.7} parent=5 // pred_fallthru
      _
    %p211 = scmp.le.s32.totalorder 1, %s12
    %p212 = scmp.lt.s32.totalorder %s12, 3
    %p213 = pnand %p211, %p212
    %p214 = pneg %p213
    // Predicated region
    $region41: #{conv_stem_forward.7} parent=5 // pred_check
      _
    $region42: #{conv_stem_forward.7} parent=5 // pred_check_branch
      %216 = sbr.rel (%p213) target = $region44
    $region43: #{conv_stem_forward.7} parent=5 // pred_region
      %s217 = ssub.s32 %s12, 1
      %p218 = scmp.lt.s32.totalorder %s17, 1
      %s219 = scalar_select %p218, %s17, 1
      %s220 = smul.addr %s219, 2
      %s221 = smul.addr %s220, 4
      %s222 = scalar_lea.vmem %s0, %s221
      %p223 = pneg %p38
      %p224 = pneg %p35
      %p225 = pneg %p59
      %p226 = pneg %p56
      %p227 = pneg %p80
      %p228 = pneg %p77
      %p229 = pneg %p101
      %p230 = pneg %p98
      %p231 = pneg %p122
      %p232 = pneg %p119
      %p233 = pneg %p143
      %p234 = pneg %p140
      %p235 = pneg %p169
      %p236 = pneg %p166
      %p237 = scmp.lt.s32.totalorder %s17, 1
      %s238 = scalar_select %p237, %s17, 1
      %s239 = smul.addr %s238, 4
      %s240 = scalar_lea.vmem %s6, %s239
      %p241 = scmp.lt.s32.totalorder %s17, 1
      %s242 = scalar_select %p241, %s17, 1
      %s243 = smul.addr %s242, 2
      %s244 = smul.addr %s243, 4
      %s245 = scalar_lea.vmem %s0, %s244
      %p246 = scmp.lt.s32.totalorder %s17, 1
      %s247 = scalar_select %p246, %s17, 1
      %s248 = smul.addr %s247, 4
      %s249 = scalar_lea.vmem %s6, %s248
      %v251 = vld [vmem:[%s245] sm:$0xf]
      %v252 = vld [vmem:[%s1] sm:$0xf]
      %v253 = vld [vmem:[%s1 + $0x4] sm:$0xf]
      %v254 = vld [vmem:[%s1 + $0x8] sm:$0xf]
      %v255 = vld [vmem:[%s1 + $0xc] sm:$0xf]
      %v256 = vld [vmem:[%s1 + $0x10] sm:$0xf]
      %v257 = vld [vmem:[%s1 + $0x14] sm:$0xf]
      %v258 = vld [vmem:[%s1 + $0x18] sm:$0xf]
      %v259 = vld [vmem:[%s1 + $0x1c] sm:$0xf]
      %v260 = vld [vmem:[%s1 + $0x20] sm:$0xf]
      %v261 = vld [vmem:[%s1 + $0x24] sm:$0xf]
      %v262 = vld [vmem:[%s1 + $0x28] sm:$0xf]
      %v263 = vld [vmem:[%s1 + $0x2c] sm:$0xf]
      %v264 = vld [vmem:[%s1 + $0x30] sm:$0xf]
      %v265 = vld [vmem:[%s1 + $0x34] sm:$0xf]
      %v266 = vld [vmem:[%s1 + $0x38] sm:$0xf]
      %v267 = vld [vmem:[%s1 + $0x3c] sm:$0xf]
      %v268 = vld [vmem:[%s245] sm:$0xf]
      %v269 = vld [vmem:[%s245 + $0x4] sm:$0x1]
      %s270 = scalar_lea.vmem %s1, 64
      %v271 = vld [vmem:[%s270] sm:$0xf]
      %v272 = vld [vmem:[%s270 + $0x4] sm:$0xf]
      %v273 = vld [vmem:[%s270 + $0x8] sm:$0xf]
      %v274 = vld [vmem:[%s270 + $0xc] sm:$0xf]
      %v275 = vld [vmem:[%s270 + $0x10] sm:$0xf]
      %v276 = vld [vmem:[%s270 + $0x14] sm:$0xf]
      %v277 = vld [vmem:[%s270 + $0x18] sm:$0xf]
      %v278 = vld [vmem:[%s270 + $0x1c] sm:$0xf]
      %v279 = vld [vmem:[%s270 + $0x20] sm:$0xf]
      %v280 = vld [vmem:[%s270 + $0x24] sm:$0xf]
      %v281 = vld [vmem:[%s270 + $0x28] sm:$0xf]
      %v282 = vld [vmem:[%s270 + $0x2c] sm:$0xf]
      %v283 = vld [vmem:[%s270 + $0x30] sm:$0xf]
      %v284 = vld [vmem:[%s270 + $0x34] sm:$0xf]
      %v285 = vld [vmem:[%s270 + $0x38] sm:$0xf]
      %v286 = vld [vmem:[%s270 + $0x3c] sm:$0xf]
      %v289 = vunpack.c.l.b16 %v268
      %v290 = vunpack.c.l.b16 %v269
      %v291 = vpack.c.b16 %v290, %v289
      %v293 = vshrl.u32 %v291, 16
      %v295 = vshll.u32 %v291, 16
      %v297 = vrot.slane %v295, 1
      %v298 = vor.u32 %v293, %v297
      %v316 = vunpack.c.l.b16 %v271
      %v317 = vunpack.c.l.b16 %v272
      %v318 = vunpack.c.l.b16 %v273
      %v319 = vunpack.c.l.b16 %v274
      %v320 = vunpack.c.l.b16 %v275
      %v321 = vunpack.c.l.b16 %v276
      %v322 = vunpack.c.l.b16 %v277
      %v323 = vunpack.c.l.b16 %v278
      %v324 = vunpack.c.l.b16 %v279
      %v325 = vunpack.c.l.b16 %v280
      %v326 = vunpack.c.l.b16 %v281
      %v327 = vunpack.c.l.b16 %v282
      %v328 = vunpack.c.l.b16 %v283
      %v329 = vunpack.c.l.b16 %v284
      %v330 = vunpack.c.l.b16 %v285
      %v331 = vunpack.c.l.b16 %v286
      %v332 = vpack.c.b16 %v317, %v316
      %v333 = vpack.c.b16 %v319, %v318
      %v334 = vpack.c.b16 %v321, %v320
      %v335 = vpack.c.b16 %v323, %v322
      %v336 = vpack.c.b16 %v325, %v324
      %v337 = vpack.c.b16 %v327, %v326
      %v338 = vpack.c.b16 %v329, %v328
      %v339 = vpack.c.b16 %v331, %v330
      %348 = vmatprep.subr.bf16.mxu0 0
      %349 = vmatpush1.bf16.msra.mxu0 %v339
      %350 = vmatprep.subr.bf16.mxu0 0
      %351 = vmatpush1.bf16.msra.mxu0 %v338
      %352 = vmatprep.subr.bf16.mxu0 0
      %353 = vmatpush1.bf16.msra.mxu0 %v337
      %354 = vmatprep.subr.bf16.mxu0 0
      %355 = vmatpush1.bf16.msra.mxu0 %v336
      %356 = vmatprep.subr.bf16.mxu0 0
      %357 = vmatpush1.bf16.msra.mxu0 %v335
      %358 = vmatprep.subr.bf16.mxu0 0
      %359 = vmatpush1.bf16.msra.mxu0 %v334
      %360 = vmatprep.subr.bf16.mxu0 0
      %361 = vmatpush1.bf16.msra.mxu0 %v333
      %362 = vmatprep.subr.bf16.mxu0 0
      %363 = vmatpush1.bf16.msra.mxu0 %v332
      %364 = vmatprep.subr.bf16.mxu0 0
      %365 = vmatpush2.bf16.msra.mxu0 0
      %366 = vmatprep.subr.bf16.mxu0 0
      %367 = vmatpush2.bf16.msra.mxu0 0
      %368 = vmatprep.subr.bf16.mxu0 0
      %369 = vmatpush2.bf16.msra.mxu0 0
      %370 = vmatprep.subr.bf16.mxu0 0
      %371 = vmatpush2.bf16.msra.mxu0 0
      %372 = vmatprep.subr.bf16.mxu0 0
      %373 = vmatpush2.bf16.msra.mxu0 0
      %374 = vmatprep.subr.bf16.mxu0 0
      %375 = vmatpush2.bf16.msra.mxu0 0
      %376 = vmatprep.subr.bf16.mxu0 0
      %377 = vmatpush2.bf16.msra.mxu0 0
      %378 = vmatprep.subr.bf16.mxu0 0
      %379 = vmatpush2.bf16.msra.mxu0 0
      %380 = vmatprep.mubr.bf16.mxu0 0
      %381 = vmatmul.mubr.bf16.gmra.mxu0 %v298
      %v382 = vpop.f32.mrf.mxu0
      %v383 = vadd.f32 0.0, %v382
      %v384 = vpop.f32.mrf.mxu0
      %v385 = vpop.f32.mrf.mxu0
      %v386 = vpop.f32.mrf.mxu0
      %387 = vdwg.mxu0
      %v404 = vunpack.c.l.b16 %v252
      %v405 = vunpack.c.l.b16 %v253
      %v406 = vunpack.c.l.b16 %v254
      %v407 = vunpack.c.l.b16 %v255
      %v408 = vunpack.c.l.b16 %v256
      %v409 = vunpack.c.l.b16 %v257
      %v410 = vunpack.c.l.b16 %v258
      %v411 = vunpack.c.l.b16 %v259
      %v412 = vunpack.c.l.b16 %v260
      %v413 = vunpack.c.l.b16 %v261
      %v414 = vunpack.c.l.b16 %v262
      %v415 = vunpack.c.l.b16 %v263
      %v416 = vunpack.c.l.b16 %v264
      %v417 = vunpack.c.l.b16 %v265
      %v418 = vunpack.c.l.b16 %v266
      %v419 = vunpack.c.l.b16 %v267
      %v420 = vpack.c.b16 %v405, %v404
      %v421 = vpack.c.b16 %v407, %v406
      %v422 = vpack.c.b16 %v409, %v408
      %v423 = vpack.c.b16 %v411, %v410
      %v424 = vpack.c.b16 %v413, %v412
      %v425 = vpack.c.b16 %v415, %v414
      %v426 = vpack.c.b16 %v417, %v416
      %v427 = vpack.c.b16 %v419, %v418
      %436 = vmatprep.subr.bf16.mxu0 0
      %437 = vmatpush1.bf16.msra.mxu0 %v427
      %438 = vmatprep.subr.bf16.mxu0 0
      %439 = vmatpush1.bf16.msra.mxu0 %v426
      %440 = vmatprep.subr.bf16.mxu0 0
      %441 = vmatpush1.bf16.msra.mxu0 %v425
      %442 = vmatprep.subr.bf16.mxu0 0
      %443 = vmatpush1.bf16.msra.mxu0 %v424
      %444 = vmatprep.subr.bf16.mxu0 0
      %445 = vmatpush1.bf16.msra.mxu0 %v423
      %446 = vmatprep.subr.bf16.mxu0 0
      %447 = vmatpush1.bf16.msra.mxu0 %v422
      %448 = vmatprep.subr.bf16.mxu0 0
      %449 = vmatpush1.bf16.msra.mxu0 %v421
      %450 = vmatprep.subr.bf16.mxu0 0
      %451 = vmatpush1.bf16.msra.mxu0 %v420
      %452 = vmatprep.subr.bf16.mxu0 0
      %453 = vmatpush2.bf16.msra.mxu0 0
      %454 = vmatprep.subr.bf16.mxu0 0
      %455 = vmatpush2.bf16.msra.mxu0 0
      %456 = vmatprep.subr.bf16.mxu0 0
      %457 = vmatpush2.bf16.msra.mxu0 0
      %458 = vmatprep.subr.bf16.mxu0 0
      %459 = vmatpush2.bf16.msra.mxu0 0
      %460 = vmatprep.subr.bf16.mxu0 0
      %461 = vmatpush2.bf16.msra.mxu0 0
      %462 = vmatprep.subr.bf16.mxu0 0
      %463 = vmatpush2.bf16.msra.mxu0 0
      %464 = vmatprep.subr.bf16.mxu0 0
      %465 = vmatpush2.bf16.msra.mxu0 0
      %466 = vmatprep.subr.bf16.mxu0 0
      %467 = vmatpush2.bf16.msra.mxu0 0
      %468 = vmatprep.mubr.bf16.mxu0 0
      %469 = vmatmul.mubr.bf16.gmra.mxu0 %v251
      %v470 = vpop.f32.mrf.mxu0
      %v471 = vadd.f32 %v383, %v470
      %v472 = vpop.f32.mrf.mxu0
      %v473 = vpop.f32.mrf.mxu0
      %v474 = vpop.f32.mrf.mxu0
      %475 = vdwg.mxu0
      %v476 = vld [vmem:[%s245] sm:$0xe]
      %v477 = vld [vmem:[%s245 + $0x4] sm:$0x3]
      %s478 = scalar_lea.vmem %s1, 128
      %v479 = vld [vmem:[%s478] sm:$0xf]
      %v480 = vld [vmem:[%s478 + $0x4] sm:$0xf]
      %v481 = vld [vmem:[%s478 + $0x8] sm:$0xf]
      %v482 = vld [vmem:[%s478 + $0xc] sm:$0xf]
      %v483 = vld [vmem:[%s478 + $0x10] sm:$0xf]
      %v484 = vld [vmem:[%s478 + $0x14] sm:$0xf]
      %v485 = vld [vmem:[%s478 + $0x18] sm:$0xf]
      %v486 = vld [vmem:[%s478 + $0x1c] sm:$0xf]
      %v487 = vld [vmem:[%s478 + $0x20] sm:$0xf]
      %v488 = vld [vmem:[%s478 + $0x24] sm:$0xf]
      %v489 = vld [vmem:[%s478 + $0x28] sm:$0xf]
      %v490 = vld [vmem:[%s478 + $0x2c] sm:$0xf]
      %v491 = vld [vmem:[%s478 + $0x30] sm:$0xf]
      %v492 = vld [vmem:[%s478 + $0x34] sm:$0xf]
      %v493 = vld [vmem:[%s478 + $0x38] sm:$0xf]
      %v494 = vld [vmem:[%s478 + $0x3c] sm:$0xf]
      %v497 = vunpack.c.l.b16 %v476
      %v498 = vunpack.c.l.b16 %v477
      %v499 = vpack.c.b16 %v498, %v497
      %v501 = vshrl.u32 %v499, 16
      %v503 = vrot.slane %v501, 1
      %v504 = vshll.u32 %v499, 16
      %v506 = vrot.slane %v504, 2
      %v507 = vor.u32 %v503, %v506
      %v525 = vunpack.c.l.b16 %v479
      %v526 = vunpack.c.l.b16 %v480
      %v527 = vunpack.c.l.b16 %v481
      %v528 = vunpack.c.l.b16 %v482
      %v529 = vunpack.c.l.b16 %v483
      %v530 = vunpack.c.l.b16 %v484
      %v531 = vunpack.c.l.b16 %v485
      %v532 = vunpack.c.l.b16 %v486
      %v533 = vunpack.c.l.b16 %v487
      %v534 = vunpack.c.l.b16 %v488
      %v535 = vunpack.c.l.b16 %v489
      %v536 = vunpack.c.l.b16 %v490
      %v537 = vunpack.c.l.b16 %v491
      %v538 = vunpack.c.l.b16 %v492
      %v539 = vunpack.c.l.b16 %v493
      %v540 = vunpack.c.l.b16 %v494
      %v541 = vpack.c.b16 %v526, %v525
      %v542 = vpack.c.b16 %v528, %v527
      %v543 = vpack.c.b16 %v530, %v529
      %v544 = vpack.c.b16 %v532, %v531
      %v545 = vpack.c.b16 %v534, %v533
      %v546 = vpack.c.b16 %v536, %v535
      %v547 = vpack.c.b16 %v538, %v537
      %v548 = vpack.c.b16 %v540, %v539
      %557 = vmatprep.subr.bf16.mxu0 0
      %558 = vmatpush1.bf16.msra.mxu0 %v548
      %559 = vmatprep.subr.bf16.mxu0 0
      %560 = vmatpush1.bf16.msra.mxu0 %v547
      %561 = vmatprep.subr.bf16.mxu0 0
      %562 = vmatpush1.bf16.msra.mxu0 %v546
      %563 = vmatprep.subr.bf16.mxu0 0
      %564 = vmatpush1.bf16.msra.mxu0 %v545
      %565 = vmatprep.subr.bf16.mxu0 0
      %566 = vmatpush1.bf16.msra.mxu0 %v544
      %567 = vmatprep.subr.bf16.mxu0 0
      %568 = vmatpush1.bf16.msra.mxu0 %v543
      %569 = vmatprep.subr.bf16.mxu0 0
      %570 = vmatpush1.bf16.msra.mxu0 %v542
      %571 = vmatprep.subr.bf16.mxu0 0
      %572 = vmatpush1.bf16.msra.mxu0 %v541
      %573 = vmatprep.subr.bf16.mxu0 0
      %574 = vmatpush2.bf16.msra.mxu0 0
      %575 = vmatprep.subr.bf16.mxu0 0
      %576 = vmatpush2.bf16.msra.mxu0 0
      %577 = vmatprep.subr.bf16.mxu0 0
      %578 = vmatpush2.bf16.msra.mxu0 0
      %579 = vmatprep.subr.bf16.mxu0 0
      %580 = vmatpush2.bf16.msra.mxu0 0
      %581 = vmatprep.subr.bf16.mxu0 0
      %582 = vmatpush2.bf16.msra.mxu0 0
      %583 = vmatprep.subr.bf16.mxu0 0
      %584 = vmatpush2.bf16.msra.mxu0 0
      %585 = vmatprep.subr.bf16.mxu0 0
      %586 = vmatpush2.bf16.msra.mxu0 0
      %587 = vmatprep.subr.bf16.mxu0 0
      %588 = vmatpush2.bf16.msra.mxu0 0
      %589 = vmatprep.mubr.bf16.mxu0 0
      %590 = vmatmul.mubr.bf16.gmra.mxu0 %v507
      %v591 = vpop.f32.mrf.mxu0
      %v592 = vadd.f32 0.0, %v591
      %v593 = vpop.f32.mrf.mxu0
      %v594 = vpop.f32.mrf.mxu0
      %v595 = vpop.f32.mrf.mxu0
      %596 = vdwg.mxu0
      %v597 = vadd.f32 %v471, %v592
      %v598 = vld [vmem:[%s245] sm:$0xc]
      %s599 = scalar_lea.vmem %s1, 192
      %v600 = vld [vmem:[%s599] sm:$0xf]
      %v601 = vld [vmem:[%s599 + $0x4] sm:$0xf]
      %v602 = vld [vmem:[%s599 + $0x8] sm:$0xf]
      %v603 = vld [vmem:[%s599 + $0xc] sm:$0xf]
      %v604 = vld [vmem:[%s599 + $0x10] sm:$0xf]
      %v605 = vld [vmem:[%s599 + $0x14] sm:$0xf]
      %v606 = vld [vmem:[%s599 + $0x18] sm:$0xf]
      %v607 = vld [vmem:[%s599 + $0x1c] sm:$0xf]
      %v608 = vld [vmem:[%s599 + $0x20] sm:$0xf]
      %v609 = vld [vmem:[%s599 + $0x24] sm:$0xf]
      %v610 = vld [vmem:[%s599 + $0x28] sm:$0xf]
      %v611 = vld [vmem:[%s599 + $0x2c] sm:$0xf]
      %v612 = vld [vmem:[%s599 + $0x30] sm:$0xf]
      %v613 = vld [vmem:[%s599 + $0x34] sm:$0xf]
      %v614 = vld [vmem:[%s599 + $0x38] sm:$0xf]
      %v615 = vld [vmem:[%s599 + $0x3c] sm:$0xf]
      %v617 = vunpack.c.l.b16 %v598
      %v618 = vpack.c.b16 %v498, %v617
      %v619 = vrot.slane %v618, 2
      %v637 = vunpack.c.l.b16 %v600
      %v638 = vunpack.c.l.b16 %v601
      %v639 = vunpack.c.l.b16 %v602
      %v640 = vunpack.c.l.b16 %v603
      %v641 = vunpack.c.l.b16 %v604
      %v642 = vunpack.c.l.b16 %v605
      %v643 = vunpack.c.l.b16 %v606
      %v644 = vunpack.c.l.b16 %v607
      %v645 = vunpack.c.l.b16 %v608
      %v646 = vunpack.c.l.b16 %v609
      %v647 = vunpack.c.l.b16 %v610
      %v648 = vunpack.c.l.b16 %v611
      %v649 = vunpack.c.l.b16 %v612
      %v650 = vunpack.c.l.b16 %v613
      %v651 = vunpack.c.l.b16 %v614
      %v652 = vunpack.c.l.b16 %v615
      %v653 = vpack.c.b16 %v638, %v637
      %v654 = vpack.c.b16 %v640, %v639
      %v655 = vpack.c.b16 %v642, %v641
      %v656 = vpack.c.b16 %v644, %v643
      %v657 = vpack.c.b16 %v646, %v645
      %v658 = vpack.c.b16 %v648, %v647
      %v659 = vpack.c.b16 %v650, %v649
      %v660 = vpack.c.b16 %v652, %v651
      %669 = vmatprep.subr.bf16.mxu0 0
      %670 = vmatpush1.bf16.msra.mxu0 %v660
      %671 = vmatprep.subr.bf16.mxu0 0
      %672 = vmatpush1.bf16.msra.mxu0 %v659
      %673 = vmatprep.subr.bf16.mxu0 0
      %674 = vmatpush1.bf16.msra.mxu0 %v658
      %675 = vmatprep.subr.bf16.mxu0 0
      %676 = vmatpush1.bf16.msra.mxu0 %v657
      %677 = vmatprep.subr.bf16.mxu0 0
      %678 = vmatpush1.bf16.msra.mxu0 %v656
      %679 = vmatprep.subr.bf16.mxu0 0
      %680 = vmatpush1.bf16.msra.mxu0 %v655
      %681 = vmatprep.subr.bf16.mxu0 0
      %682 = vmatpush1.bf16.msra.mxu0 %v654
      %683 = vmatprep.subr.bf16.mxu0 0
      %684 = vmatpush1.bf16.msra.mxu0 %v653
      %685 = vmatprep.subr.bf16.mxu0 0
      %686 = vmatpush2.bf16.msra.mxu0 0
      %687 = vmatprep.subr.bf16.mxu0 0
      %688 = vmatpush2.bf16.msra.mxu0 0
      %689 = vmatprep.subr.bf16.mxu0 0
      %690 = vmatpush2.bf16.msra.mxu0 0
      %691 = vmatprep.subr.bf16.mxu0 0
      %692 = vmatpush2.bf16.msra.mxu0 0
      %693 = vmatprep.subr.bf16.mxu0 0
      %694 = vmatpush2.bf16.msra.mxu0 0
      %695 = vmatprep.subr.bf16.mxu0 0
      %696 = vmatpush2.bf16.msra.mxu0 0
      %697 = vmatprep.subr.bf16.mxu0 0
      %698 = vmatpush2.bf16.msra.mxu0 0
      %699 = vmatprep.subr.bf16.mxu0 0
      %700 = vmatpush2.bf16.msra.mxu0 0
      %701 = vmatprep.mubr.bf16.mxu0 0
      %702 = vmatmul.mubr.bf16.gmra.mxu0 %v619
      %v703 = vpop.f32.mrf.mxu0
      %v704 = vadd.f32 0.0, %v703
      %v705 = vpop.f32.mrf.mxu0
      %v706 = vpop.f32.mrf.mxu0
      %v707 = vpop.f32.mrf.mxu0
      %708 = vdwg.mxu0
      %v709 = vadd.f32 %v597, %v704
      %v710 = vld [vmem:[%s2] sm:$0x1]
      %v712 = vlaneseq
      %v713 = vshrl.u32 %v712, 7
      %v714 = vsub.s32 0, %v713
      %v715 = vrot.slane %v710, %v714
      %v717 = vmul.f32 %v709, %v715
      %v718 = vld [vmem:[%s3] sm:$0x1]
      %v720 = vlaneseq
      %v721 = vshrl.u32 %v720, 7
      %v722 = vsub.s32 0, %v721
      %v723 = vrot.slane %v718, %v722
      %v725 = vadd.f32 %v717, %v723
      %v726 = vmax.f32 %v725, 0.0
      %v727 = vpack.c.bf16 %v726, %v726
      %v728 = vld [vmem:[%s4] sm:$0xf]
      %v729 = vld [vmem:[%s4 + $0x4] sm:$0xf]
      %v730 = vld [vmem:[%s4 + $0x8] sm:$0xf]
      %v731 = vld [vmem:[%s4 + $0xc] sm:$0xf]
      %v732 = vld [vmem:[%s4 + $0x10] sm:$0xf]
      %v733 = vld [vmem:[%s4 + $0x14] sm:$0xf]
      %v734 = vld [vmem:[%s4 + $0x18] sm:$0xf]
      %v735 = vld [vmem:[%s4 + $0x1c] sm:$0xf]
      %v736 = vld [vmem:[%s5] sm:$0x1]
      %v738 = vlaneseq
      %v739 = vshrl.u32 %v738, 7
      %v740 = vsub.s32 0, %v739
      %v741 = vrot.slane %v736, %v740
      %v751 = vunpack.c.l.b16 %v728
      %v752 = vunpack.c.l.b16 %v729
      %v753 = vunpack.c.l.b16 %v730
      %v754 = vunpack.c.l.b16 %v731
      %v755 = vunpack.c.l.b16 %v732
      %v756 = vunpack.c.l.b16 %v733
      %v757 = vunpack.c.l.b16 %v734
      %v758 = vunpack.c.l.b16 %v735
      %v759 = vpack.c.b16 %v752, %v751
      %v760 = vpack.c.b16 %v754, %v753
      %v761 = vpack.c.b16 %v756, %v755
      %v762 = vpack.c.b16 %v758, %v757
      %vm767 = vcmask 523264
      %v769 = vsel %vm767, %v727, 0
      %771 = vmatprep.subr.bf16.mxu0 0
      %772 = vmatpush1.bf16.msra.mxu0 0
      %773 = vmatprep.subr.bf16.mxu0 0
      %774 = vmatpush1.bf16.msra.mxu0 0
      %775 = vmatprep.subr.bf16.mxu0 0
      %776 = vmatpush1.bf16.msra.mxu0 0
      %777 = vmatprep.subr.bf16.mxu0 0
      %778 = vmatpush1.bf16.msra.mxu0 0
      %779 = vmatprep.subr.bf16.mxu0 0
      %780 = vmatpush1.bf16.msra.mxu0 %v762
      %781 = vmatprep.subr.bf16.mxu0 0
      %782 = vmatpush1.bf16.msra.mxu0 %v761
      %783 = vmatprep.subr.bf16.mxu0 0
      %784 = vmatpush1.bf16.msra.mxu0 %v760
      %785 = vmatprep.subr.bf16.mxu0 0
      %786 = vmatpush1.bf16.msra.mxu0 %v759
      %787 = vmatprep.subr.bf16.mxu0 0
      %788 = vmatpush2.bf16.msra.mxu0 0
      %789 = vmatprep.subr.bf16.mxu0 0
      %790 = vmatpush2.bf16.msra.mxu0 0
      %791 = vmatprep.subr.bf16.mxu0 0
      %792 = vmatpush2.bf16.msra.mxu0 0
      %793 = vmatprep.subr.bf16.mxu0 0
      %794 = vmatpush2.bf16.msra.mxu0 0
      %795 = vmatprep.subr.bf16.mxu0 0
      %796 = vmatpush2.bf16.msra.mxu0 0
      %797 = vmatprep.subr.bf16.mxu0 0
      %798 = vmatpush2.bf16.msra.mxu0 0
      %799 = vmatprep.subr.bf16.mxu0 0
      %800 = vmatpush2.bf16.msra.mxu0 0
      %801 = vmatprep.subr.bf16.mxu0 0
      %802 = vmatpush2.bf16.msra.mxu0 0
      %803 = vmatprep.mubr.bf16.mxu0 0
      %804 = vmatmul.mubr.bf16.gmra.mxu0 %v769
      %v805 = vpop.f32.mrf.mxu0
      %v806 = vadd.f32 %v741, %v805
      %v807 = vpop.f32.mrf.mxu0
      %v808 = vpop.f32.mrf.mxu0
      %v809 = vpop.f32.mrf.mxu0
      %810 = vdwg.mxu0
      %v811 = vpack.c.bf16 %v806, %v806
      %vm812 = vcmask 519168
      %813 = vst.msk [vmem:[%s249] sm:$0xf] %vm812, %v811
      %p814 = scmp.lt.s32.totalorder %s17, 1
      %s815 = scalar_select %p814, %s17, 1
      %s816 = smul.addr %s815, 4
      %s817 = scalar_lea.vmem %s6, %s816
      // Predicated region
      $region45: #{conv_stem_forward.7} parent=43 // pred_check
        %p818 = pneg %p166
      $region46: #{conv_stem_forward.7} parent=43 // pred_check_branch
        %820 = sbr.rel (%p818) target = $region48
      $region47: #{conv_stem_forward.7} parent=43 // pred_region
        _
      $region48: #{conv_stem_forward.7} parent=43 // pred_fallthru
        _
    $region44: #{conv_stem_forward.7} parent=5 // pred_fallthru
      _
    %p821 = scmp.le.s32.totalorder 2, %s12
    // Predicated region
    $region49: #{conv_stem_forward.7} parent=5 // pred_check
      %p822 = pneg %p821
    $region50: #{conv_stem_forward.7} parent=5 // pred_check_branch
      %824 = sbr.rel (%p822) target = $region52
    $region51: #{conv_stem_forward.7} parent=5 // pred_region
      %s825 = ssub.s32 %s12, 2
      // Predicated region
      $region53: #{conv_stem_forward.7} parent=51 // pred_check
        %p826 = pneg %p172
      $region54: #{conv_stem_forward.7} parent=51 // pred_check_branch
        %828 = sbr.rel (%p826) target = $region56
      $region55: #{conv_stem_forward.7} parent=51 // pred_region
        %p829 = scmp.lt.s32.totalorder %s18, 1
        %s830 = scalar_select %p829, %s18, 1
        %s831 = smul.addr %s830, 4
        %s832 = scalar_lea.vmem %s6, %s831
      $region56: #{conv_stem_forward.7} parent=51 // pred_fallthru
        _
    $region52: #{conv_stem_forward.7} parent=5 // pred_fallthru
      _
  $region6: #{conv_stem_forward.7} parent=0 // loop_footer
    %s16 = sadd.s32 1, %s12
  $region7: #{conv_stem_forward.7} parent=0 // loop_footer_branch
    %11 = sbr.rel target = $region3
  $region8: #{conv_stem_forward.7} parent=0 // loop_exit
    _

</llo_original>
